<compile_context>
chip_gen: v7x
topology: tpu7x:2x2x1
jax: 0.10.0
libtpu: 0.0.40
codegen_flags: <defaults>
</compile_context>

<pallas_src>
import jax
import jax.numpy as jnp
import numpy as np
from jax.experimental import pallas as pl
from jax.experimental.pallas import tpu as pltpu

BLANK_ID = 0  # ctcdecode default blank_id


def _ctc_bestpath_kernel(sizes_ref, logits_ref, tok_ref, pos_ref):
    """Per-batch-tile kernel: argmax over vocab + CTC collapse bookkeeping.

    prefetch: sizes_ref (B,) i32 in SMEM (full array, scalar prefetch)
    in      : logits_ref (Bb, T, V) float (native dtype)
    out     : tok_ref (Bb, T) i32  emitted tokens (0 where nothing emitted)
              pos_ref (Bb, T) i32  output position of each emitted token
                                   (== T sentinel where nothing emitted)
    """
    Bb, T, V = logits_ref.shape
    b0 = pl.program_id(0) * Bb

    x = logits_ref[...]                                           # (Bb, T, V)

    # ---- argmax over vocab (lane reduction), lowest-index tie-break ----
    # (explicit max + iota + min keeps the tie-break identical to np.argmax
    #  and lowers robustly on Mosaic)
    mx = jnp.max(x, axis=-1, keepdims=True)                       # (Bb, T, 1)
    col = jax.lax.broadcasted_iota(jnp.int32, (Bb, T, V), 2)
    am = jnp.min(jnp.where(x == mx, col, V), axis=-1)             # (Bb, T) i32

    # ---- mask frames beyond each sequence length with blank ----
    # Per-row lengths come from SMEM scalars; Bb is a small static constant.
    t_iota = jax.lax.broadcasted_iota(jnp.int32, (Bb, T), 1)
    row = jax.lax.broadcasted_iota(jnp.int32, (Bb, 1), 0)
    size_col = jnp.zeros((Bb, 1), jnp.int32)
    for j in range(Bb):                                           # static loop
        size_col = jnp.where(row == j, sizes_ref[b0 + j], size_col)
    am = jnp.where(t_iota < size_col, am, BLANK_ID)

    # ---- CTC collapse: drop repeats then blanks ----
    # prev[t] = am[t-1] via an XLU lane roll (prev[0] = blank).
    prev = pltpu.roll(am, 1, 1)                                   # (Bb, T)
    prev = jnp.where(t_iota == 0, BLANK_ID, prev)
    emit = (am != BLANK_ID) & (am != prev)                        # (Bb, T) bool

    # Inclusive prefix-sum over time: log2(T) roll+add (Hillis-Steele scan),
    # masking the wrapped lanes.  No (T,T) triangular matrix in VMEM.
    cum = emit.astype(jnp.int32)
    d = 1
    while d < T:
        cum = cum + jnp.where(t_iota >= d, pltpu.roll(cum, d, 1), 0)
        d *= 2

    tok_ref[...] = jnp.where(emit, am, 0)
    # T is an out-of-range sentinel so the wrapper scatter can drop non-emits.
    pos_ref[...] = jnp.where(emit, cum - 1, T)


def beam_search_ctc_decode(logits, sizes, beam_size=3):
    """Pallas-backed replacement for BeamSearchCTC.forward.

    Returns (outputs, out_lens): outputs (B, T) int32, left-aligned decoded
    token ids padded with 0, and out_lens (B,) int32.
    """
    # TODO(synk): ctcdecode prefix beam search (beam_size, KenLM alpha/beta,
    # cutoff pruning, beam merging) has no clean Pallas equivalent; best-path
    # (greedy) CTC decode is implemented instead.
    del beam_size
    B, T, V = logits.shape
    sizes1 = jnp.asarray(sizes, jnp.int32).reshape(B)

    # Batch tile: 8 rows when possible (keeps the (Bb, T) output blocks
    # sublane-aligned); otherwise a single full-batch block.
    Bb = 8 if (B % 8 == 0 and B >= 8) else B
    grid = (B // Bb,)
    # TODO(synk): for very long T / large V, additionally tile over time with
    # a cross-tile carry (prev token + running position) in scratch.

    tok, pos = pl.pallas_call(
        _ctc_bestpath_kernel,
        grid_spec=pltpu.PrefetchScalarGridSpec(
            num_scalar_prefetch=1,
            grid=grid,
            in_specs=[
                pl.BlockSpec((Bb, T, V), lambda b, szs: (b, 0, 0)),
            ],
            out_specs=[
                pl.BlockSpec((Bb, T), lambda b, szs: (b, 0)),
                pl.BlockSpec((Bb, T), lambda b, szs: (b, 0)),
            ],
        ),
        out_shape=[
            jax.ShapeDtypeStruct((B, T), jnp.int32),
            jax.ShapeDtypeStruct((B, T), jnp.int32),
        ],
        compiler_params=pltpu.CompilerParams(
            dimension_semantics=("parallel",),      # 2x on v7x megacore
            vmem_limit_bytes=32 * 1024 * 1024,       # fits v7x's 64 MiB VMEM
        ),
    )(sizes1, logits)

    # Glue: compact emitted tokens to the front of each row — O(B*T) scatter.
    bidx = jnp.arange(B, dtype=jnp.int32)[:, None]
    outputs = jnp.zeros((B, T), jnp.int32).at[bidx, pos].set(tok, mode="drop")
    out_lens = jnp.sum((tok != 0).astype(jnp.int32), axis=-1)
    return outputs, out_lens


def _reference_decode(logits, sizes, blank=BLANK_ID):
    """Pure-numpy greedy CTC decode for verification."""
    logits = np.asarray(logits, dtype=np.float32)
    sizes = np.asarray(sizes)
    B, T, _ = logits.shape
    outs = np.zeros((B, T), dtype=np.int32)
    lens = np.zeros((B,), dtype=np.int32)
    for b in range(B):
        am = logits[b, : sizes[b]].argmax(-1)
        prev, k = -1, 0
        for t in am:
            if t != blank and t != prev:
                outs[b, k] = t
                k += 1
            prev = t
        lens[b] = k
    return outs, lens


if __name__ == "__main__":
    key = jax.random.PRNGKey(0)
    B, T, V = 16, 128, 128                     # batch, time, vocab
    # Deterministic "decoder config" (the module has no learned weights).
    labels = [f"tok{i}" for i in range(V)]     # noqa: F841
    alpha, beta, cutoff_top_n, cutoff_prob = 0, 0, 40, 1.0  # noqa: F841

    k1, k2 = jax.random.split(key)
    logits = jax.nn.softmax(
        jax.random.normal(k1, (B, T, V), dtype=jnp.float32), axis=-1
    )
    sizes = jax.random.randint(k2, (B,), minval=1, maxval=T + 1, dtype=jnp.int32)

    outputs, out_lens = beam_search_ctc_decode(logits, sizes)
    jax.block_until_ready(outputs)
    jax.block_until_ready(out_lens)

    ref_o, ref_l = _reference_decode(logits, sizes)
    assert np.array_equal(np.asarray(outputs), ref_o), "token mismatch"
    assert np.array_equal(np.asarray(out_lens), ref_l), "length mismatch"
    print("KERNEL_OK")
</pallas_src>

<mosaic_0001>
module attributes {stable_mosaic.version = 11 : i64} {
  func.func @_ctc_bestpath_kernel(%arg0: i32, %arg1: memref<16xi32, #tpu.memory_space<smem>>, %arg2: memref<8x128x128xf32, #tpu.memory_space<vmem>>, %arg3: memref<8x128xi32, #tpu.memory_space<vmem>>, %arg4: memref<8x128xi32, #tpu.memory_space<vmem>>) attributes {dimension_semantics = [#tpu.dimension_semantics<parallel>], iteration_bounds = array<i64: 2>, scalar_prefetch = 1 : i64, scratch_operands = 0 : i64, tpu.core_type = #tpu.core_type<tc>, window_params = [{transform_indices = @transform_0, window_bounds = array<i64: 8, 128, 128>}, {transform_indices = @transform_1, window_bounds = array<i64: 8, 128>}, {transform_indices = @transform_2, window_bounds = array<i64: 8, 128>}]} {
    %c8_i32 = arith.constant 8 : i32
    %0 = arith.muli %arg0, %c8_i32 : i32
    %c0 = arith.constant 0 : index
    %c0_0 = arith.constant 0 : index
    %c0_1 = arith.constant 0 : index
    %1 = vector.load %arg2[%c0, %c0_0, %c0_1] : memref<8x128x128xf32, #tpu.memory_space<vmem>>, vector<8x128x128xf32>
    %cst = arith.constant dense<0xFF800000> : vector<8x128xf32>
    %2 = vector.multi_reduction <maximumf>, %1, %cst [2] : vector<8x128x128xf32> to vector<8x128xf32>
    %3 = vector.shape_cast %2 : vector<8x128xf32> to vector<8x128x1xf32>
    %4 = tpu.iota {dimensions = array<i32: 2>} : vector<8x128x128xi32>
    %5 = vector.broadcast %3 : vector<8x128x1xf32> to vector<8x128x128xf32>
    %6 = arith.cmpf oeq, %1, %5 : vector<8x128x128xf32>
    %c128_i32 = arith.constant 128 : i32
    %7 = vector.broadcast %c128_i32 : i32 to vector<8x128x128xi32>
    %8 = arith.select %6, %4, %7 : vector<8x128x128xi1>, vector<8x128x128xi32>
    %cst_2 = arith.constant dense<2147483647> : vector<8x128xi32>
    %9 = vector.multi_reduction <minsi>, %8, %cst_2 [2] : vector<8x128x128xi32> to vector<8x128xi32>
    %10 = tpu.iota {dimensions = array<i32: 1>} : vector<8x128xi32>
    %11 = tpu.iota {dimensions = array<i32: 0>} : vector<8x1xi32>
    %c0_i32 = arith.constant 0 : i32
    %12 = vector.broadcast %c0_i32 : i32 to vector<8x1xi32>
    %c0_i32_3 = arith.constant 0 : i32
    %13 = vector.broadcast %c0_i32_3 : i32 to vector<8x1xi32>
    %14 = arith.cmpi eq, %11, %13 : vector<8x1xi32>
    %c0_i32_4 = arith.constant 0 : i32
    %15 = arith.addi %0, %c0_i32_4 : i32
    %16 = arith.index_cast %15 : i32 to index
    %17 = memref.load %arg1[%16] : memref<16xi32, #tpu.memory_space<smem>>
    %18 = vector.broadcast %17 : i32 to vector<8x1xi32>
    %19 = arith.select %14, %18, %12 : vector<8x1xi1>, vector<8x1xi32>
    %c1_i32 = arith.constant 1 : i32
    %20 = vector.broadcast %c1_i32 : i32 to vector<8x1xi32>
    %21 = arith.cmpi eq, %11, %20 : vector<8x1xi32>
    %c1_i32_5 = arith.constant 1 : i32
    %22 = arith.addi %0, %c1_i32_5 : i32
    %23 = arith.index_cast %22 : i32 to index
    %24 = memref.load %arg1[%23] : memref<16xi32, #tpu.memory_space<smem>>
    %25 = vector.broadcast %24 : i32 to vector<8x1xi32>
    %26 = arith.select %21, %25, %19 : vector<8x1xi1>, vector<8x1xi32>
    %c2_i32 = arith.constant 2 : i32
    %27 = vector.broadcast %c2_i32 : i32 to vector<8x1xi32>
    %28 = arith.cmpi eq, %11, %27 : vector<8x1xi32>
    %c2_i32_6 = arith.constant 2 : i32
    %29 = arith.addi %0, %c2_i32_6 : i32
    %30 = arith.index_cast %29 : i32 to index
    %31 = memref.load %arg1[%30] : memref<16xi32, #tpu.memory_space<smem>>
    %32 = vector.broadcast %31 : i32 to vector<8x1xi32>
    %33 = arith.select %28, %32, %26 : vector<8x1xi1>, vector<8x1xi32>
    %c3_i32 = arith.constant 3 : i32
    %34 = vector.broadcast %c3_i32 : i32 to vector<8x1xi32>
    %35 = arith.cmpi eq, %11, %34 : vector<8x1xi32>
    %c3_i32_7 = arith.constant 3 : i32
    %36 = arith.addi %0, %c3_i32_7 : i32
    %37 = arith.index_cast %36 : i32 to index
    %38 = memref.load %arg1[%37] : memref<16xi32, #tpu.memory_space<smem>>
    %39 = vector.broadcast %38 : i32 to vector<8x1xi32>
    %40 = arith.select %35, %39, %33 : vector<8x1xi1>, vector<8x1xi32>
    %c4_i32 = arith.constant 4 : i32
    %41 = vector.broadcast %c4_i32 : i32 to vector<8x1xi32>
    %42 = arith.cmpi eq, %11, %41 : vector<8x1xi32>
    %c4_i32_8 = arith.constant 4 : i32
    %43 = arith.addi %0, %c4_i32_8 : i32
    %44 = arith.index_cast %43 : i32 to index
    %45 = memref.load %arg1[%44] : memref<16xi32, #tpu.memory_space<smem>>
    %46 = vector.broadcast %45 : i32 to vector<8x1xi32>
    %47 = arith.select %42, %46, %40 : vector<8x1xi1>, vector<8x1xi32>
    %c5_i32 = arith.constant 5 : i32
    %48 = vector.broadcast %c5_i32 : i32 to vector<8x1xi32>
    %49 = arith.cmpi eq, %11, %48 : vector<8x1xi32>
    %c5_i32_9 = arith.constant 5 : i32
    %50 = arith.addi %0, %c5_i32_9 : i32
    %51 = arith.index_cast %50 : i32 to index
    %52 = memref.load %arg1[%51] : memref<16xi32, #tpu.memory_space<smem>>
    %53 = vector.broadcast %52 : i32 to vector<8x1xi32>
    %54 = arith.select %49, %53, %47 : vector<8x1xi1>, vector<8x1xi32>
    %c6_i32 = arith.constant 6 : i32
    %55 = vector.broadcast %c6_i32 : i32 to vector<8x1xi32>
    %56 = arith.cmpi eq, %11, %55 : vector<8x1xi32>
    %c6_i32_10 = arith.constant 6 : i32
    %57 = arith.addi %0, %c6_i32_10 : i32
    %58 = arith.index_cast %57 : i32 to index
    %59 = memref.load %arg1[%58] : memref<16xi32, #tpu.memory_space<smem>>
    %60 = vector.broadcast %59 : i32 to vector<8x1xi32>
    %61 = arith.select %56, %60, %54 : vector<8x1xi1>, vector<8x1xi32>
    %c7_i32 = arith.constant 7 : i32
    %62 = vector.broadcast %c7_i32 : i32 to vector<8x1xi32>
    %63 = arith.cmpi eq, %11, %62 : vector<8x1xi32>
    %c7_i32_11 = arith.constant 7 : i32
    %64 = arith.addi %0, %c7_i32_11 : i32
    %65 = arith.index_cast %64 : i32 to index
    %66 = memref.load %arg1[%65] : memref<16xi32, #tpu.memory_space<smem>>
    %67 = vector.broadcast %66 : i32 to vector<8x1xi32>
    %68 = arith.select %63, %67, %61 : vector<8x1xi1>, vector<8x1xi32>
    %69 = vector.broadcast %68 : vector<8x1xi32> to vector<8x128xi32>
    %70 = arith.cmpi slt, %10, %69 : vector<8x128xi32>
    %c0_i32_12 = arith.constant 0 : i32
    %71 = vector.broadcast %c0_i32_12 : i32 to vector<8x128xi32>
    %72 = arith.select %70, %9, %71 : vector<8x128xi1>, vector<8x128xi32>
    %c1_i32_13 = arith.constant 1 : i32
    %73 = tpu.dynamic_rotate %72 by %c1_i32_13 dim 1 : vector<8x128xi32>, i32 -> vector<8x128xi32>
    %c0_i32_14 = arith.constant 0 : i32
    %74 = vector.broadcast %c0_i32_14 : i32 to vector<8x128xi32>
    %75 = arith.cmpi eq, %10, %74 : vector<8x128xi32>
    %c0_i32_15 = arith.constant 0 : i32
    %76 = vector.broadcast %c0_i32_15 : i32 to vector<8x128xi32>
    %77 = arith.select %75, %76, %73 : vector<8x128xi1>, vector<8x128xi32>
    %c0_i32_16 = arith.constant 0 : i32
    %78 = vector.broadcast %c0_i32_16 : i32 to vector<8x128xi32>
    %79 = arith.cmpi ne, %72, %78 : vector<8x128xi32>
    %80 = arith.cmpi ne, %72, %77 : vector<8x128xi32>
    %81 = arith.andi %79, %80 : vector<8x128xi1>
    %82 = arith.extui %81 : vector<8x128xi1> to vector<8x128xi32>
    %c1_i32_17 = arith.constant 1 : i32
    %83 = vector.broadcast %c1_i32_17 : i32 to vector<8x128xi32>
    %84 = arith.cmpi sge, %10, %83 : vector<8x128xi32>
    %c1_i32_18 = arith.constant 1 : i32
    %85 = tpu.dynamic_rotate %82 by %c1_i32_18 dim 1 : vector<8x128xi32>, i32 -> vector<8x128xi32>
    %c0_i32_19 = arith.constant 0 : i32
    %86 = vector.broadcast %c0_i32_19 : i32 to vector<8x128xi32>
    %87 = arith.select %84, %85, %86 : vector<8x128xi1>, vector<8x128xi32>
    %88 = arith.addi %82, %87 : vector<8x128xi32>
    %c2_i32_20 = arith.constant 2 : i32
    %89 = vector.broadcast %c2_i32_20 : i32 to vector<8x128xi32>
    %90 = arith.cmpi sge, %10, %89 : vector<8x128xi32>
    %c2_i32_21 = arith.constant 2 : i32
    %91 = tpu.dynamic_rotate %88 by %c2_i32_21 dim 1 : vector<8x128xi32>, i32 -> vector<8x128xi32>
    %c0_i32_22 = arith.constant 0 : i32
    %92 = vector.broadcast %c0_i32_22 : i32 to vector<8x128xi32>
    %93 = arith.select %90, %91, %92 : vector<8x128xi1>, vector<8x128xi32>
    %94 = arith.addi %88, %93 : vector<8x128xi32>
    %c4_i32_23 = arith.constant 4 : i32
    %95 = vector.broadcast %c4_i32_23 : i32 to vector<8x128xi32>
    %96 = arith.cmpi sge, %10, %95 : vector<8x128xi32>
    %c4_i32_24 = arith.constant 4 : i32
    %97 = tpu.dynamic_rotate %94 by %c4_i32_24 dim 1 : vector<8x128xi32>, i32 -> vector<8x128xi32>
    %c0_i32_25 = arith.constant 0 : i32
    %98 = vector.broadcast %c0_i32_25 : i32 to vector<8x128xi32>
    %99 = arith.select %96, %97, %98 : vector<8x128xi1>, vector<8x128xi32>
    %100 = arith.addi %94, %99 : vector<8x128xi32>
    %c8_i32_26 = arith.constant 8 : i32
    %101 = vector.broadcast %c8_i32_26 : i32 to vector<8x128xi32>
    %102 = arith.cmpi sge, %10, %101 : vector<8x128xi32>
    %c8_i32_27 = arith.constant 8 : i32
    %103 = tpu.dynamic_rotate %100 by %c8_i32_27 dim 1 : vector<8x128xi32>, i32 -> vector<8x128xi32>
    %c0_i32_28 = arith.constant 0 : i32
    %104 = vector.broadcast %c0_i32_28 : i32 to vector<8x128xi32>
    %105 = arith.select %102, %103, %104 : vector<8x128xi1>, vector<8x128xi32>
    %106 = arith.addi %100, %105 : vector<8x128xi32>
    %c16_i32 = arith.constant 16 : i32
    %107 = vector.broadcast %c16_i32 : i32 to vector<8x128xi32>
    %108 = arith.cmpi sge, %10, %107 : vector<8x128xi32>
    %c16_i32_29 = arith.constant 16 : i32
    %109 = tpu.dynamic_rotate %106 by %c16_i32_29 dim 1 : vector<8x128xi32>, i32 -> vector<8x128xi32>
    %c0_i32_30 = arith.constant 0 : i32
    %110 = vector.broadcast %c0_i32_30 : i32 to vector<8x128xi32>
    %111 = arith.select %108, %109, %110 : vector<8x128xi1>, vector<8x128xi32>
    %112 = arith.addi %106, %111 : vector<8x128xi32>
    %c32_i32 = arith.constant 32 : i32
    %113 = vector.broadcast %c32_i32 : i32 to vector<8x128xi32>
    %114 = arith.cmpi sge, %10, %113 : vector<8x128xi32>
    %c32_i32_31 = arith.constant 32 : i32
    %115 = tpu.dynamic_rotate %112 by %c32_i32_31 dim 1 : vector<8x128xi32>, i32 -> vector<8x128xi32>
    %c0_i32_32 = arith.constant 0 : i32
    %116 = vector.broadcast %c0_i32_32 : i32 to vector<8x128xi32>
    %117 = arith.select %114, %115, %116 : vector<8x128xi1>, vector<8x128xi32>
    %118 = arith.addi %112, %117 : vector<8x128xi32>
    %c64_i32 = arith.constant 64 : i32
    %119 = vector.broadcast %c64_i32 : i32 to vector<8x128xi32>
    %120 = arith.cmpi sge, %10, %119 : vector<8x128xi32>
    %c64_i32_33 = arith.constant 64 : i32
    %121 = tpu.dynamic_rotate %118 by %c64_i32_33 dim 1 : vector<8x128xi32>, i32 -> vector<8x128xi32>
    %c0_i32_34 = arith.constant 0 : i32
    %122 = vector.broadcast %c0_i32_34 : i32 to vector<8x128xi32>
    %123 = arith.select %120, %121, %122 : vector<8x128xi1>, vector<8x128xi32>
    %124 = arith.addi %118, %123 : vector<8x128xi32>
    %c0_i32_35 = arith.constant 0 : i32
    %125 = vector.broadcast %c0_i32_35 : i32 to vector<8x128xi32>
    %126 = arith.select %81, %72, %125 : vector<8x128xi1>, vector<8x128xi32>
    %c0_36 = arith.constant 0 : index
    %c0_37 = arith.constant 0 : index
    %127 = vector.load %arg3[%c0_36, %c0_37] : memref<8x128xi32, #tpu.memory_space<vmem>>, vector<8x128xi32>
    tpu.vector_store %arg3[%c0_36, %c0_37], %126 {strides = array<i32>} : memref<8x128xi32, #tpu.memory_space<vmem>>, vector<8x128xi32>,
    %c1_i32_38 = arith.constant 1 : i32
    %128 = vector.broadcast %c1_i32_38 : i32 to vector<8x128xi32>
    %129 = arith.subi %124, %128 : vector<8x128xi32>
    %c128_i32_39 = arith.constant 128 : i32
    %130 = vector.broadcast %c128_i32_39 : i32 to vector<8x128xi32>
    %131 = arith.select %81, %129, %130 : vector<8x128xi1>, vector<8x128xi32>
    %c0_40 = arith.constant 0 : index
    %c0_41 = arith.constant 0 : index
    %132 = vector.load %arg4[%c0_40, %c0_41] : memref<8x128xi32, #tpu.memory_space<vmem>>, vector<8x128xi32>
    tpu.vector_store %arg4[%c0_40, %c0_41], %131 {strides = array<i32>} : memref<8x128xi32, #tpu.memory_space<vmem>>, vector<8x128xi32>,
    return
  }
  func.func @transform_0(%arg0: i32, %arg1: memref<16xi32, #tpu.memory_space<smem>>) -> (i32, i32, i32) {
    %c0_i32 = arith.constant 0 : i32
    %c0_i32_0 = arith.constant 0 : i32
    %c0_i32_1 = arith.constant 0 : i32
    return %arg0, %c0_i32, %c0_i32_0 : i32, i32, i32
  }
  func.func @transform_1(%arg0: i32, %arg1: memref<16xi32, #tpu.memory_space<smem>>) -> (i32, i32) {
    %c0_i32 = arith.constant 0 : i32
    %c0_i32_0 = arith.constant 0 : i32
    return %arg0, %c0_i32 : i32, i32
  }
  func.func @transform_2(%arg0: i32, %arg1: memref<16xi32, #tpu.memory_space<smem>>) -> (i32, i32) {
    %c0_i32 = arith.constant 0 : i32
    %c0_i32_0 = arith.constant 0 : i32
    return %arg0, %c0_i32 : i32, i32
  }
}

</mosaic_0001>

<llo_original>
// kernel: tpu_custom_call.1
$region0: #{tpu_custom_call.1}
  #allocation0 [shape = 'u32[]', space=smem, size = 0x4, offset = 0x4, fixed_abs, tag = 'smem constant byte address 0x4 - core index']
  #allocation1 [shape = 'u32[144,128]{1,0:T(1,128)}', space=vmem, size = 0x12000, scoped, tag = 'internal scratch']
  #allocation2 [shape = 's32[1]{0}', space=sflag, size = 0x4, scoped, tag = 'scoped memory for tpu_custom_call.1']
  #allocation3 [shape = 'u8[512]{0}', space=smem, size = 0x200, scoped, tag = 'prefetched SMEM operand 0']
  %s0 = inlined_call_operand.hbm [shape: s32[16], index: 0, kind: input, shape index: {}]
  %s1 = inlined_call_operand.hbm [shape: f32[16,128,128], index: 1, kind: input, shape index: {}]
  %s2 = inlined_call_operand.hbm [shape: s32[16,128], index: 2, kind: output, shape index: {0}]
  %s3 = inlined_call_operand.hbm [shape: s32[16,128], index: 3, kind: output, shape index: {1}]
  %4 = xla_tuple %s2, %s3
  %s5 = sld [smem:[#allocation0]]
  $region49: #{tpu_custom_call.1} parent=0
    _
  %s7 = ssub.s32 1, %s5
  %s8 = scalar_select 0, %s7, %s5
  %10 = dma.hbm_to_smem %s0, 16, [#allocation3], [#allocation2]
  %11 = dma.done [#allocation2], 16
  %12 = sfence
  $region1: #{tpu_custom_call.1} parent=0
    #allocation4 [shape = 'u8[1048576]{0}', space=vmem, size = 0x100000, scoped, tag = 'input window, operand 1']
    #allocation5 [shape = 's32[2]{0}', space=sflag, size = 0x8, scoped, tag = 'scoped memory for tpu_custom_call.1']
    #allocation6 [shape = 's32[2]{0}', space=sflag, size = 0x8, scoped, tag = 'scoped memory for tpu_custom_call.1']
    #allocation7 [shape = 'u8[8192]{0}', space=vmem, size = 0x2000, scoped, tag = 'output window, operand 0']
    #allocation8 [shape = 'u8[8192]{0}', space=vmem, size = 0x2000, scoped, tag = 'output window, operand 1']
    #allocation9 [shape = 's32[2]{0}', space=sflag, size = 0x8, scoped, tag = 'scoped memory for tpu_custom_call.1']
    %13 = vsyncpa [#allocation5], 0
    %s14 = scalar_lea.sflag [#allocation5], 1
    %15 = vsyncpa %s14, 0
    %16 = vsyncpa [#allocation6], 0
    %s17 = scalar_lea.sflag [#allocation6], 1
    %18 = vsyncpa %s17, 0
    %19 = vsyncpa [#allocation9], 0
    %s20 = scalar_lea.sflag [#allocation9], 1
    %21 = vsyncpa %s20, 0
    loop: start=0, step=1, limit=4
    $region2: #{tpu_custom_call.1} parent=1 // loop_pre_header
      _
    $region3: #{tpu_custom_call.1} parent=1 // loop_header
      %s23 = sphi 0, %s27
      %p24 = scmp.ge.s32.totalorder %s23, 4
      %s33 = sphi 0, %s35
      %s36 = sphi 0, %s33
      %s37 = sphi 0, %s36
      %s53 = sphi 0, %s37
      %s59 = sphi 0, %s61
      %s62 = sphi 0, %s59
      %s63 = sphi 0, %s62
      %s79 = sphi 0, %s63
      %s85 = sphi 0, %s87
      %s88 = sphi 0, %s85
      %s89 = sphi 0, %s88
      %s105 = sphi 0, %s89
    $region4: #{tpu_custom_call.1} parent=1 // loop_header_branch
      %26 = sbr.rel (%p24) target = $region8
    $region5: #{tpu_custom_call.1} parent=1 // loop_body
      %s28 = ssub.s32 %s23, 1
      %s29 = ssub.s32 %s23, 2
      %s30 = sadd.s32 %s23, 1
      %s31 = ssub.s32 %s23, %s30
      %p32 = scmp.eq.s32.totalorder %s31, 0
      %s34 = sadd.s32 %s33, 1
      %s35 = scalar_select %p32, %s33, %s34
      %p38 = pneg %p32
      %p39 = scmp.eq.s32.totalorder %s23, 1
      %p40 = por %p38, %p39
      %p41 = scmp.ne.s32.totalorder %s33, %s36
      %p42 = scmp.eq.s32.totalorder %s23, 0
      %p43 = por %p41, %p42
      %p44 = scmp.ne.s32.totalorder %s33, %s36
      %p45 = scmp.eq.s32.totalorder %s28, 1
      %p46 = por %p44, %p45
      %p47 = scmp.ne.s32.totalorder %s36, %s37
      %p48 = scmp.eq.s32.totalorder %s28, 0
      %p49 = por %p47, %p48
      %p50 = scmp.ne.s32.totalorder %s36, %s37
      %p51 = scmp.eq.s32.totalorder %s29, 1
      %p52 = por %p50, %p51
      %p54 = scmp.ne.s32.totalorder %s37, %s53
      %p55 = scmp.eq.s32.totalorder %s29, 0
      %p56 = por %p54, %p55
      %s57 = ssub.s32 %s23, %s30
      %p58 = scmp.eq.s32.totalorder %s57, 0
      %s60 = sadd.s32 %s59, 1
      %s61 = scalar_select %p58, %s59, %s60
      %p64 = pneg %p58
      %p65 = scmp.eq.s32.totalorder %s23, 1
      %p66 = por %p64, %p65
      %p67 = scmp.ne.s32.totalorder %s59, %s62
      %p68 = scmp.eq.s32.totalorder %s23, 0
      %p69 = por %p67, %p68
      %p70 = scmp.ne.s32.totalorder %s59, %s62
      %p71 = scmp.eq.s32.totalorder %s28, 1
      %p72 = por %p70, %p71
      %p73 = scmp.ne.s32.totalorder %s62, %s63
      %p74 = scmp.eq.s32.totalorder %s28, 0
      %p75 = por %p73, %p74
      %p76 = scmp.ne.s32.totalorder %s62, %s63
      %p77 = scmp.eq.s32.totalorder %s29, 1
      %p78 = por %p76, %p77
      %p80 = scmp.ne.s32.totalorder %s63, %s79
      %p81 = scmp.eq.s32.totalorder %s29, 0
      %p82 = por %p80, %p81
      %s83 = ssub.s32 %s23, %s30
      %p84 = scmp.eq.s32.totalorder %s83, 0
      %s86 = sadd.s32 %s85, 1
      %s87 = scalar_select %p84, %s85, %s86
      %p90 = pneg %p84
      %p91 = scmp.eq.s32.totalorder %s23, 1
      %p92 = por %p90, %p91
      %p93 = scmp.ne.s32.totalorder %s85, %s88
      %p94 = scmp.eq.s32.totalorder %s23, 0
      %p95 = por %p93, %p94
      %p96 = scmp.ne.s32.totalorder %s85, %s88
      %p97 = scmp.eq.s32.totalorder %s28, 1
      %p98 = por %p96, %p97
      %p99 = scmp.ne.s32.totalorder %s88, %s89
      %p100 = scmp.eq.s32.totalorder %s28, 0
      %p101 = por %p99, %p100
      %p102 = scmp.ne.s32.totalorder %s88, %s89
      %p103 = scmp.eq.s32.totalorder %s29, 1
      %p104 = por %p102, %p103
      %p106 = scmp.ne.s32.totalorder %s89, %s105
      %p107 = scmp.eq.s32.totalorder %s29, 0
      %p108 = por %p106, %p107
      %p109 = scmp.le.s32.totalorder 1, %s23
      %p110 = scmp.lt.s32.totalorder %s23, 3
      %p111 = pnand %p109, %p110
      %p112 = pneg %p111
      // Predicated region
      $region9: #{tpu_custom_call.1} parent=5 // pred_check
        _
      $region10: #{tpu_custom_call.1} parent=5 // pred_check_branch
        %114 = sbr.rel (%p111) target = $region12
      $region11: #{tpu_custom_call.1} parent=5 // pred_region
        %s115 = ssub.s32 %s23, 1
      $region12: #{tpu_custom_call.1} parent=5 // pred_fallthru
        _
      %p116 = scmp.lt.s32.totalorder %s23, 2
      // Predicated region
      $region13: #{tpu_custom_call.1} parent=5 // pred_check
        %p117 = pneg %p116
      $region14: #{tpu_custom_call.1} parent=5 // pred_check_branch
        %119 = sbr.rel (%p117) target = $region16
      $region15: #{tpu_custom_call.1} parent=5 // pred_region
        // Predicated region
        $region17: #{tpu_custom_call.1} parent=15 // pred_check
          %p120 = pneg %p43
        $region18: #{tpu_custom_call.1} parent=15 // pred_check_branch
          %122 = sbr.rel (%p120) target = $region20
        $region19: #{tpu_custom_call.1} parent=15 // pred_region
          %s123 = sand.u32 %s33, 1
          %s124 = scalar_lea.sflag [#allocation5], %s123
          %s125 = sand.u32 %s33, 1
          %s126 = smul.addr %s125, 1024
          %s127 = scalar_lea.vmem [#allocation4], %s126
          %s128 = smul.u32 8, %s23
          %s130 = ssub.s32 16384, 16384
          %131 = vsyncadd %s124, %s130
          %s132 = smul.addr %s128, 16
          %s133 = smul.addr %s132, 128
          %s134 = scalar_lea.hbm %s1, %s133
          %s135 = sshll.u32 %s127, 4
          %s136 = int_to_ptr.vmem [resolvable:$true] %s135
          %141 = dma.hbm_to_vmem [thread:$0]  %s134, 16384, %s136, %s124, 128, 128, 8
        $region20: #{tpu_custom_call.1} parent=15 // pred_fallthru
          _
      $region16: #{tpu_custom_call.1} parent=5 // pred_fallthru
        _
      %p142 = scmp.le.s32.totalorder 1, %s23
      %p143 = scmp.lt.s32.totalorder %s23, 3
      %p144 = pnand %p142, %p143
      %p145 = pneg %p144
      // Predicated region
      $region21: #{tpu_custom_call.1} parent=5 // pred_check
        _
      $region22: #{tpu_custom_call.1} parent=5 // pred_check_branch
        %147 = sbr.rel (%p144) target = $region24
      $region23: #{tpu_custom_call.1} parent=5 // pred_region
        %s148 = ssub.s32 %s23, 1
        %s149 = sand.u32 %s36, 1
        %s150 = scalar_lea.sflag [#allocation5], %s149
        %s151 = sand.u32 %s36, 1
        %s152 = smul.addr %s151, 1024
        %s153 = scalar_lea.vmem [#allocation4], %s152
        // Predicated region
        $region25: #{tpu_custom_call.1} parent=23 // pred_check
          %p154 = pneg %p49
        $region26: #{tpu_custom_call.1} parent=23 // pred_check_branch
          %156 = sbr.rel (%p154) target = $region28
        $region27: #{tpu_custom_call.1} parent=23 // pred_region
          %157 = dma.done %s150, 16384
        $region28: #{tpu_custom_call.1} parent=23 // pred_fallthru
          _
        %s158 = sand.u32 %s36, 1
        %s159 = scalar_lea.sflag [#allocation5], %s158
        %s160 = sand.u32 %s36, 1
        %s161 = smul.addr %s160, 1024
        %s162 = scalar_lea.vmem [#allocation4], %s161
        %p163 = pneg %p49
        %p164 = pneg %p46
        %p165 = pneg %p75
        %p166 = pneg %p72
        %s167 = sand.u32 %s62, 1
        %s168 = scalar_lea.sflag [#allocation6], %s167
        %s169 = sand.u32 %s62, 1
        %s170 = smul.addr %s169, 8
        %s171 = scalar_lea.vmem [#allocation7], %s170
        %p172 = pneg %p101
        %p173 = pneg %p98
        %s174 = sand.u32 %s88, 1
        %s175 = scalar_lea.sflag [#allocation9], %s174
        %s176 = sand.u32 %s88, 1
        %s177 = smul.addr %s176, 8
        %s178 = scalar_lea.vmem [#allocation8], %s177
        %s179 = smul.u32 8, %s28
        %s180 = smul.u32 %s28, 8
        %v181 = vld [vmem:[%s153] sm:$0xff]
        %v182 = vld [vmem:[%s153 + $0x8] sm:$0xff]
        %v183 = vld [vmem:[%s153 + $0x10] sm:$0xff]
        %v184 = vld [vmem:[%s153 + $0x18] sm:$0xff]
        %v185 = vld [vmem:[%s153 + $0x20] sm:$0xff]
        %v186 = vld [vmem:[%s153 + $0x28] sm:$0xff]
        %v187 = vld [vmem:[%s153 + $0x30] sm:$0xff]
        %v188 = vld [vmem:[%s153 + $0x38] sm:$0xff]
        %v189 = vld [vmem:[%s153 + $0x40] sm:$0xff]
        %v190 = vld [vmem:[%s153 + $0x48] sm:$0xff]
        %v191 = vld [vmem:[%s153 + $0x50] sm:$0xff]
        %v192 = vld [vmem:[%s153 + $0x58] sm:$0xff]
        %v193 = vld [vmem:[%s153 + $0x60] sm:$0xff]
        %v194 = vld [vmem:[%s153 + $0x68] sm:$0xff]
        %v195 = vld [vmem:[%s153 + $0x70] sm:$0xff]
        %v196 = vld [vmem:[%s153 + $0x78] sm:$0xff]
        %v197 = vld [vmem:[%s153 + $0x80] sm:$0xff]
        %v198 = vld [vmem:[%s153 + $0x88] sm:$0xff]
        %v199 = vld [vmem:[%s153 + $0x90] sm:$0xff]
        %v200 = vld [vmem:[%s153 + $0x98] sm:$0xff]
        %v201 = vld [vmem:[%s153 + $0xa0] sm:$0xff]
        %v202 = vld [vmem:[%s153 + $0xa8] sm:$0xff]
        %v203 = vld [vmem:[%s153 + $0xb0] sm:$0xff]
        %v204 = vld [vmem:[%s153 + $0xb8] sm:$0xff]
        %v205 = vld [vmem:[%s153 + $0xc0] sm:$0xff]
        %v206 = vld [vmem:[%s153 + $0xc8] sm:$0xff]
        %v207 = vld [vmem:[%s153 + $0xd0] sm:$0xff]
        %v208 = vld [vmem:[%s153 + $0xd8] sm:$0xff]
        %v209 = vld [vmem:[%s153 + $0xe0] sm:$0xff]
        %v210 = vld [vmem:[%s153 + $0xe8] sm:$0xff]
        %v211 = vld [vmem:[%s153 + $0xf0] sm:$0xff]
        %v212 = vld [vmem:[%s153 + $0xf8] sm:$0xff]
        %v213 = vld [vmem:[%s153 + $0x100] sm:$0xff]
        %v214 = vld [vmem:[%s153 + $0x108] sm:$0xff]
        %v215 = vld [vmem:[%s153 + $0x110] sm:$0xff]
        %v216 = vld [vmem:[%s153 + $0x118] sm:$0xff]
        %v217 = vld [vmem:[%s153 + $0x120] sm:$0xff]
        %v218 = vld [vmem:[%s153 + $0x128] sm:$0xff]
        %v219 = vld [vmem:[%s153 + $0x130] sm:$0xff]
        %v220 = vld [vmem:[%s153 + $0x138] sm:$0xff]
        %v221 = vld [vmem:[%s153 + $0x140] sm:$0xff]
        %v222 = vld [vmem:[%s153 + $0x148] sm:$0xff]
        %v223 = vld [vmem:[%s153 + $0x150] sm:$0xff]
        %v224 = vld [vmem:[%s153 + $0x158] sm:$0xff]
        %v225 = vld [vmem:[%s153 + $0x160] sm:$0xff]
        %v226 = vld [vmem:[%s153 + $0x168] sm:$0xff]
        %v227 = vld [vmem:[%s153 + $0x170] sm:$0xff]
        %v228 = vld [vmem:[%s153 + $0x178] sm:$0xff]
        %v229 = vld [vmem:[%s153 + $0x180] sm:$0xff]
        %v230 = vld [vmem:[%s153 + $0x188] sm:$0xff]
        %v231 = vld [vmem:[%s153 + $0x190] sm:$0xff]
        %v232 = vld [vmem:[%s153 + $0x198] sm:$0xff]
        %v233 = vld [vmem:[%s153 + $0x1a0] sm:$0xff]
        %v234 = vld [vmem:[%s153 + $0x1a8] sm:$0xff]
        %v235 = vld [vmem:[%s153 + $0x1b0] sm:$0xff]
        %v236 = vld [vmem:[%s153 + $0x1b8] sm:$0xff]
        %v237 = vld [vmem:[%s153 + $0x1c0] sm:$0xff]
        %v238 = vld [vmem:[%s153 + $0x1c8] sm:$0xff]
        %v239 = vld [vmem:[%s153 + $0x1d0] sm:$0xff]
        %v240 = vld [vmem:[%s153 + $0x1d8] sm:$0xff]
        %v241 = vld [vmem:[%s153 + $0x1e0] sm:$0xff]
        %v242 = vld [vmem:[%s153 + $0x1e8] sm:$0xff]
        %v243 = vld [vmem:[%s153 + $0x1f0] sm:$0xff]
        %v244 = vld [vmem:[%s153 + $0x1f8] sm:$0xff]
        %v245 = vld [vmem:[%s153 + $0x200] sm:$0xff]
        %v246 = vld [vmem:[%s153 + $0x208] sm:$0xff]
        %v247 = vld [vmem:[%s153 + $0x210] sm:$0xff]
        %v248 = vld [vmem:[%s153 + $0x218] sm:$0xff]
        %v249 = vld [vmem:[%s153 + $0x220] sm:$0xff]
        %v250 = vld [vmem:[%s153 + $0x228] sm:$0xff]
        %v251 = vld [vmem:[%s153 + $0x230] sm:$0xff]
        %v252 = vld [vmem:[%s153 + $0x238] sm:$0xff]
        %v253 = vld [vmem:[%s153 + $0x240] sm:$0xff]
        %v254 = vld [vmem:[%s153 + $0x248] sm:$0xff]
        %v255 = vld [vmem:[%s153 + $0x250] sm:$0xff]
        %v256 = vld [vmem:[%s153 + $0x258] sm:$0xff]
        %v257 = vld [vmem:[%s153 + $0x260] sm:$0xff]
        %v258 = vld [vmem:[%s153 + $0x268] sm:$0xff]
        %v259 = vld [vmem:[%s153 + $0x270] sm:$0xff]
        %v260 = vld [vmem:[%s153 + $0x278] sm:$0xff]
        %v261 = vld [vmem:[%s153 + $0x280] sm:$0xff]
        %v262 = vld [vmem:[%s153 + $0x288] sm:$0xff]
        %v263 = vld [vmem:[%s153 + $0x290] sm:$0xff]
        %v264 = vld [vmem:[%s153 + $0x298] sm:$0xff]
        %v265 = vld [vmem:[%s153 + $0x2a0] sm:$0xff]
        %v266 = vld [vmem:[%s153 + $0x2a8] sm:$0xff]
        %v267 = vld [vmem:[%s153 + $0x2b0] sm:$0xff]
        %v268 = vld [vmem:[%s153 + $0x2b8] sm:$0xff]
        %v269 = vld [vmem:[%s153 + $0x2c0] sm:$0xff]
        %v270 = vld [vmem:[%s153 + $0x2c8] sm:$0xff]
        %v271 = vld [vmem:[%s153 + $0x2d0] sm:$0xff]
        %v272 = vld [vmem:[%s153 + $0x2d8] sm:$0xff]
        %v273 = vld [vmem:[%s153 + $0x2e0] sm:$0xff]
        %v274 = vld [vmem:[%s153 + $0x2e8] sm:$0xff]
        %v275 = vld [vmem:[%s153 + $0x2f0] sm:$0xff]
        %v276 = vld [vmem:[%s153 + $0x2f8] sm:$0xff]
        %v277 = vld [vmem:[%s153 + $0x300] sm:$0xff]
        %v278 = vld [vmem:[%s153 + $0x308] sm:$0xff]
        %v279 = vld [vmem:[%s153 + $0x310] sm:$0xff]
        %v280 = vld [vmem:[%s153 + $0x318] sm:$0xff]
        %v281 = vld [vmem:[%s153 + $0x320] sm:$0xff]
        %v282 = vld [vmem:[%s153 + $0x328] sm:$0xff]
        %v283 = vld [vmem:[%s153 + $0x330] sm:$0xff]
        %v284 = vld [vmem:[%s153 + $0x338] sm:$0xff]
        %v285 = vld [vmem:[%s153 + $0x340] sm:$0xff]
        %v286 = vld [vmem:[%s153 + $0x348] sm:$0xff]
        %v287 = vld [vmem:[%s153 + $0x350] sm:$0xff]
        %v288 = vld [vmem:[%s153 + $0x358] sm:$0xff]
        %v289 = vld [vmem:[%s153 + $0x360] sm:$0xff]
        %v290 = vld [vmem:[%s153 + $0x368] sm:$0xff]
        %v291 = vld [vmem:[%s153 + $0x370] sm:$0xff]
        %v292 = vld [vmem:[%s153 + $0x378] sm:$0xff]
        %v293 = vld [vmem:[%s153 + $0x380] sm:$0xff]
        %v294 = vld [vmem:[%s153 + $0x388] sm:$0xff]
        %v295 = vld [vmem:[%s153 + $0x390] sm:$0xff]
        %v296 = vld [vmem:[%s153 + $0x398] sm:$0xff]
        %v297 = vld [vmem:[%s153 + $0x3a0] sm:$0xff]
        %v298 = vld [vmem:[%s153 + $0x3a8] sm:$0xff]
        %v299 = vld [vmem:[%s153 + $0x3b0] sm:$0xff]
        %v300 = vld [vmem:[%s153 + $0x3b8] sm:$0xff]
        %v301 = vld [vmem:[%s153 + $0x3c0] sm:$0xff]
        %v302 = vld [vmem:[%s153 + $0x3c8] sm:$0xff]
        %v303 = vld [vmem:[%s153 + $0x3d0] sm:$0xff]
        %v304 = vld [vmem:[%s153 + $0x3d8] sm:$0xff]
        %v305 = vld [vmem:[%s153 + $0x3e0] sm:$0xff]
        %v306 = vld [vmem:[%s153 + $0x3e8] sm:$0xff]
        %v307 = vld [vmem:[%s153 + $0x3f0] sm:$0xff]
        %v308 = vld [vmem:[%s153 + $0x3f8] sm:$0xff]
        %309 = vmax.xlane.f32.xlu0 %v181
        %v310 = vpop.xlane.xlu0 %309
        %311 = vmax.xlane.f32.xlu0 %v182
        %v312 = vpop.xlane.xlu0 %311
        %313 = vmax.xlane.f32.xlu0 %v183
        %v314 = vpop.xlane.xlu0 %313
        %315 = vmax.xlane.f32.xlu0 %v184
        %v316 = vpop.xlane.xlu0 %315
        %317 = vmax.xlane.f32.xlu0 %v185
        %v318 = vpop.xlane.xlu0 %317
        %319 = vmax.xlane.f32.xlu0 %v186
        %v320 = vpop.xlane.xlu0 %319
        %321 = vmax.xlane.f32.xlu0 %v187
        %v322 = vpop.xlane.xlu0 %321
        %323 = vmax.xlane.f32.xlu0 %v188
        %v324 = vpop.xlane.xlu0 %323
        %325 = vmax.xlane.f32.xlu0 %v189
        %v326 = vpop.xlane.xlu0 %325
        %327 = vmax.xlane.f32.xlu0 %v190
        %v328 = vpop.xlane.xlu0 %327
        %329 = vmax.xlane.f32.xlu0 %v191
        %v330 = vpop.xlane.xlu0 %329
        %331 = vmax.xlane.f32.xlu0 %v192
        %v332 = vpop.xlane.xlu0 %331
        %333 = vmax.xlane.f32.xlu0 %v193
        %v334 = vpop.xlane.xlu0 %333
        %335 = vmax.xlane.f32.xlu0 %v194
        %v336 = vpop.xlane.xlu0 %335
        %337 = vmax.xlane.f32.xlu0 %v195
        %v338 = vpop.xlane.xlu0 %337
        %339 = vmax.xlane.f32.xlu0 %v196
        %v340 = vpop.xlane.xlu0 %339
        %341 = vmax.xlane.f32.xlu0 %v197
        %v342 = vpop.xlane.xlu0 %341
        %343 = vmax.xlane.f32.xlu0 %v198
        %v344 = vpop.xlane.xlu0 %343
        %345 = vmax.xlane.f32.xlu0 %v199
        %v346 = vpop.xlane.xlu0 %345
        %347 = vmax.xlane.f32.xlu0 %v200
        %v348 = vpop.xlane.xlu0 %347
        %349 = vmax.xlane.f32.xlu0 %v201
        %v350 = vpop.xlane.xlu0 %349
        %351 = vmax.xlane.f32.xlu0 %v202
        %v352 = vpop.xlane.xlu0 %351
        %353 = vmax.xlane.f32.xlu0 %v203
        %v354 = vpop.xlane.xlu0 %353
        %355 = vmax.xlane.f32.xlu0 %v204
        %v356 = vpop.xlane.xlu0 %355
        %357 = vmax.xlane.f32.xlu0 %v205
        %v358 = vpop.xlane.xlu0 %357
        %359 = vmax.xlane.f32.xlu0 %v206
        %v360 = vpop.xlane.xlu0 %359
        %361 = vmax.xlane.f32.xlu0 %v207
        %v362 = vpop.xlane.xlu0 %361
        %363 = vmax.xlane.f32.xlu0 %v208
        %v364 = vpop.xlane.xlu0 %363
        %365 = vmax.xlane.f32.xlu0 %v209
        %v366 = vpop.xlane.xlu0 %365
        %367 = vmax.xlane.f32.xlu0 %v210
        %v368 = vpop.xlane.xlu0 %367
        %369 = vmax.xlane.f32.xlu0 %v211
        %v370 = vpop.xlane.xlu0 %369
        %371 = vmax.xlane.f32.xlu0 %v212
        %v372 = vpop.xlane.xlu0 %371
        %373 = vmax.xlane.f32.xlu0 %v213
        %v374 = vpop.xlane.xlu0 %373
        %375 = vmax.xlane.f32.xlu0 %v214
        %v376 = vpop.xlane.xlu0 %375
        %377 = vmax.xlane.f32.xlu0 %v215
        %v378 = vpop.xlane.xlu0 %377
        %379 = vmax.xlane.f32.xlu0 %v216
        %v380 = vpop.xlane.xlu0 %379
        %381 = vmax.xlane.f32.xlu0 %v217
        %v382 = vpop.xlane.xlu0 %381
        %383 = vmax.xlane.f32.xlu0 %v218
        %v384 = vpop.xlane.xlu0 %383
        %385 = vmax.xlane.f32.xlu0 %v219
        %v386 = vpop.xlane.xlu0 %385
        %387 = vmax.xlane.f32.xlu0 %v220
        %v388 = vpop.xlane.xlu0 %387
        %389 = vmax.xlane.f32.xlu0 %v221
        %v390 = vpop.xlane.xlu0 %389
        %391 = vmax.xlane.f32.xlu0 %v222
        %v392 = vpop.xlane.xlu0 %391
        %393 = vmax.xlane.f32.xlu0 %v223
        %v394 = vpop.xlane.xlu0 %393
        %395 = vmax.xlane.f32.xlu0 %v224
        %v396 = vpop.xlane.xlu0 %395
        %397 = vmax.xlane.f32.xlu0 %v225
        %v398 = vpop.xlane.xlu0 %397
        %399 = vmax.xlane.f32.xlu0 %v226
        %v400 = vpop.xlane.xlu0 %399
        %401 = vmax.xlane.f32.xlu0 %v227
        %v402 = vpop.xlane.xlu0 %401
        %403 = vmax.xlane.f32.xlu0 %v228
        %v404 = vpop.xlane.xlu0 %403
        %405 = vmax.xlane.f32.xlu0 %v229
        %v406 = vpop.xlane.xlu0 %405
        %407 = vmax.xlane.f32.xlu0 %v230
        %v408 = vpop.xlane.xlu0 %407
        %409 = vmax.xlane.f32.xlu0 %v231
        %v410 = vpop.xlane.xlu0 %409
        %411 = vmax.xlane.f32.xlu0 %v232
        %v412 = vpop.xlane.xlu0 %411
        %413 = vmax.xlane.f32.xlu0 %v233
        %v414 = vpop.xlane.xlu0 %413
        %415 = vmax.xlane.f32.xlu0 %v234
        %v416 = vpop.xlane.xlu0 %415
        %417 = vmax.xlane.f32.xlu0 %v235
        %v418 = vpop.xlane.xlu0 %417
        %419 = vmax.xlane.f32.xlu0 %v236
        %v420 = vpop.xlane.xlu0 %419
        %421 = vmax.xlane.f32.xlu0 %v237
        %v422 = vpop.xlane.xlu0 %421
        %423 = vmax.xlane.f32.xlu0 %v238
        %v424 = vpop.xlane.xlu0 %423
        %425 = vmax.xlane.f32.xlu0 %v239
        %v426 = vpop.xlane.xlu0 %425
        %427 = vmax.xlane.f32.xlu0 %v240
        %v428 = vpop.xlane.xlu0 %427
        %429 = vmax.xlane.f32.xlu0 %v241
        %v430 = vpop.xlane.xlu0 %429
        %431 = vmax.xlane.f32.xlu0 %v242
        %v432 = vpop.xlane.xlu0 %431
        %433 = vmax.xlane.f32.xlu0 %v243
        %v434 = vpop.xlane.xlu0 %433
        %435 = vmax.xlane.f32.xlu0 %v244
        %v436 = vpop.xlane.xlu0 %435
        %437 = vmax.xlane.f32.xlu0 %v245
        %v438 = vpop.xlane.xlu0 %437
        %439 = vmax.xlane.f32.xlu0 %v246
        %v440 = vpop.xlane.xlu0 %439
        %441 = vmax.xlane.f32.xlu0 %v247
        %v442 = vpop.xlane.xlu0 %441
        %443 = vmax.xlane.f32.xlu0 %v248
        %v444 = vpop.xlane.xlu0 %443
        %445 = vmax.xlane.f32.xlu0 %v249
        %v446 = vpop.xlane.xlu0 %445
        %447 = vmax.xlane.f32.xlu0 %v250
        %v448 = vpop.xlane.xlu0 %447
        %449 = vmax.xlane.f32.xlu0 %v251
        %v450 = vpop.xlane.xlu0 %449
        %451 = vmax.xlane.f32.xlu0 %v252
        %v452 = vpop.xlane.xlu0 %451
        %453 = vmax.xlane.f32.xlu0 %v253
        %v454 = vpop.xlane.xlu0 %453
        %455 = vmax.xlane.f32.xlu0 %v254
        %v456 = vpop.xlane.xlu0 %455
        %457 = vmax.xlane.f32.xlu0 %v255
        %v458 = vpop.xlane.xlu0 %457
        %459 = vmax.xlane.f32.xlu0 %v256
        %v460 = vpop.xlane.xlu0 %459
        %461 = vmax.xlane.f32.xlu0 %v257
        %v462 = vpop.xlane.xlu0 %461
        %463 = vmax.xlane.f32.xlu0 %v258
        %v464 = vpop.xlane.xlu0 %463
        %465 = vmax.xlane.f32.xlu0 %v259
        %v466 = vpop.xlane.xlu0 %465
        %467 = vmax.xlane.f32.xlu0 %v260
        %v468 = vpop.xlane.xlu0 %467
        %469 = vmax.xlane.f32.xlu0 %v261
        %v470 = vpop.xlane.xlu0 %469
        %471 = vmax.xlane.f32.xlu0 %v262
        %v472 = vpop.xlane.xlu0 %471
        %473 = vmax.xlane.f32.xlu0 %v263
        %v474 = vpop.xlane.xlu0 %473
        %475 = vmax.xlane.f32.xlu0 %v264
        %v476 = vpop.xlane.xlu0 %475
        %477 = vmax.xlane.f32.xlu0 %v265
        %v478 = vpop.xlane.xlu0 %477
        %479 = vmax.xlane.f32.xlu0 %v266
        %v480 = vpop.xlane.xlu0 %479
        %481 = vmax.xlane.f32.xlu0 %v267
        %v482 = vpop.xlane.xlu0 %481
        %483 = vmax.xlane.f32.xlu0 %v268
        %v484 = vpop.xlane.xlu0 %483
        %485 = vmax.xlane.f32.xlu0 %v269
        %v486 = vpop.xlane.xlu0 %485
        %487 = vmax.xlane.f32.xlu0 %v270
        %v488 = vpop.xlane.xlu0 %487
        %489 = vmax.xlane.f32.xlu0 %v271
        %v490 = vpop.xlane.xlu0 %489
        %491 = vmax.xlane.f32.xlu0 %v272
        %v492 = vpop.xlane.xlu0 %491
        %493 = vmax.xlane.f32.xlu0 %v273
        %v494 = vpop.xlane.xlu0 %493
        %495 = vmax.xlane.f32.xlu0 %v274
        %v496 = vpop.xlane.xlu0 %495
        %497 = vmax.xlane.f32.xlu0 %v275
        %v498 = vpop.xlane.xlu0 %497
        %499 = vmax.xlane.f32.xlu0 %v276
        %v500 = vpop.xlane.xlu0 %499
        %501 = vmax.xlane.f32.xlu0 %v277
        %v502 = vpop.xlane.xlu0 %501
        %503 = vmax.xlane.f32.xlu0 %v278
        %v504 = vpop.xlane.xlu0 %503
        %505 = vmax.xlane.f32.xlu0 %v279
        %v506 = vpop.xlane.xlu0 %505
        %507 = vmax.xlane.f32.xlu0 %v280
        %v508 = vpop.xlane.xlu0 %507
        %509 = vmax.xlane.f32.xlu0 %v281
        %v510 = vpop.xlane.xlu0 %509
        %511 = vmax.xlane.f32.xlu0 %v282
        %v512 = vpop.xlane.xlu0 %511
        %513 = vmax.xlane.f32.xlu0 %v283
        %v514 = vpop.xlane.xlu0 %513
        %515 = vmax.xlane.f32.xlu0 %v284
        %v516 = vpop.xlane.xlu0 %515
        %517 = vmax.xlane.f32.xlu0 %v285
        %v518 = vpop.xlane.xlu0 %517
        %519 = vmax.xlane.f32.xlu0 %v286
        %v520 = vpop.xlane.xlu0 %519
        %521 = vmax.xlane.f32.xlu0 %v287
        %v522 = vpop.xlane.xlu0 %521
        %523 = vmax.xlane.f32.xlu0 %v288
        %v524 = vpop.xlane.xlu0 %523
        %525 = vmax.xlane.f32.xlu0 %v289
        %v526 = vpop.xlane.xlu0 %525
        %527 = vmax.xlane.f32.xlu0 %v290
        %v528 = vpop.xlane.xlu0 %527
        %529 = vmax.xlane.f32.xlu0 %v291
        %v530 = vpop.xlane.xlu0 %529
        %531 = vmax.xlane.f32.xlu0 %v292
        %v532 = vpop.xlane.xlu0 %531
        %533 = vmax.xlane.f32.xlu0 %v293
        %v534 = vpop.xlane.xlu0 %533
        %535 = vmax.xlane.f32.xlu0 %v294
        %v536 = vpop.xlane.xlu0 %535
        %537 = vmax.xlane.f32.xlu0 %v295
        %v538 = vpop.xlane.xlu0 %537
        %539 = vmax.xlane.f32.xlu0 %v296
        %v540 = vpop.xlane.xlu0 %539
        %541 = vmax.xlane.f32.xlu0 %v297
        %v542 = vpop.xlane.xlu0 %541
        %543 = vmax.xlane.f32.xlu0 %v298
        %v544 = vpop.xlane.xlu0 %543
        %545 = vmax.xlane.f32.xlu0 %v299
        %v546 = vpop.xlane.xlu0 %545
        %547 = vmax.xlane.f32.xlu0 %v300
        %v548 = vpop.xlane.xlu0 %547
        %549 = vmax.xlane.f32.xlu0 %v301
        %v550 = vpop.xlane.xlu0 %549
        %551 = vmax.xlane.f32.xlu0 %v302
        %v552 = vpop.xlane.xlu0 %551
        %553 = vmax.xlane.f32.xlu0 %v303
        %v554 = vpop.xlane.xlu0 %553
        %555 = vmax.xlane.f32.xlu0 %v304
        %v556 = vpop.xlane.xlu0 %555
        %557 = vmax.xlane.f32.xlu0 %v305
        %v558 = vpop.xlane.xlu0 %557
        %559 = vmax.xlane.f32.xlu0 %v306
        %v560 = vpop.xlane.xlu0 %559
        %561 = vmax.xlane.f32.xlu0 %v307
        %v562 = vpop.xlane.xlu0 %561
        %563 = vmax.xlane.f32.xlu0 %v308
        %v564 = vpop.xlane.xlu0 %563
        %v565 = vlaneseq
        %v566 = vand.u32 %v565, 127
        %vm567 = vcmp.eq.f32.partialorder %v181, %v310
        %vm568 = vcmp.eq.f32.partialorder %v182, %v312
        %vm569 = vcmp.eq.f32.partialorder %v183, %v314
        %vm570 = vcmp.eq.f32.partialorder %v184, %v316
        %vm571 = vcmp.eq.f32.partialorder %v185, %v318
        %vm572 = vcmp.eq.f32.partialorder %v186, %v320
        %vm573 = vcmp.eq.f32.partialorder %v187, %v322
        %vm574 = vcmp.eq.f32.partialorder %v188, %v324
        %vm575 = vcmp.eq.f32.partialorder %v189, %v326
        %vm576 = vcmp.eq.f32.partialorder %v190, %v328
        %vm577 = vcmp.eq.f32.partialorder %v191, %v330
        %vm578 = vcmp.eq.f32.partialorder %v192, %v332
        %vm579 = vcmp.eq.f32.partialorder %v193, %v334
        %vm580 = vcmp.eq.f32.partialorder %v194, %v336
        %vm581 = vcmp.eq.f32.partialorder %v195, %v338
        %vm582 = vcmp.eq.f32.partialorder %v196, %v340
        %vm583 = vcmp.eq.f32.partialorder %v197, %v342
        %vm584 = vcmp.eq.f32.partialorder %v198, %v344
        %vm585 = vcmp.eq.f32.partialorder %v199, %v346
        %vm586 = vcmp.eq.f32.partialorder %v200, %v348
        %vm587 = vcmp.eq.f32.partialorder %v201, %v350
        %vm588 = vcmp.eq.f32.partialorder %v202, %v352
        %vm589 = vcmp.eq.f32.partialorder %v203, %v354
        %vm590 = vcmp.eq.f32.partialorder %v204, %v356
        %vm591 = vcmp.eq.f32.partialorder %v205, %v358
        %vm592 = vcmp.eq.f32.partialorder %v206, %v360
        %vm593 = vcmp.eq.f32.partialorder %v207, %v362
        %vm594 = vcmp.eq.f32.partialorder %v208, %v364
        %vm595 = vcmp.eq.f32.partialorder %v209, %v366
        %vm596 = vcmp.eq.f32.partialorder %v210, %v368
        %vm597 = vcmp.eq.f32.partialorder %v211, %v370
        %vm598 = vcmp.eq.f32.partialorder %v212, %v372
        %vm599 = vcmp.eq.f32.partialorder %v213, %v374
        %vm600 = vcmp.eq.f32.partialorder %v214, %v376
        %vm601 = vcmp.eq.f32.partialorder %v215, %v378
        %vm602 = vcmp.eq.f32.partialorder %v216, %v380
        %vm603 = vcmp.eq.f32.partialorder %v217, %v382
        %vm604 = vcmp.eq.f32.partialorder %v218, %v384
        %vm605 = vcmp.eq.f32.partialorder %v219, %v386
        %vm606 = vcmp.eq.f32.partialorder %v220, %v388
        %vm607 = vcmp.eq.f32.partialorder %v221, %v390
        %vm608 = vcmp.eq.f32.partialorder %v222, %v392
        %vm609 = vcmp.eq.f32.partialorder %v223, %v394
        %vm610 = vcmp.eq.f32.partialorder %v224, %v396
        %vm611 = vcmp.eq.f32.partialorder %v225, %v398
        %vm612 = vcmp.eq.f32.partialorder %v226, %v400
        %vm613 = vcmp.eq.f32.partialorder %v227, %v402
        %vm614 = vcmp.eq.f32.partialorder %v228, %v404
        %vm615 = vcmp.eq.f32.partialorder %v229, %v406
        %vm616 = vcmp.eq.f32.partialorder %v230, %v408
        %vm617 = vcmp.eq.f32.partialorder %v231, %v410
        %vm618 = vcmp.eq.f32.partialorder %v232, %v412
        %vm619 = vcmp.eq.f32.partialorder %v233, %v414
        %vm620 = vcmp.eq.f32.partialorder %v234, %v416
        %vm621 = vcmp.eq.f32.partialorder %v235, %v418
        %vm622 = vcmp.eq.f32.partialorder %v236, %v420
        %vm623 = vcmp.eq.f32.partialorder %v237, %v422
        %vm624 = vcmp.eq.f32.partialorder %v238, %v424
        %vm625 = vcmp.eq.f32.partialorder %v239, %v426
        %vm626 = vcmp.eq.f32.partialorder %v240, %v428
        %vm627 = vcmp.eq.f32.partialorder %v241, %v430
        %vm628 = vcmp.eq.f32.partialorder %v242, %v432
        %vm629 = vcmp.eq.f32.partialorder %v243, %v434
        %vm630 = vcmp.eq.f32.partialorder %v244, %v436
        %vm631 = vcmp.eq.f32.partialorder %v245, %v438
        %vm632 = vcmp.eq.f32.partialorder %v246, %v440
        %vm633 = vcmp.eq.f32.partialorder %v247, %v442
        %vm634 = vcmp.eq.f32.partialorder %v248, %v444
        %vm635 = vcmp.eq.f32.partialorder %v249, %v446
        %vm636 = vcmp.eq.f32.partialorder %v250, %v448
        %vm637 = vcmp.eq.f32.partialorder %v251, %v450
        %vm638 = vcmp.eq.f32.partialorder %v252, %v452
        %vm639 = vcmp.eq.f32.partialorder %v253, %v454
        %vm640 = vcmp.eq.f32.partialorder %v254, %v456
        %vm641 = vcmp.eq.f32.partialorder %v255, %v458
        %vm642 = vcmp.eq.f32.partialorder %v256, %v460
        %vm643 = vcmp.eq.f32.partialorder %v257, %v462
        %vm644 = vcmp.eq.f32.partialorder %v258, %v464
        %vm645 = vcmp.eq.f32.partialorder %v259, %v466
        %vm646 = vcmp.eq.f32.partialorder %v260, %v468
        %vm647 = vcmp.eq.f32.partialorder %v261, %v470
        %vm648 = vcmp.eq.f32.partialorder %v262, %v472
        %vm649 = vcmp.eq.f32.partialorder %v263, %v474
        %vm650 = vcmp.eq.f32.partialorder %v264, %v476
        %vm651 = vcmp.eq.f32.partialorder %v265, %v478
        %vm652 = vcmp.eq.f32.partialorder %v266, %v480
        %vm653 = vcmp.eq.f32.partialorder %v267, %v482
        %vm654 = vcmp.eq.f32.partialorder %v268, %v484
        %vm655 = vcmp.eq.f32.partialorder %v269, %v486
        %vm656 = vcmp.eq.f32.partialorder %v270, %v488
        %vm657 = vcmp.eq.f32.partialorder %v271, %v490
        %vm658 = vcmp.eq.f32.partialorder %v272, %v492
        %vm659 = vcmp.eq.f32.partialorder %v273, %v494
        %vm660 = vcmp.eq.f32.partialorder %v274, %v496
        %vm661 = vcmp.eq.f32.partialorder %v275, %v498
        %vm662 = vcmp.eq.f32.partialorder %v276, %v500
        %vm663 = vcmp.eq.f32.partialorder %v277, %v502
        %vm664 = vcmp.eq.f32.partialorder %v278, %v504
        %vm665 = vcmp.eq.f32.partialorder %v279, %v506
        %vm666 = vcmp.eq.f32.partialorder %v280, %v508
        %vm667 = vcmp.eq.f32.partialorder %v281, %v510
        %vm668 = vcmp.eq.f32.partialorder %v282, %v512
        %vm669 = vcmp.eq.f32.partialorder %v283, %v514
        %vm670 = vcmp.eq.f32.partialorder %v284, %v516
        %vm671 = vcmp.eq.f32.partialorder %v285, %v518
        %vm672 = vcmp.eq.f32.partialorder %v286, %v520
        %vm673 = vcmp.eq.f32.partialorder %v287, %v522
        %vm674 = vcmp.eq.f32.partialorder %v288, %v524
        %vm675 = vcmp.eq.f32.partialorder %v289, %v526
        %vm676 = vcmp.eq.f32.partialorder %v290, %v528
        %vm677 = vcmp.eq.f32.partialorder %v291, %v530
        %vm678 = vcmp.eq.f32.partialorder %v292, %v532
        %vm679 = vcmp.eq.f32.partialorder %v293, %v534
        %vm680 = vcmp.eq.f32.partialorder %v294, %v536
        %vm681 = vcmp.eq.f32.partialorder %v295, %v538
        %vm682 = vcmp.eq.f32.partialorder %v296, %v540
        %vm683 = vcmp.eq.f32.partialorder %v297, %v542
        %vm684 = vcmp.eq.f32.partialorder %v298, %v544
        %vm685 = vcmp.eq.f32.partialorder %v299, %v546
        %vm686 = vcmp.eq.f32.partialorder %v300, %v548
        %vm687 = vcmp.eq.f32.partialorder %v301, %v550
        %vm688 = vcmp.eq.f32.partialorder %v302, %v552
        %vm689 = vcmp.eq.f32.partialorder %v303, %v554
        %vm690 = vcmp.eq.f32.partialorder %v304, %v556
        %vm691 = vcmp.eq.f32.partialorder %v305, %v558
        %vm692 = vcmp.eq.f32.partialorder %v306, %v560
        %vm693 = vcmp.eq.f32.partialorder %v307, %v562
        %vm694 = vcmp.eq.f32.partialorder %v308, %v564
        %v695 = vsel %vm567, %v566, 128
        %v696 = vsel %vm568, %v566, 128
        %v697 = vsel %vm569, %v566, 128
        %v698 = vsel %vm570, %v566, 128
        %v699 = vsel %vm571, %v566, 128
        %v700 = vsel %vm572, %v566, 128
        %v701 = vsel %vm573, %v566, 128
        %v702 = vsel %vm574, %v566, 128
        %v703 = vsel %vm575, %v566, 128
        %v704 = vsel %vm576, %v566, 128
        %v705 = vsel %vm577, %v566, 128
        %v706 = vsel %vm578, %v566, 128
        %v707 = vsel %vm579, %v566, 128
        %v708 = vsel %vm580, %v566, 128
        %v709 = vsel %vm581, %v566, 128
        %v710 = vsel %vm582, %v566, 128
        %v711 = vsel %vm583, %v566, 128
        %v712 = vsel %vm584, %v566, 128
        %v713 = vsel %vm585, %v566, 128
        %v714 = vsel %vm586, %v566, 128
        %v715 = vsel %vm587, %v566, 128
        %v716 = vsel %vm588, %v566, 128
        %v717 = vsel %vm589, %v566, 128
        %v718 = vsel %vm590, %v566, 128
        %v719 = vsel %vm591, %v566, 128
        %v720 = vsel %vm592, %v566, 128
        %v721 = vsel %vm593, %v566, 128
        %v722 = vsel %vm594, %v566, 128
        %v723 = vsel %vm595, %v566, 128
        %v724 = vsel %vm596, %v566, 128
        %v725 = vsel %vm597, %v566, 128
        %v726 = vsel %vm598, %v566, 128
        %v727 = vsel %vm599, %v566, 128
        %v728 = vsel %vm600, %v566, 128
        %v729 = vsel %vm601, %v566, 128
        %v730 = vsel %vm602, %v566, 128
        %v731 = vsel %vm603, %v566, 128
        %v732 = vsel %vm604, %v566, 128
        %v733 = vsel %vm605, %v566, 128
        %v734 = vsel %vm606, %v566, 128
        %v735 = vsel %vm607, %v566, 128
        %v736 = vsel %vm608, %v566, 128
        %v737 = vsel %vm609, %v566, 128
        %v738 = vsel %vm610, %v566, 128
        %v739 = vsel %vm611, %v566, 128
        %v740 = vsel %vm612, %v566, 128
        %v741 = vsel %vm613, %v566, 128
        %v742 = vsel %vm614, %v566, 128
        %v743 = vsel %vm615, %v566, 128
        %v744 = vsel %vm616, %v566, 128
        %v745 = vsel %vm617, %v566, 128
        %v746 = vsel %vm618, %v566, 128
        %v747 = vsel %vm619, %v566, 128
        %v748 = vsel %vm620, %v566, 128
        %v749 = vsel %vm621, %v566, 128
        %v750 = vsel %vm622, %v566, 128
        %v751 = vsel %vm623, %v566, 128
        %v752 = vsel %vm624, %v566, 128
        %v753 = vsel %vm625, %v566, 128
        %v754 = vsel %vm626, %v566, 128
        %v755 = vsel %vm627, %v566, 128
        %v756 = vsel %vm628, %v566, 128
        %v757 = vsel %vm629, %v566, 128
        %v758 = vsel %vm630, %v566, 128
        %v759 = vsel %vm631, %v566, 128
        %v760 = vsel %vm632, %v566, 128
        %v761 = vsel %vm633, %v566, 128
        %v762 = vsel %vm634, %v566, 128
        %v763 = vsel %vm635, %v566, 128
        %v764 = vsel %vm636, %v566, 128
        %v765 = vsel %vm637, %v566, 128
        %v766 = vsel %vm638, %v566, 128
        %v767 = vsel %vm639, %v566, 128
        %v768 = vsel %vm640, %v566, 128
        %v769 = vsel %vm641, %v566, 128
        %v770 = vsel %vm642, %v566, 128
        %v771 = vsel %vm643, %v566, 128
        %v772 = vsel %vm644, %v566, 128
        %v773 = vsel %vm645, %v566, 128
        %v774 = vsel %vm646, %v566, 128
        %v775 = vsel %vm647, %v566, 128
        %v776 = vsel %vm648, %v566, 128
        %v777 = vsel %vm649, %v566, 128
        %v778 = vsel %vm650, %v566, 128
        %v779 = vsel %vm651, %v566, 128
        %v780 = vsel %vm652, %v566, 128
        %v781 = vsel %vm653, %v566, 128
        %v782 = vsel %vm654, %v566, 128
        %v783 = vsel %vm655, %v566, 128
        %v784 = vsel %vm656, %v566, 128
        %v785 = vsel %vm657, %v566, 128
        %v786 = vsel %vm658, %v566, 128
        %v787 = vsel %vm659, %v566, 128
        %v788 = vsel %vm660, %v566, 128
        %v789 = vsel %vm661, %v566, 128
        %v790 = vsel %vm662, %v566, 128
        %v791 = vsel %vm663, %v566, 128
        %v792 = vsel %vm664, %v566, 128
        %v793 = vsel %vm665, %v566, 128
        %v794 = vsel %vm666, %v566, 128
        %v795 = vsel %vm667, %v566, 128
        %v796 = vsel %vm668, %v566, 128
        %v797 = vsel %vm669, %v566, 128
        %v798 = vsel %vm670, %v566, 128
        %v799 = vsel %vm671, %v566, 128
        %v800 = vsel %vm672, %v566, 128
        %v801 = vsel %vm673, %v566, 128
        %v802 = vsel %vm674, %v566, 128
        %v803 = vsel %vm675, %v566, 128
        %v804 = vsel %vm676, %v566, 128
        %v805 = vsel %vm677, %v566, 128
        %v806 = vsel %vm678, %v566, 128
        %v807 = vsel %vm679, %v566, 128
        %v808 = vsel %vm680, %v566, 128
        %v809 = vsel %vm681, %v566, 128
        %v810 = vsel %vm682, %v566, 128
        %v811 = vsel %vm683, %v566, 128
        %v812 = vsel %vm684, %v566, 128
        %v813 = vsel %vm685, %v566, 128
        %v814 = vsel %vm686, %v566, 128
        %v815 = vsel %vm687, %v566, 128
        %v816 = vsel %vm688, %v566, 128
        %v817 = vsel %vm689, %v566, 128
        %v818 = vsel %vm690, %v566, 128
        %v819 = vsel %vm691, %v566, 128
        %v820 = vsel %vm692, %v566, 128
        %v821 = vsel %vm693, %v566, 128
        %v822 = vsel %vm694, %v566, 128
        %v823 = vand.u32 %v695, 65535
        %v824 = vshra.s32 %v695, 16
        %v825 = vcvt.s32.f32 %v823
        %v826 = vcvt.s32.f32 %v824
        %827 = vmin.xlane.f32.xlu0 %v826
        %v828 = vpop.xlane.xlu0 %827
        %vm829 = vcmp.eq.f32.partialorder %v826, %v828
        %v830 = vsel %vm829, %v825, inf
        %831 = vmin.xlane.f32.xlu0 %v830
        %v832 = vpop.xlane.xlu0 %831
        %v833 = vcvt.f32.s32 %v832
        %v834 = vcvt.f32.s32 %v828
        %v835 = vshll.u32 %v834, 16
        %v836 = vadd.s32 %v835, %v833
        %v837 = vand.u32 %v696, 65535
        %v838 = vshra.s32 %v696, 16
        %v839 = vcvt.s32.f32 %v837
        %v840 = vcvt.s32.f32 %v838
        %841 = vmin.xlane.f32.xlu0 %v840
        %v842 = vpop.xlane.xlu0 %841
        %vm843 = vcmp.eq.f32.partialorder %v840, %v842
        %v844 = vsel %vm843, %v839, inf
        %845 = vmin.xlane.f32.xlu0 %v844
        %v846 = vpop.xlane.xlu0 %845
        %v847 = vcvt.f32.s32 %v846
        %v848 = vcvt.f32.s32 %v842
        %v849 = vshll.u32 %v848, 16
        %v850 = vadd.s32 %v849, %v847
        %v851 = vand.u32 %v697, 65535
        %v852 = vshra.s32 %v697, 16
        %v853 = vcvt.s32.f32 %v851
        %v854 = vcvt.s32.f32 %v852
        %855 = vmin.xlane.f32.xlu0 %v854
        %v856 = vpop.xlane.xlu0 %855
        %vm857 = vcmp.eq.f32.partialorder %v854, %v856
        %v858 = vsel %vm857, %v853, inf
        %859 = vmin.xlane.f32.xlu0 %v858
        %v860 = vpop.xlane.xlu0 %859
        %v861 = vcvt.f32.s32 %v860
        %v862 = vcvt.f32.s32 %v856
        %v863 = vshll.u32 %v862, 16
        %v864 = vadd.s32 %v863, %v861
        %v865 = vand.u32 %v698, 65535
        %v866 = vshra.s32 %v698, 16
        %v867 = vcvt.s32.f32 %v865
        %v868 = vcvt.s32.f32 %v866
        %869 = vmin.xlane.f32.xlu0 %v868
        %v870 = vpop.xlane.xlu0 %869
        %vm871 = vcmp.eq.f32.partialorder %v868, %v870
        %v872 = vsel %vm871, %v867, inf
        %873 = vmin.xlane.f32.xlu0 %v872
        %v874 = vpop.xlane.xlu0 %873
        %v875 = vcvt.f32.s32 %v874
        %v876 = vcvt.f32.s32 %v870
        %v877 = vshll.u32 %v876, 16
        %v878 = vadd.s32 %v877, %v875
        %v879 = vand.u32 %v699, 65535
        %v880 = vshra.s32 %v699, 16
        %v881 = vcvt.s32.f32 %v879
        %v882 = vcvt.s32.f32 %v880
        %883 = vmin.xlane.f32.xlu0 %v882
        %v884 = vpop.xlane.xlu0 %883
        %vm885 = vcmp.eq.f32.partialorder %v882, %v884
        %v886 = vsel %vm885, %v881, inf
        %887 = vmin.xlane.f32.xlu0 %v886
        %v888 = vpop.xlane.xlu0 %887
        %v889 = vcvt.f32.s32 %v888
        %v890 = vcvt.f32.s32 %v884
        %v891 = vshll.u32 %v890, 16
        %v892 = vadd.s32 %v891, %v889
        %v893 = vand.u32 %v700, 65535
        %v894 = vshra.s32 %v700, 16
        %v895 = vcvt.s32.f32 %v893
        %v896 = vcvt.s32.f32 %v894
        %897 = vmin.xlane.f32.xlu0 %v896
        %v898 = vpop.xlane.xlu0 %897
        %vm899 = vcmp.eq.f32.partialorder %v896, %v898
        %v900 = vsel %vm899, %v895, inf
        %901 = vmin.xlane.f32.xlu0 %v900
        %v902 = vpop.xlane.xlu0 %901
        %v903 = vcvt.f32.s32 %v902
        %v904 = vcvt.f32.s32 %v898
        %v905 = vshll.u32 %v904, 16
        %v906 = vadd.s32 %v905, %v903
        %v907 = vand.u32 %v701, 65535
        %v908 = vshra.s32 %v701, 16
        %v909 = vcvt.s32.f32 %v907
        %v910 = vcvt.s32.f32 %v908
        %911 = vmin.xlane.f32.xlu0 %v910
        %v912 = vpop.xlane.xlu0 %911
        %vm913 = vcmp.eq.f32.partialorder %v910, %v912
        %v914 = vsel %vm913, %v909, inf
        %915 = vmin.xlane.f32.xlu0 %v914
        %v916 = vpop.xlane.xlu0 %915
        %v917 = vcvt.f32.s32 %v916
        %v918 = vcvt.f32.s32 %v912
        %v919 = vshll.u32 %v918, 16
        %v920 = vadd.s32 %v919, %v917
        %v921 = vand.u32 %v702, 65535
        %v922 = vshra.s32 %v702, 16
        %v923 = vcvt.s32.f32 %v921
        %v924 = vcvt.s32.f32 %v922
        %925 = vmin.xlane.f32.xlu0 %v924
        %v926 = vpop.xlane.xlu0 %925
        %vm927 = vcmp.eq.f32.partialorder %v924, %v926
        %v928 = vsel %vm927, %v923, inf
        %929 = vmin.xlane.f32.xlu0 %v928
        %v930 = vpop.xlane.xlu0 %929
        %v931 = vcvt.f32.s32 %v930
        %v932 = vcvt.f32.s32 %v926
        %v933 = vshll.u32 %v932, 16
        %v934 = vadd.s32 %v933, %v931
        %v935 = vand.u32 %v703, 65535
        %v936 = vshra.s32 %v703, 16
        %v937 = vcvt.s32.f32 %v935
        %v938 = vcvt.s32.f32 %v936
        %939 = vmin.xlane.f32.xlu0 %v938
        %v940 = vpop.xlane.xlu0 %939
        %vm941 = vcmp.eq.f32.partialorder %v938, %v940
        %v942 = vsel %vm941, %v937, inf
        %943 = vmin.xlane.f32.xlu0 %v942
        %v944 = vpop.xlane.xlu0 %943
        %v945 = vcvt.f32.s32 %v944
        %v946 = vcvt.f32.s32 %v940
        %v947 = vshll.u32 %v946, 16
        %v948 = vadd.s32 %v947, %v945
        %v949 = vand.u32 %v704, 65535
        %v950 = vshra.s32 %v704, 16
        %v951 = vcvt.s32.f32 %v949
        %v952 = vcvt.s32.f32 %v950
        %953 = vmin.xlane.f32.xlu0 %v952
        %v954 = vpop.xlane.xlu0 %953
        %vm955 = vcmp.eq.f32.partialorder %v952, %v954
        %v956 = vsel %vm955, %v951, inf
        %957 = vmin.xlane.f32.xlu0 %v956
        %v958 = vpop.xlane.xlu0 %957
        %v959 = vcvt.f32.s32 %v958
        %v960 = vcvt.f32.s32 %v954
        %v961 = vshll.u32 %v960, 16
        %v962 = vadd.s32 %v961, %v959
        %v963 = vand.u32 %v705, 65535
        %v964 = vshra.s32 %v705, 16
        %v965 = vcvt.s32.f32 %v963
        %v966 = vcvt.s32.f32 %v964
        %967 = vmin.xlane.f32.xlu0 %v966
        %v968 = vpop.xlane.xlu0 %967
        %vm969 = vcmp.eq.f32.partialorder %v966, %v968
        %v970 = vsel %vm969, %v965, inf
        %971 = vmin.xlane.f32.xlu0 %v970
        %v972 = vpop.xlane.xlu0 %971
        %v973 = vcvt.f32.s32 %v972
        %v974 = vcvt.f32.s32 %v968
        %v975 = vshll.u32 %v974, 16
        %v976 = vadd.s32 %v975, %v973
        %v977 = vand.u32 %v706, 65535
        %v978 = vshra.s32 %v706, 16
        %v979 = vcvt.s32.f32 %v977
        %v980 = vcvt.s32.f32 %v978
        %981 = vmin.xlane.f32.xlu0 %v980
        %v982 = vpop.xlane.xlu0 %981
        %vm983 = vcmp.eq.f32.partialorder %v980, %v982
        %v984 = vsel %vm983, %v979, inf
        %985 = vmin.xlane.f32.xlu0 %v984
        %v986 = vpop.xlane.xlu0 %985
        %v987 = vcvt.f32.s32 %v986
        %v988 = vcvt.f32.s32 %v982
        %v989 = vshll.u32 %v988, 16
        %v990 = vadd.s32 %v989, %v987
        %v991 = vand.u32 %v707, 65535
        %v992 = vshra.s32 %v707, 16
        %v993 = vcvt.s32.f32 %v991
        %v994 = vcvt.s32.f32 %v992
        %995 = vmin.xlane.f32.xlu0 %v994
        %v996 = vpop.xlane.xlu0 %995
        %vm997 = vcmp.eq.f32.partialorder %v994, %v996
        %v998 = vsel %vm997, %v993, inf
        %999 = vmin.xlane.f32.xlu0 %v998
        %v1000 = vpop.xlane.xlu0 %999
        %v1001 = vcvt.f32.s32 %v1000
        %v1002 = vcvt.f32.s32 %v996
        %v1003 = vshll.u32 %v1002, 16
        %v1004 = vadd.s32 %v1003, %v1001
        %v1005 = vand.u32 %v708, 65535
        %v1006 = vshra.s32 %v708, 16
        %v1007 = vcvt.s32.f32 %v1005
        %v1008 = vcvt.s32.f32 %v1006
        %1009 = vmin.xlane.f32.xlu0 %v1008
        %v1010 = vpop.xlane.xlu0 %1009
        %vm1011 = vcmp.eq.f32.partialorder %v1008, %v1010
        %v1012 = vsel %vm1011, %v1007, inf
        %1013 = vmin.xlane.f32.xlu0 %v1012
        %v1014 = vpop.xlane.xlu0 %1013
        %v1015 = vcvt.f32.s32 %v1014
        %v1016 = vcvt.f32.s32 %v1010
        %v1017 = vshll.u32 %v1016, 16
        %v1018 = vadd.s32 %v1017, %v1015
        %v1019 = vand.u32 %v709, 65535
        %v1020 = vshra.s32 %v709, 16
        %v1021 = vcvt.s32.f32 %v1019
        %v1022 = vcvt.s32.f32 %v1020
        %1023 = vmin.xlane.f32.xlu0 %v1022
        %v1024 = vpop.xlane.xlu0 %1023
        %vm1025 = vcmp.eq.f32.partialorder %v1022, %v1024
        %v1026 = vsel %vm1025, %v1021, inf
        %1027 = vmin.xlane.f32.xlu0 %v1026
        %v1028 = vpop.xlane.xlu0 %1027
        %v1029 = vcvt.f32.s32 %v1028
        %v1030 = vcvt.f32.s32 %v1024
        %v1031 = vshll.u32 %v1030, 16
        %v1032 = vadd.s32 %v1031, %v1029
        %v1033 = vand.u32 %v710, 65535
        %v1034 = vshra.s32 %v710, 16
        %v1035 = vcvt.s32.f32 %v1033
        %v1036 = vcvt.s32.f32 %v1034
        %1037 = vmin.xlane.f32.xlu0 %v1036
        %v1038 = vpop.xlane.xlu0 %1037
        %vm1039 = vcmp.eq.f32.partialorder %v1036, %v1038
        %v1040 = vsel %vm1039, %v1035, inf
        %1041 = vmin.xlane.f32.xlu0 %v1040
        %v1042 = vpop.xlane.xlu0 %1041
        %v1043 = vcvt.f32.s32 %v1042
        %v1044 = vcvt.f32.s32 %v1038
        %v1045 = vshll.u32 %v1044, 16
        %v1046 = vadd.s32 %v1045, %v1043
        %v1047 = vand.u32 %v711, 65535
        %v1048 = vshra.s32 %v711, 16
        %v1049 = vcvt.s32.f32 %v1047
        %v1050 = vcvt.s32.f32 %v1048
        %1051 = vmin.xlane.f32.xlu0 %v1050
        %v1052 = vpop.xlane.xlu0 %1051
        %vm1053 = vcmp.eq.f32.partialorder %v1050, %v1052
        %v1054 = vsel %vm1053, %v1049, inf
        %1055 = vmin.xlane.f32.xlu0 %v1054
        %v1056 = vpop.xlane.xlu0 %1055
        %v1057 = vcvt.f32.s32 %v1056
        %v1058 = vcvt.f32.s32 %v1052
        %v1059 = vshll.u32 %v1058, 16
        %v1060 = vadd.s32 %v1059, %v1057
        %v1061 = vand.u32 %v712, 65535
        %v1062 = vshra.s32 %v712, 16
        %v1063 = vcvt.s32.f32 %v1061
        %v1064 = vcvt.s32.f32 %v1062
        %1065 = vmin.xlane.f32.xlu0 %v1064
        %v1066 = vpop.xlane.xlu0 %1065
        %vm1067 = vcmp.eq.f32.partialorder %v1064, %v1066
        %v1068 = vsel %vm1067, %v1063, inf
        %1069 = vmin.xlane.f32.xlu0 %v1068
        %v1070 = vpop.xlane.xlu0 %1069
        %v1071 = vcvt.f32.s32 %v1070
        %v1072 = vcvt.f32.s32 %v1066
        %v1073 = vshll.u32 %v1072, 16
        %v1074 = vadd.s32 %v1073, %v1071
        %v1075 = vand.u32 %v713, 65535
        %v1076 = vshra.s32 %v713, 16
        %v1077 = vcvt.s32.f32 %v1075
        %v1078 = vcvt.s32.f32 %v1076
        %1079 = vmin.xlane.f32.xlu0 %v1078
        %v1080 = vpop.xlane.xlu0 %1079
        %vm1081 = vcmp.eq.f32.partialorder %v1078, %v1080
        %v1082 = vsel %vm1081, %v1077, inf
        %1083 = vmin.xlane.f32.xlu0 %v1082
        %v1084 = vpop.xlane.xlu0 %1083
        %v1085 = vcvt.f32.s32 %v1084
        %v1086 = vcvt.f32.s32 %v1080
        %v1087 = vshll.u32 %v1086, 16
        %v1088 = vadd.s32 %v1087, %v1085
        %v1089 = vand.u32 %v714, 65535
        %v1090 = vshra.s32 %v714, 16
        %v1091 = vcvt.s32.f32 %v1089
        %v1092 = vcvt.s32.f32 %v1090
        %1093 = vmin.xlane.f32.xlu0 %v1092
        %v1094 = vpop.xlane.xlu0 %1093
        %vm1095 = vcmp.eq.f32.partialorder %v1092, %v1094
        %v1096 = vsel %vm1095, %v1091, inf
        %1097 = vmin.xlane.f32.xlu0 %v1096
        %v1098 = vpop.xlane.xlu0 %1097
        %v1099 = vcvt.f32.s32 %v1098
        %v1100 = vcvt.f32.s32 %v1094
        %v1101 = vshll.u32 %v1100, 16
        %v1102 = vadd.s32 %v1101, %v1099
        %v1103 = vand.u32 %v715, 65535
        %v1104 = vshra.s32 %v715, 16
        %v1105 = vcvt.s32.f32 %v1103
        %v1106 = vcvt.s32.f32 %v1104
        %1107 = vmin.xlane.f32.xlu0 %v1106
        %v1108 = vpop.xlane.xlu0 %1107
        %vm1109 = vcmp.eq.f32.partialorder %v1106, %v1108
        %v1110 = vsel %vm1109, %v1105, inf
        %1111 = vmin.xlane.f32.xlu0 %v1110
        %v1112 = vpop.xlane.xlu0 %1111
        %v1113 = vcvt.f32.s32 %v1112
        %v1114 = vcvt.f32.s32 %v1108
        %v1115 = vshll.u32 %v1114, 16
        %v1116 = vadd.s32 %v1115, %v1113
        %v1117 = vand.u32 %v716, 65535
        %v1118 = vshra.s32 %v716, 16
        %v1119 = vcvt.s32.f32 %v1117
        %v1120 = vcvt.s32.f32 %v1118
        %1121 = vmin.xlane.f32.xlu0 %v1120
        %v1122 = vpop.xlane.xlu0 %1121
        %vm1123 = vcmp.eq.f32.partialorder %v1120, %v1122
        %v1124 = vsel %vm1123, %v1119, inf
        %1125 = vmin.xlane.f32.xlu0 %v1124
        %v1126 = vpop.xlane.xlu0 %1125
        %v1127 = vcvt.f32.s32 %v1126
        %v1128 = vcvt.f32.s32 %v1122
        %v1129 = vshll.u32 %v1128, 16
        %v1130 = vadd.s32 %v1129, %v1127
        %v1131 = vand.u32 %v717, 65535
        %v1132 = vshra.s32 %v717, 16
        %v1133 = vcvt.s32.f32 %v1131
        %v1134 = vcvt.s32.f32 %v1132
        %1135 = vmin.xlane.f32.xlu0 %v1134
        %v1136 = vpop.xlane.xlu0 %1135
        %vm1137 = vcmp.eq.f32.partialorder %v1134, %v1136
        %v1138 = vsel %vm1137, %v1133, inf
        %1139 = vmin.xlane.f32.xlu0 %v1138
        %v1140 = vpop.xlane.xlu0 %1139
        %v1141 = vcvt.f32.s32 %v1140
        %v1142 = vcvt.f32.s32 %v1136
        %v1143 = vshll.u32 %v1142, 16
        %v1144 = vadd.s32 %v1143, %v1141
        %v1145 = vand.u32 %v718, 65535
        %v1146 = vshra.s32 %v718, 16
        %v1147 = vcvt.s32.f32 %v1145
        %v1148 = vcvt.s32.f32 %v1146
        %1149 = vmin.xlane.f32.xlu0 %v1148
        %v1150 = vpop.xlane.xlu0 %1149
        %vm1151 = vcmp.eq.f32.partialorder %v1148, %v1150
        %v1152 = vsel %vm1151, %v1147, inf
        %1153 = vmin.xlane.f32.xlu0 %v1152
        %v1154 = vpop.xlane.xlu0 %1153
        %v1155 = vcvt.f32.s32 %v1154
        %v1156 = vcvt.f32.s32 %v1150
        %v1157 = vshll.u32 %v1156, 16
        %v1158 = vadd.s32 %v1157, %v1155
        %v1159 = vand.u32 %v719, 65535
        %v1160 = vshra.s32 %v719, 16
        %v1161 = vcvt.s32.f32 %v1159
        %v1162 = vcvt.s32.f32 %v1160
        %1163 = vmin.xlane.f32.xlu0 %v1162
        %v1164 = vpop.xlane.xlu0 %1163
        %vm1165 = vcmp.eq.f32.partialorder %v1162, %v1164
        %v1166 = vsel %vm1165, %v1161, inf
        %1167 = vmin.xlane.f32.xlu0 %v1166
        %v1168 = vpop.xlane.xlu0 %1167
        %v1169 = vcvt.f32.s32 %v1168
        %v1170 = vcvt.f32.s32 %v1164
        %v1171 = vshll.u32 %v1170, 16
        %v1172 = vadd.s32 %v1171, %v1169
        %v1173 = vand.u32 %v720, 65535
        %v1174 = vshra.s32 %v720, 16
        %v1175 = vcvt.s32.f32 %v1173
        %v1176 = vcvt.s32.f32 %v1174
        %1177 = vmin.xlane.f32.xlu0 %v1176
        %v1178 = vpop.xlane.xlu0 %1177
        %vm1179 = vcmp.eq.f32.partialorder %v1176, %v1178
        %v1180 = vsel %vm1179, %v1175, inf
        %1181 = vmin.xlane.f32.xlu0 %v1180
        %v1182 = vpop.xlane.xlu0 %1181
        %v1183 = vcvt.f32.s32 %v1182
        %v1184 = vcvt.f32.s32 %v1178
        %v1185 = vshll.u32 %v1184, 16
        %v1186 = vadd.s32 %v1185, %v1183
        %v1187 = vand.u32 %v721, 65535
        %v1188 = vshra.s32 %v721, 16
        %v1189 = vcvt.s32.f32 %v1187
        %v1190 = vcvt.s32.f32 %v1188
        %1191 = vmin.xlane.f32.xlu0 %v1190
        %v1192 = vpop.xlane.xlu0 %1191
        %vm1193 = vcmp.eq.f32.partialorder %v1190, %v1192
        %v1194 = vsel %vm1193, %v1189, inf
        %1195 = vmin.xlane.f32.xlu0 %v1194
        %v1196 = vpop.xlane.xlu0 %1195
        %v1197 = vcvt.f32.s32 %v1196
        %v1198 = vcvt.f32.s32 %v1192
        %v1199 = vshll.u32 %v1198, 16
        %v1200 = vadd.s32 %v1199, %v1197
        %v1201 = vand.u32 %v722, 65535
        %v1202 = vshra.s32 %v722, 16
        %v1203 = vcvt.s32.f32 %v1201
        %v1204 = vcvt.s32.f32 %v1202
        %1205 = vmin.xlane.f32.xlu0 %v1204
        %v1206 = vpop.xlane.xlu0 %1205
        %vm1207 = vcmp.eq.f32.partialorder %v1204, %v1206
        %v1208 = vsel %vm1207, %v1203, inf
        %1209 = vmin.xlane.f32.xlu0 %v1208
        %v1210 = vpop.xlane.xlu0 %1209
        %v1211 = vcvt.f32.s32 %v1210
        %v1212 = vcvt.f32.s32 %v1206
        %v1213 = vshll.u32 %v1212, 16
        %v1214 = vadd.s32 %v1213, %v1211
        %v1215 = vand.u32 %v723, 65535
        %v1216 = vshra.s32 %v723, 16
        %v1217 = vcvt.s32.f32 %v1215
        %v1218 = vcvt.s32.f32 %v1216
        %1219 = vmin.xlane.f32.xlu0 %v1218
        %v1220 = vpop.xlane.xlu0 %1219
        %vm1221 = vcmp.eq.f32.partialorder %v1218, %v1220
        %v1222 = vsel %vm1221, %v1217, inf
        %1223 = vmin.xlane.f32.xlu0 %v1222
        %v1224 = vpop.xlane.xlu0 %1223
        %v1225 = vcvt.f32.s32 %v1224
        %v1226 = vcvt.f32.s32 %v1220
        %v1227 = vshll.u32 %v1226, 16
        %v1228 = vadd.s32 %v1227, %v1225
        %v1229 = vand.u32 %v724, 65535
        %v1230 = vshra.s32 %v724, 16
        %v1231 = vcvt.s32.f32 %v1229
        %v1232 = vcvt.s32.f32 %v1230
        %1233 = vmin.xlane.f32.xlu0 %v1232
        %v1234 = vpop.xlane.xlu0 %1233
        %vm1235 = vcmp.eq.f32.partialorder %v1232, %v1234
        %v1236 = vsel %vm1235, %v1231, inf
        %1237 = vmin.xlane.f32.xlu0 %v1236
        %v1238 = vpop.xlane.xlu0 %1237
        %v1239 = vcvt.f32.s32 %v1238
        %v1240 = vcvt.f32.s32 %v1234
        %v1241 = vshll.u32 %v1240, 16
        %v1242 = vadd.s32 %v1241, %v1239
        %v1243 = vand.u32 %v725, 65535
        %v1244 = vshra.s32 %v725, 16
        %v1245 = vcvt.s32.f32 %v1243
        %v1246 = vcvt.s32.f32 %v1244
        %1247 = vmin.xlane.f32.xlu0 %v1246
        %v1248 = vpop.xlane.xlu0 %1247
        %vm1249 = vcmp.eq.f32.partialorder %v1246, %v1248
        %v1250 = vsel %vm1249, %v1245, inf
        %1251 = vmin.xlane.f32.xlu0 %v1250
        %v1252 = vpop.xlane.xlu0 %1251
        %v1253 = vcvt.f32.s32 %v1252
        %v1254 = vcvt.f32.s32 %v1248
        %v1255 = vshll.u32 %v1254, 16
        %v1256 = vadd.s32 %v1255, %v1253
        %v1257 = vand.u32 %v726, 65535
        %v1258 = vshra.s32 %v726, 16
        %v1259 = vcvt.s32.f32 %v1257
        %v1260 = vcvt.s32.f32 %v1258
        %1261 = vmin.xlane.f32.xlu0 %v1260
        %v1262 = vpop.xlane.xlu0 %1261
        %vm1263 = vcmp.eq.f32.partialorder %v1260, %v1262
        %v1264 = vsel %vm1263, %v1259, inf
        %1265 = vmin.xlane.f32.xlu0 %v1264
        %v1266 = vpop.xlane.xlu0 %1265
        %v1267 = vcvt.f32.s32 %v1266
        %v1268 = vcvt.f32.s32 %v1262
        %v1269 = vshll.u32 %v1268, 16
        %v1270 = vadd.s32 %v1269, %v1267
        %v1271 = vand.u32 %v727, 65535
        %v1272 = vshra.s32 %v727, 16
        %v1273 = vcvt.s32.f32 %v1271
        %v1274 = vcvt.s32.f32 %v1272
        %1275 = vmin.xlane.f32.xlu0 %v1274
        %v1276 = vpop.xlane.xlu0 %1275
        %vm1277 = vcmp.eq.f32.partialorder %v1274, %v1276
        %v1278 = vsel %vm1277, %v1273, inf
        %1279 = vmin.xlane.f32.xlu0 %v1278
        %v1280 = vpop.xlane.xlu0 %1279
        %v1281 = vcvt.f32.s32 %v1280
        %v1282 = vcvt.f32.s32 %v1276
        %v1283 = vshll.u32 %v1282, 16
        %v1284 = vadd.s32 %v1283, %v1281
        %v1285 = vand.u32 %v728, 65535
        %v1286 = vshra.s32 %v728, 16
        %v1287 = vcvt.s32.f32 %v1285
        %v1288 = vcvt.s32.f32 %v1286
        %1289 = vmin.xlane.f32.xlu0 %v1288
        %v1290 = vpop.xlane.xlu0 %1289
        %vm1291 = vcmp.eq.f32.partialorder %v1288, %v1290
        %v1292 = vsel %vm1291, %v1287, inf
        %1293 = vmin.xlane.f32.xlu0 %v1292
        %v1294 = vpop.xlane.xlu0 %1293
        %v1295 = vcvt.f32.s32 %v1294
        %v1296 = vcvt.f32.s32 %v1290
        %v1297 = vshll.u32 %v1296, 16
        %v1298 = vadd.s32 %v1297, %v1295
        %v1299 = vand.u32 %v729, 65535
        %v1300 = vshra.s32 %v729, 16
        %v1301 = vcvt.s32.f32 %v1299
        %v1302 = vcvt.s32.f32 %v1300
        %1303 = vmin.xlane.f32.xlu0 %v1302
        %v1304 = vpop.xlane.xlu0 %1303
        %vm1305 = vcmp.eq.f32.partialorder %v1302, %v1304
        %v1306 = vsel %vm1305, %v1301, inf
        %1307 = vmin.xlane.f32.xlu0 %v1306
        %v1308 = vpop.xlane.xlu0 %1307
        %v1309 = vcvt.f32.s32 %v1308
        %v1310 = vcvt.f32.s32 %v1304
        %v1311 = vshll.u32 %v1310, 16
        %v1312 = vadd.s32 %v1311, %v1309
        %v1313 = vand.u32 %v730, 65535
        %v1314 = vshra.s32 %v730, 16
        %v1315 = vcvt.s32.f32 %v1313
        %v1316 = vcvt.s32.f32 %v1314
        %1317 = vmin.xlane.f32.xlu0 %v1316
        %v1318 = vpop.xlane.xlu0 %1317
        %vm1319 = vcmp.eq.f32.partialorder %v1316, %v1318
        %v1320 = vsel %vm1319, %v1315, inf
        %1321 = vmin.xlane.f32.xlu0 %v1320
        %v1322 = vpop.xlane.xlu0 %1321
        %v1323 = vcvt.f32.s32 %v1322
        %v1324 = vcvt.f32.s32 %v1318
        %v1325 = vshll.u32 %v1324, 16
        %v1326 = vadd.s32 %v1325, %v1323
        %v1327 = vand.u32 %v731, 65535
        %v1328 = vshra.s32 %v731, 16
        %v1329 = vcvt.s32.f32 %v1327
        %v1330 = vcvt.s32.f32 %v1328
        %1331 = vmin.xlane.f32.xlu0 %v1330
        %v1332 = vpop.xlane.xlu0 %1331
        %vm1333 = vcmp.eq.f32.partialorder %v1330, %v1332
        %v1334 = vsel %vm1333, %v1329, inf
        %1335 = vmin.xlane.f32.xlu0 %v1334
        %v1336 = vpop.xlane.xlu0 %1335
        %v1337 = vcvt.f32.s32 %v1336
        %v1338 = vcvt.f32.s32 %v1332
        %v1339 = vshll.u32 %v1338, 16
        %v1340 = vadd.s32 %v1339, %v1337
        %v1341 = vand.u32 %v732, 65535
        %v1342 = vshra.s32 %v732, 16
        %v1343 = vcvt.s32.f32 %v1341
        %v1344 = vcvt.s32.f32 %v1342
        %1345 = vmin.xlane.f32.xlu0 %v1344
        %v1346 = vpop.xlane.xlu0 %1345
        %vm1347 = vcmp.eq.f32.partialorder %v1344, %v1346
        %v1348 = vsel %vm1347, %v1343, inf
        %1349 = vmin.xlane.f32.xlu0 %v1348
        %v1350 = vpop.xlane.xlu0 %1349
        %v1351 = vcvt.f32.s32 %v1350
        %v1352 = vcvt.f32.s32 %v1346
        %v1353 = vshll.u32 %v1352, 16
        %v1354 = vadd.s32 %v1353, %v1351
        %v1355 = vand.u32 %v733, 65535
        %v1356 = vshra.s32 %v733, 16
        %v1357 = vcvt.s32.f32 %v1355
        %v1358 = vcvt.s32.f32 %v1356
        %1359 = vmin.xlane.f32.xlu0 %v1358
        %v1360 = vpop.xlane.xlu0 %1359
        %vm1361 = vcmp.eq.f32.partialorder %v1358, %v1360
        %v1362 = vsel %vm1361, %v1357, inf
        %1363 = vmin.xlane.f32.xlu0 %v1362
        %v1364 = vpop.xlane.xlu0 %1363
        %v1365 = vcvt.f32.s32 %v1364
        %v1366 = vcvt.f32.s32 %v1360
        %v1367 = vshll.u32 %v1366, 16
        %v1368 = vadd.s32 %v1367, %v1365
        %v1369 = vand.u32 %v734, 65535
        %v1370 = vshra.s32 %v734, 16
        %v1371 = vcvt.s32.f32 %v1369
        %v1372 = vcvt.s32.f32 %v1370
        %1373 = vmin.xlane.f32.xlu0 %v1372
        %v1374 = vpop.xlane.xlu0 %1373
        %vm1375 = vcmp.eq.f32.partialorder %v1372, %v1374
        %v1376 = vsel %vm1375, %v1371, inf
        %1377 = vmin.xlane.f32.xlu0 %v1376
        %v1378 = vpop.xlane.xlu0 %1377
        %v1379 = vcvt.f32.s32 %v1378
        %v1380 = vcvt.f32.s32 %v1374
        %v1381 = vshll.u32 %v1380, 16
        %v1382 = vadd.s32 %v1381, %v1379
        %v1383 = vand.u32 %v735, 65535
        %v1384 = vshra.s32 %v735, 16
        %v1385 = vcvt.s32.f32 %v1383
        %v1386 = vcvt.s32.f32 %v1384
        %1387 = vmin.xlane.f32.xlu0 %v1386
        %v1388 = vpop.xlane.xlu0 %1387
        %vm1389 = vcmp.eq.f32.partialorder %v1386, %v1388
        %v1390 = vsel %vm1389, %v1385, inf
        %1391 = vmin.xlane.f32.xlu0 %v1390
        %v1392 = vpop.xlane.xlu0 %1391
        %v1393 = vcvt.f32.s32 %v1392
        %v1394 = vcvt.f32.s32 %v1388
        %v1395 = vshll.u32 %v1394, 16
        %v1396 = vadd.s32 %v1395, %v1393
        %v1397 = vand.u32 %v736, 65535
        %v1398 = vshra.s32 %v736, 16
        %v1399 = vcvt.s32.f32 %v1397
        %v1400 = vcvt.s32.f32 %v1398
        %1401 = vmin.xlane.f32.xlu0 %v1400
        %v1402 = vpop.xlane.xlu0 %1401
        %vm1403 = vcmp.eq.f32.partialorder %v1400, %v1402
        %v1404 = vsel %vm1403, %v1399, inf
        %1405 = vmin.xlane.f32.xlu0 %v1404
        %v1406 = vpop.xlane.xlu0 %1405
        %v1407 = vcvt.f32.s32 %v1406
        %v1408 = vcvt.f32.s32 %v1402
        %v1409 = vshll.u32 %v1408, 16
        %v1410 = vadd.s32 %v1409, %v1407
        %v1411 = vand.u32 %v737, 65535
        %v1412 = vshra.s32 %v737, 16
        %v1413 = vcvt.s32.f32 %v1411
        %v1414 = vcvt.s32.f32 %v1412
        %1415 = vmin.xlane.f32.xlu0 %v1414
        %v1416 = vpop.xlane.xlu0 %1415
        %vm1417 = vcmp.eq.f32.partialorder %v1414, %v1416
        %v1418 = vsel %vm1417, %v1413, inf
        %1419 = vmin.xlane.f32.xlu0 %v1418
        %v1420 = vpop.xlane.xlu0 %1419
        %v1421 = vcvt.f32.s32 %v1420
        %v1422 = vcvt.f32.s32 %v1416
        %v1423 = vshll.u32 %v1422, 16
        %v1424 = vadd.s32 %v1423, %v1421
        %v1425 = vand.u32 %v738, 65535
        %v1426 = vshra.s32 %v738, 16
        %v1427 = vcvt.s32.f32 %v1425
        %v1428 = vcvt.s32.f32 %v1426
        %1429 = vmin.xlane.f32.xlu0 %v1428
        %v1430 = vpop.xlane.xlu0 %1429
        %vm1431 = vcmp.eq.f32.partialorder %v1428, %v1430
        %v1432 = vsel %vm1431, %v1427, inf
        %1433 = vmin.xlane.f32.xlu0 %v1432
        %v1434 = vpop.xlane.xlu0 %1433
        %v1435 = vcvt.f32.s32 %v1434
        %v1436 = vcvt.f32.s32 %v1430
        %v1437 = vshll.u32 %v1436, 16
        %v1438 = vadd.s32 %v1437, %v1435
        %v1439 = vand.u32 %v739, 65535
        %v1440 = vshra.s32 %v739, 16
        %v1441 = vcvt.s32.f32 %v1439
        %v1442 = vcvt.s32.f32 %v1440
        %1443 = vmin.xlane.f32.xlu0 %v1442
        %v1444 = vpop.xlane.xlu0 %1443
        %vm1445 = vcmp.eq.f32.partialorder %v1442, %v1444
        %v1446 = vsel %vm1445, %v1441, inf
        %1447 = vmin.xlane.f32.xlu0 %v1446
        %v1448 = vpop.xlane.xlu0 %1447
        %v1449 = vcvt.f32.s32 %v1448
        %v1450 = vcvt.f32.s32 %v1444
        %v1451 = vshll.u32 %v1450, 16
        %v1452 = vadd.s32 %v1451, %v1449
        %v1453 = vand.u32 %v740, 65535
        %v1454 = vshra.s32 %v740, 16
        %v1455 = vcvt.s32.f32 %v1453
        %v1456 = vcvt.s32.f32 %v1454
        %1457 = vmin.xlane.f32.xlu0 %v1456
        %v1458 = vpop.xlane.xlu0 %1457
        %vm1459 = vcmp.eq.f32.partialorder %v1456, %v1458
        %v1460 = vsel %vm1459, %v1455, inf
        %1461 = vmin.xlane.f32.xlu0 %v1460
        %v1462 = vpop.xlane.xlu0 %1461
        %v1463 = vcvt.f32.s32 %v1462
        %v1464 = vcvt.f32.s32 %v1458
        %v1465 = vshll.u32 %v1464, 16
        %v1466 = vadd.s32 %v1465, %v1463
        %v1467 = vand.u32 %v741, 65535
        %v1468 = vshra.s32 %v741, 16
        %v1469 = vcvt.s32.f32 %v1467
        %v1470 = vcvt.s32.f32 %v1468
        %1471 = vmin.xlane.f32.xlu0 %v1470
        %v1472 = vpop.xlane.xlu0 %1471
        %vm1473 = vcmp.eq.f32.partialorder %v1470, %v1472
        %v1474 = vsel %vm1473, %v1469, inf
        %1475 = vmin.xlane.f32.xlu0 %v1474
        %v1476 = vpop.xlane.xlu0 %1475
        %v1477 = vcvt.f32.s32 %v1476
        %v1478 = vcvt.f32.s32 %v1472
        %v1479 = vshll.u32 %v1478, 16
        %v1480 = vadd.s32 %v1479, %v1477
        %v1481 = vand.u32 %v742, 65535
        %v1482 = vshra.s32 %v742, 16
        %v1483 = vcvt.s32.f32 %v1481
        %v1484 = vcvt.s32.f32 %v1482
        %1485 = vmin.xlane.f32.xlu0 %v1484
        %v1486 = vpop.xlane.xlu0 %1485
        %vm1487 = vcmp.eq.f32.partialorder %v1484, %v1486
        %v1488 = vsel %vm1487, %v1483, inf
        %1489 = vmin.xlane.f32.xlu0 %v1488
        %v1490 = vpop.xlane.xlu0 %1489
        %v1491 = vcvt.f32.s32 %v1490
        %v1492 = vcvt.f32.s32 %v1486
        %v1493 = vshll.u32 %v1492, 16
        %v1494 = vadd.s32 %v1493, %v1491
        %v1495 = vand.u32 %v743, 65535
        %v1496 = vshra.s32 %v743, 16
        %v1497 = vcvt.s32.f32 %v1495
        %v1498 = vcvt.s32.f32 %v1496
        %1499 = vmin.xlane.f32.xlu0 %v1498
        %v1500 = vpop.xlane.xlu0 %1499
        %vm1501 = vcmp.eq.f32.partialorder %v1498, %v1500
        %v1502 = vsel %vm1501, %v1497, inf
        %1503 = vmin.xlane.f32.xlu0 %v1502
        %v1504 = vpop.xlane.xlu0 %1503
        %v1505 = vcvt.f32.s32 %v1504
        %v1506 = vcvt.f32.s32 %v1500
        %v1507 = vshll.u32 %v1506, 16
        %v1508 = vadd.s32 %v1507, %v1505
        %v1509 = vand.u32 %v744, 65535
        %v1510 = vshra.s32 %v744, 16
        %v1511 = vcvt.s32.f32 %v1509
        %v1512 = vcvt.s32.f32 %v1510
        %1513 = vmin.xlane.f32.xlu0 %v1512
        %v1514 = vpop.xlane.xlu0 %1513
        %vm1515 = vcmp.eq.f32.partialorder %v1512, %v1514
        %v1516 = vsel %vm1515, %v1511, inf
        %1517 = vmin.xlane.f32.xlu0 %v1516
        %v1518 = vpop.xlane.xlu0 %1517
        %v1519 = vcvt.f32.s32 %v1518
        %v1520 = vcvt.f32.s32 %v1514
        %v1521 = vshll.u32 %v1520, 16
        %v1522 = vadd.s32 %v1521, %v1519
        %v1523 = vand.u32 %v745, 65535
        %v1524 = vshra.s32 %v745, 16
        %v1525 = vcvt.s32.f32 %v1523
        %v1526 = vcvt.s32.f32 %v1524
        %1527 = vmin.xlane.f32.xlu0 %v1526
        %v1528 = vpop.xlane.xlu0 %1527
        %vm1529 = vcmp.eq.f32.partialorder %v1526, %v1528
        %v1530 = vsel %vm1529, %v1525, inf
        %1531 = vmin.xlane.f32.xlu0 %v1530
        %v1532 = vpop.xlane.xlu0 %1531
        %v1533 = vcvt.f32.s32 %v1532
        %v1534 = vcvt.f32.s32 %v1528
        %v1535 = vshll.u32 %v1534, 16
        %v1536 = vadd.s32 %v1535, %v1533
        %v1537 = vand.u32 %v746, 65535
        %v1538 = vshra.s32 %v746, 16
        %v1539 = vcvt.s32.f32 %v1537
        %v1540 = vcvt.s32.f32 %v1538
        %1541 = vmin.xlane.f32.xlu0 %v1540
        %v1542 = vpop.xlane.xlu0 %1541
        %vm1543 = vcmp.eq.f32.partialorder %v1540, %v1542
        %v1544 = vsel %vm1543, %v1539, inf
        %1545 = vmin.xlane.f32.xlu0 %v1544
        %v1546 = vpop.xlane.xlu0 %1545
        %v1547 = vcvt.f32.s32 %v1546
        %v1548 = vcvt.f32.s32 %v1542
        %v1549 = vshll.u32 %v1548, 16
        %v1550 = vadd.s32 %v1549, %v1547
        %v1551 = vand.u32 %v747, 65535
        %v1552 = vshra.s32 %v747, 16
        %v1553 = vcvt.s32.f32 %v1551
        %v1554 = vcvt.s32.f32 %v1552
        %1555 = vmin.xlane.f32.xlu0 %v1554
        %v1556 = vpop.xlane.xlu0 %1555
        %vm1557 = vcmp.eq.f32.partialorder %v1554, %v1556
        %v1558 = vsel %vm1557, %v1553, inf
        %1559 = vmin.xlane.f32.xlu0 %v1558
        %v1560 = vpop.xlane.xlu0 %1559
        %v1561 = vcvt.f32.s32 %v1560
        %v1562 = vcvt.f32.s32 %v1556
        %v1563 = vshll.u32 %v1562, 16
        %v1564 = vadd.s32 %v1563, %v1561
        %v1565 = vand.u32 %v748, 65535
        %v1566 = vshra.s32 %v748, 16
        %v1567 = vcvt.s32.f32 %v1565
        %v1568 = vcvt.s32.f32 %v1566
        %1569 = vmin.xlane.f32.xlu0 %v1568
        %v1570 = vpop.xlane.xlu0 %1569
        %vm1571 = vcmp.eq.f32.partialorder %v1568, %v1570
        %v1572 = vsel %vm1571, %v1567, inf
        %1573 = vmin.xlane.f32.xlu0 %v1572
        %v1574 = vpop.xlane.xlu0 %1573
        %v1575 = vcvt.f32.s32 %v1574
        %v1576 = vcvt.f32.s32 %v1570
        %v1577 = vshll.u32 %v1576, 16
        %v1578 = vadd.s32 %v1577, %v1575
        %v1579 = vand.u32 %v749, 65535
        %v1580 = vshra.s32 %v749, 16
        %v1581 = vcvt.s32.f32 %v1579
        %v1582 = vcvt.s32.f32 %v1580
        %1583 = vmin.xlane.f32.xlu0 %v1582
        %v1584 = vpop.xlane.xlu0 %1583
        %vm1585 = vcmp.eq.f32.partialorder %v1582, %v1584
        %v1586 = vsel %vm1585, %v1581, inf
        %1587 = vmin.xlane.f32.xlu0 %v1586
        %v1588 = vpop.xlane.xlu0 %1587
        %v1589 = vcvt.f32.s32 %v1588
        %v1590 = vcvt.f32.s32 %v1584
        %v1591 = vshll.u32 %v1590, 16
        %v1592 = vadd.s32 %v1591, %v1589
        %v1593 = vand.u32 %v750, 65535
        %v1594 = vshra.s32 %v750, 16
        %v1595 = vcvt.s32.f32 %v1593
        %v1596 = vcvt.s32.f32 %v1594
        %1597 = vmin.xlane.f32.xlu0 %v1596
        %v1598 = vpop.xlane.xlu0 %1597
        %vm1599 = vcmp.eq.f32.partialorder %v1596, %v1598
        %v1600 = vsel %vm1599, %v1595, inf
        %1601 = vmin.xlane.f32.xlu0 %v1600
        %v1602 = vpop.xlane.xlu0 %1601
        %v1603 = vcvt.f32.s32 %v1602
        %v1604 = vcvt.f32.s32 %v1598
        %v1605 = vshll.u32 %v1604, 16
        %v1606 = vadd.s32 %v1605, %v1603
        %v1607 = vand.u32 %v751, 65535
        %v1608 = vshra.s32 %v751, 16
        %v1609 = vcvt.s32.f32 %v1607
        %v1610 = vcvt.s32.f32 %v1608
        %1611 = vmin.xlane.f32.xlu0 %v1610
        %v1612 = vpop.xlane.xlu0 %1611
        %vm1613 = vcmp.eq.f32.partialorder %v1610, %v1612
        %v1614 = vsel %vm1613, %v1609, inf
        %1615 = vmin.xlane.f32.xlu0 %v1614
        %v1616 = vpop.xlane.xlu0 %1615
        %v1617 = vcvt.f32.s32 %v1616
        %v1618 = vcvt.f32.s32 %v1612
        %v1619 = vshll.u32 %v1618, 16
        %v1620 = vadd.s32 %v1619, %v1617
        %v1621 = vand.u32 %v752, 65535
        %v1622 = vshra.s32 %v752, 16
        %v1623 = vcvt.s32.f32 %v1621
        %v1624 = vcvt.s32.f32 %v1622
        %1625 = vmin.xlane.f32.xlu0 %v1624
        %v1626 = vpop.xlane.xlu0 %1625
        %vm1627 = vcmp.eq.f32.partialorder %v1624, %v1626
        %v1628 = vsel %vm1627, %v1623, inf
        %1629 = vmin.xlane.f32.xlu0 %v1628
        %v1630 = vpop.xlane.xlu0 %1629
        %v1631 = vcvt.f32.s32 %v1630
        %v1632 = vcvt.f32.s32 %v1626
        %v1633 = vshll.u32 %v1632, 16
        %v1634 = vadd.s32 %v1633, %v1631
        %v1635 = vand.u32 %v753, 65535
        %v1636 = vshra.s32 %v753, 16
        %v1637 = vcvt.s32.f32 %v1635
        %v1638 = vcvt.s32.f32 %v1636
        %1639 = vmin.xlane.f32.xlu0 %v1638
        %v1640 = vpop.xlane.xlu0 %1639
        %vm1641 = vcmp.eq.f32.partialorder %v1638, %v1640
        %v1642 = vsel %vm1641, %v1637, inf
        %1643 = vmin.xlane.f32.xlu0 %v1642
        %v1644 = vpop.xlane.xlu0 %1643
        %v1645 = vcvt.f32.s32 %v1644
        %v1646 = vcvt.f32.s32 %v1640
        %v1647 = vshll.u32 %v1646, 16
        %v1648 = vadd.s32 %v1647, %v1645
        %v1649 = vand.u32 %v754, 65535
        %v1650 = vshra.s32 %v754, 16
        %v1651 = vcvt.s32.f32 %v1649
        %v1652 = vcvt.s32.f32 %v1650
        %1653 = vmin.xlane.f32.xlu0 %v1652
        %v1654 = vpop.xlane.xlu0 %1653
        %vm1655 = vcmp.eq.f32.partialorder %v1652, %v1654
        %v1656 = vsel %vm1655, %v1651, inf
        %1657 = vmin.xlane.f32.xlu0 %v1656
        %v1658 = vpop.xlane.xlu0 %1657
        %v1659 = vcvt.f32.s32 %v1658
        %v1660 = vcvt.f32.s32 %v1654
        %v1661 = vshll.u32 %v1660, 16
        %v1662 = vadd.s32 %v1661, %v1659
        %v1663 = vand.u32 %v755, 65535
        %v1664 = vshra.s32 %v755, 16
        %v1665 = vcvt.s32.f32 %v1663
        %v1666 = vcvt.s32.f32 %v1664
        %1667 = vmin.xlane.f32.xlu0 %v1666
        %v1668 = vpop.xlane.xlu0 %1667
        %vm1669 = vcmp.eq.f32.partialorder %v1666, %v1668
        %v1670 = vsel %vm1669, %v1665, inf
        %1671 = vmin.xlane.f32.xlu0 %v1670
        %v1672 = vpop.xlane.xlu0 %1671
        %v1673 = vcvt.f32.s32 %v1672
        %v1674 = vcvt.f32.s32 %v1668
        %v1675 = vshll.u32 %v1674, 16
        %v1676 = vadd.s32 %v1675, %v1673
        %v1677 = vand.u32 %v756, 65535
        %v1678 = vshra.s32 %v756, 16
        %v1679 = vcvt.s32.f32 %v1677
        %v1680 = vcvt.s32.f32 %v1678
        %1681 = vmin.xlane.f32.xlu0 %v1680
        %v1682 = vpop.xlane.xlu0 %1681
        %vm1683 = vcmp.eq.f32.partialorder %v1680, %v1682
        %v1684 = vsel %vm1683, %v1679, inf
        %1685 = vmin.xlane.f32.xlu0 %v1684
        %v1686 = vpop.xlane.xlu0 %1685
        %v1687 = vcvt.f32.s32 %v1686
        %v1688 = vcvt.f32.s32 %v1682
        %v1689 = vshll.u32 %v1688, 16
        %v1690 = vadd.s32 %v1689, %v1687
        %v1691 = vand.u32 %v757, 65535
        %v1692 = vshra.s32 %v757, 16
        %v1693 = vcvt.s32.f32 %v1691
        %v1694 = vcvt.s32.f32 %v1692
        %1695 = vmin.xlane.f32.xlu0 %v1694
        %v1696 = vpop.xlane.xlu0 %1695
        %vm1697 = vcmp.eq.f32.partialorder %v1694, %v1696
        %v1698 = vsel %vm1697, %v1693, inf
        %1699 = vmin.xlane.f32.xlu0 %v1698
        %v1700 = vpop.xlane.xlu0 %1699
        %v1701 = vcvt.f32.s32 %v1700
        %v1702 = vcvt.f32.s32 %v1696
        %v1703 = vshll.u32 %v1702, 16
        %v1704 = vadd.s32 %v1703, %v1701
        %v1705 = vand.u32 %v758, 65535
        %v1706 = vshra.s32 %v758, 16
        %v1707 = vcvt.s32.f32 %v1705
        %v1708 = vcvt.s32.f32 %v1706
        %1709 = vmin.xlane.f32.xlu0 %v1708
        %v1710 = vpop.xlane.xlu0 %1709
        %vm1711 = vcmp.eq.f32.partialorder %v1708, %v1710
        %v1712 = vsel %vm1711, %v1707, inf
        %1713 = vmin.xlane.f32.xlu0 %v1712
        %v1714 = vpop.xlane.xlu0 %1713
        %v1715 = vcvt.f32.s32 %v1714
        %v1716 = vcvt.f32.s32 %v1710
        %v1717 = vshll.u32 %v1716, 16
        %v1718 = vadd.s32 %v1717, %v1715
        %v1719 = vand.u32 %v759, 65535
        %v1720 = vshra.s32 %v759, 16
        %v1721 = vcvt.s32.f32 %v1719
        %v1722 = vcvt.s32.f32 %v1720
        %1723 = vmin.xlane.f32.xlu0 %v1722
        %v1724 = vpop.xlane.xlu0 %1723
        %vm1725 = vcmp.eq.f32.partialorder %v1722, %v1724
        %v1726 = vsel %vm1725, %v1721, inf
        %1727 = vmin.xlane.f32.xlu0 %v1726
        %v1728 = vpop.xlane.xlu0 %1727
        %v1729 = vcvt.f32.s32 %v1728
        %v1730 = vcvt.f32.s32 %v1724
        %v1731 = vshll.u32 %v1730, 16
        %v1732 = vadd.s32 %v1731, %v1729
        %v1733 = vand.u32 %v760, 65535
        %v1734 = vshra.s32 %v760, 16
        %v1735 = vcvt.s32.f32 %v1733
        %v1736 = vcvt.s32.f32 %v1734
        %1737 = vmin.xlane.f32.xlu0 %v1736
        %v1738 = vpop.xlane.xlu0 %1737
        %vm1739 = vcmp.eq.f32.partialorder %v1736, %v1738
        %v1740 = vsel %vm1739, %v1735, inf
        %1741 = vmin.xlane.f32.xlu0 %v1740
        %v1742 = vpop.xlane.xlu0 %1741
        %v1743 = vcvt.f32.s32 %v1742
        %v1744 = vcvt.f32.s32 %v1738
        %v1745 = vshll.u32 %v1744, 16
        %v1746 = vadd.s32 %v1745, %v1743
        %v1747 = vand.u32 %v761, 65535
        %v1748 = vshra.s32 %v761, 16
        %v1749 = vcvt.s32.f32 %v1747
        %v1750 = vcvt.s32.f32 %v1748
        %1751 = vmin.xlane.f32.xlu0 %v1750
        %v1752 = vpop.xlane.xlu0 %1751
        %vm1753 = vcmp.eq.f32.partialorder %v1750, %v1752
        %v1754 = vsel %vm1753, %v1749, inf
        %1755 = vmin.xlane.f32.xlu0 %v1754
        %v1756 = vpop.xlane.xlu0 %1755
        %v1757 = vcvt.f32.s32 %v1756
        %v1758 = vcvt.f32.s32 %v1752
        %v1759 = vshll.u32 %v1758, 16
        %v1760 = vadd.s32 %v1759, %v1757
        %v1761 = vand.u32 %v762, 65535
        %v1762 = vshra.s32 %v762, 16
        %v1763 = vcvt.s32.f32 %v1761
        %v1764 = vcvt.s32.f32 %v1762
        %1765 = vmin.xlane.f32.xlu0 %v1764
        %v1766 = vpop.xlane.xlu0 %1765
        %vm1767 = vcmp.eq.f32.partialorder %v1764, %v1766
        %v1768 = vsel %vm1767, %v1763, inf
        %1769 = vmin.xlane.f32.xlu0 %v1768
        %v1770 = vpop.xlane.xlu0 %1769
        %v1771 = vcvt.f32.s32 %v1770
        %v1772 = vcvt.f32.s32 %v1766
        %v1773 = vshll.u32 %v1772, 16
        %v1774 = vadd.s32 %v1773, %v1771
        %v1775 = vand.u32 %v763, 65535
        %v1776 = vshra.s32 %v763, 16
        %v1777 = vcvt.s32.f32 %v1775
        %v1778 = vcvt.s32.f32 %v1776
        %1779 = vmin.xlane.f32.xlu0 %v1778
        %v1780 = vpop.xlane.xlu0 %1779
        %vm1781 = vcmp.eq.f32.partialorder %v1778, %v1780
        %v1782 = vsel %vm1781, %v1777, inf
        %1783 = vmin.xlane.f32.xlu0 %v1782
        %v1784 = vpop.xlane.xlu0 %1783
        %v1785 = vcvt.f32.s32 %v1784
        %v1786 = vcvt.f32.s32 %v1780
        %v1787 = vshll.u32 %v1786, 16
        %v1788 = vadd.s32 %v1787, %v1785
        %v1789 = vand.u32 %v764, 65535
        %v1790 = vshra.s32 %v764, 16
        %v1791 = vcvt.s32.f32 %v1789
        %v1792 = vcvt.s32.f32 %v1790
        %1793 = vmin.xlane.f32.xlu0 %v1792
        %v1794 = vpop.xlane.xlu0 %1793
        %vm1795 = vcmp.eq.f32.partialorder %v1792, %v1794
        %v1796 = vsel %vm1795, %v1791, inf
        %1797 = vmin.xlane.f32.xlu0 %v1796
        %v1798 = vpop.xlane.xlu0 %1797
        %v1799 = vcvt.f32.s32 %v1798
        %v1800 = vcvt.f32.s32 %v1794
        %v1801 = vshll.u32 %v1800, 16
        %v1802 = vadd.s32 %v1801, %v1799
        %v1803 = vand.u32 %v765, 65535
        %v1804 = vshra.s32 %v765, 16
        %v1805 = vcvt.s32.f32 %v1803
        %v1806 = vcvt.s32.f32 %v1804
        %1807 = vmin.xlane.f32.xlu0 %v1806
        %v1808 = vpop.xlane.xlu0 %1807
        %vm1809 = vcmp.eq.f32.partialorder %v1806, %v1808
        %v1810 = vsel %vm1809, %v1805, inf
        %1811 = vmin.xlane.f32.xlu0 %v1810
        %v1812 = vpop.xlane.xlu0 %1811
        %v1813 = vcvt.f32.s32 %v1812
        %v1814 = vcvt.f32.s32 %v1808
        %v1815 = vshll.u32 %v1814, 16
        %v1816 = vadd.s32 %v1815, %v1813
        %v1817 = vand.u32 %v766, 65535
        %v1818 = vshra.s32 %v766, 16
        %v1819 = vcvt.s32.f32 %v1817
        %v1820 = vcvt.s32.f32 %v1818
        %1821 = vmin.xlane.f32.xlu0 %v1820
        %v1822 = vpop.xlane.xlu0 %1821
        %vm1823 = vcmp.eq.f32.partialorder %v1820, %v1822
        %v1824 = vsel %vm1823, %v1819, inf
        %1825 = vmin.xlane.f32.xlu0 %v1824
        %v1826 = vpop.xlane.xlu0 %1825
        %v1827 = vcvt.f32.s32 %v1826
        %v1828 = vcvt.f32.s32 %v1822
        %v1829 = vshll.u32 %v1828, 16
        %v1830 = vadd.s32 %v1829, %v1827
        %v1831 = vand.u32 %v767, 65535
        %v1832 = vshra.s32 %v767, 16
        %v1833 = vcvt.s32.f32 %v1831
        %v1834 = vcvt.s32.f32 %v1832
        %1835 = vmin.xlane.f32.xlu0 %v1834
        %v1836 = vpop.xlane.xlu0 %1835
        %vm1837 = vcmp.eq.f32.partialorder %v1834, %v1836
        %v1838 = vsel %vm1837, %v1833, inf
        %1839 = vmin.xlane.f32.xlu0 %v1838
        %v1840 = vpop.xlane.xlu0 %1839
        %v1841 = vcvt.f32.s32 %v1840
        %v1842 = vcvt.f32.s32 %v1836
        %v1843 = vshll.u32 %v1842, 16
        %v1844 = vadd.s32 %v1843, %v1841
        %v1845 = vand.u32 %v768, 65535
        %v1846 = vshra.s32 %v768, 16
        %v1847 = vcvt.s32.f32 %v1845
        %v1848 = vcvt.s32.f32 %v1846
        %1849 = vmin.xlane.f32.xlu0 %v1848
        %v1850 = vpop.xlane.xlu0 %1849
        %vm1851 = vcmp.eq.f32.partialorder %v1848, %v1850
        %v1852 = vsel %vm1851, %v1847, inf
        %1853 = vmin.xlane.f32.xlu0 %v1852
        %v1854 = vpop.xlane.xlu0 %1853
        %v1855 = vcvt.f32.s32 %v1854
        %v1856 = vcvt.f32.s32 %v1850
        %v1857 = vshll.u32 %v1856, 16
        %v1858 = vadd.s32 %v1857, %v1855
        %v1859 = vand.u32 %v769, 65535
        %v1860 = vshra.s32 %v769, 16
        %v1861 = vcvt.s32.f32 %v1859
        %v1862 = vcvt.s32.f32 %v1860
        %1863 = vmin.xlane.f32.xlu0 %v1862
        %v1864 = vpop.xlane.xlu0 %1863
        %vm1865 = vcmp.eq.f32.partialorder %v1862, %v1864
        %v1866 = vsel %vm1865, %v1861, inf
        %1867 = vmin.xlane.f32.xlu0 %v1866
        %v1868 = vpop.xlane.xlu0 %1867
        %v1869 = vcvt.f32.s32 %v1868
        %v1870 = vcvt.f32.s32 %v1864
        %v1871 = vshll.u32 %v1870, 16
        %v1872 = vadd.s32 %v1871, %v1869
        %v1873 = vand.u32 %v770, 65535
        %v1874 = vshra.s32 %v770, 16
        %v1875 = vcvt.s32.f32 %v1873
        %v1876 = vcvt.s32.f32 %v1874
        %1877 = vmin.xlane.f32.xlu0 %v1876
        %v1878 = vpop.xlane.xlu0 %1877
        %vm1879 = vcmp.eq.f32.partialorder %v1876, %v1878
        %v1880 = vsel %vm1879, %v1875, inf
        %1881 = vmin.xlane.f32.xlu0 %v1880
        %v1882 = vpop.xlane.xlu0 %1881
        %v1883 = vcvt.f32.s32 %v1882
        %v1884 = vcvt.f32.s32 %v1878
        %v1885 = vshll.u32 %v1884, 16
        %v1886 = vadd.s32 %v1885, %v1883
        %v1887 = vand.u32 %v771, 65535
        %v1888 = vshra.s32 %v771, 16
        %v1889 = vcvt.s32.f32 %v1887
        %v1890 = vcvt.s32.f32 %v1888
        %1891 = vmin.xlane.f32.xlu0 %v1890
        %v1892 = vpop.xlane.xlu0 %1891
        %vm1893 = vcmp.eq.f32.partialorder %v1890, %v1892
        %v1894 = vsel %vm1893, %v1889, inf
        %1895 = vmin.xlane.f32.xlu0 %v1894
        %v1896 = vpop.xlane.xlu0 %1895
        %v1897 = vcvt.f32.s32 %v1896
        %v1898 = vcvt.f32.s32 %v1892
        %v1899 = vshll.u32 %v1898, 16
        %v1900 = vadd.s32 %v1899, %v1897
        %v1901 = vand.u32 %v772, 65535
        %v1902 = vshra.s32 %v772, 16
        %v1903 = vcvt.s32.f32 %v1901
        %v1904 = vcvt.s32.f32 %v1902
        %1905 = vmin.xlane.f32.xlu0 %v1904
        %v1906 = vpop.xlane.xlu0 %1905
        %vm1907 = vcmp.eq.f32.partialorder %v1904, %v1906
        %v1908 = vsel %vm1907, %v1903, inf
        %1909 = vmin.xlane.f32.xlu0 %v1908
        %v1910 = vpop.xlane.xlu0 %1909
        %v1911 = vcvt.f32.s32 %v1910
        %v1912 = vcvt.f32.s32 %v1906
        %v1913 = vshll.u32 %v1912, 16
        %v1914 = vadd.s32 %v1913, %v1911
        %v1915 = vand.u32 %v773, 65535
        %v1916 = vshra.s32 %v773, 16
        %v1917 = vcvt.s32.f32 %v1915
        %v1918 = vcvt.s32.f32 %v1916
        %1919 = vmin.xlane.f32.xlu0 %v1918
        %v1920 = vpop.xlane.xlu0 %1919
        %vm1921 = vcmp.eq.f32.partialorder %v1918, %v1920
        %v1922 = vsel %vm1921, %v1917, inf
        %1923 = vmin.xlane.f32.xlu0 %v1922
        %v1924 = vpop.xlane.xlu0 %1923
        %v1925 = vcvt.f32.s32 %v1924
        %v1926 = vcvt.f32.s32 %v1920
        %v1927 = vshll.u32 %v1926, 16
        %v1928 = vadd.s32 %v1927, %v1925
        %v1929 = vand.u32 %v774, 65535
        %v1930 = vshra.s32 %v774, 16
        %v1931 = vcvt.s32.f32 %v1929
        %v1932 = vcvt.s32.f32 %v1930
        %1933 = vmin.xlane.f32.xlu0 %v1932
        %v1934 = vpop.xlane.xlu0 %1933
        %vm1935 = vcmp.eq.f32.partialorder %v1932, %v1934
        %v1936 = vsel %vm1935, %v1931, inf
        %1937 = vmin.xlane.f32.xlu0 %v1936
        %v1938 = vpop.xlane.xlu0 %1937
        %v1939 = vcvt.f32.s32 %v1938
        %v1940 = vcvt.f32.s32 %v1934
        %v1941 = vshll.u32 %v1940, 16
        %v1942 = vadd.s32 %v1941, %v1939
        %v1943 = vand.u32 %v775, 65535
        %v1944 = vshra.s32 %v775, 16
        %v1945 = vcvt.s32.f32 %v1943
        %v1946 = vcvt.s32.f32 %v1944
        %1947 = vmin.xlane.f32.xlu0 %v1946
        %v1948 = vpop.xlane.xlu0 %1947
        %vm1949 = vcmp.eq.f32.partialorder %v1946, %v1948
        %v1950 = vsel %vm1949, %v1945, inf
        %1951 = vmin.xlane.f32.xlu0 %v1950
        %v1952 = vpop.xlane.xlu0 %1951
        %v1953 = vcvt.f32.s32 %v1952
        %v1954 = vcvt.f32.s32 %v1948
        %v1955 = vshll.u32 %v1954, 16
        %v1956 = vadd.s32 %v1955, %v1953
        %v1957 = vand.u32 %v776, 65535
        %v1958 = vshra.s32 %v776, 16
        %v1959 = vcvt.s32.f32 %v1957
        %v1960 = vcvt.s32.f32 %v1958
        %1961 = vmin.xlane.f32.xlu0 %v1960
        %v1962 = vpop.xlane.xlu0 %1961
        %vm1963 = vcmp.eq.f32.partialorder %v1960, %v1962
        %v1964 = vsel %vm1963, %v1959, inf
        %1965 = vmin.xlane.f32.xlu0 %v1964
        %v1966 = vpop.xlane.xlu0 %1965
        %v1967 = vcvt.f32.s32 %v1966
        %v1968 = vcvt.f32.s32 %v1962
        %v1969 = vshll.u32 %v1968, 16
        %v1970 = vadd.s32 %v1969, %v1967
        %v1971 = vand.u32 %v777, 65535
        %v1972 = vshra.s32 %v777, 16
        %v1973 = vcvt.s32.f32 %v1971
        %v1974 = vcvt.s32.f32 %v1972
        %1975 = vmin.xlane.f32.xlu0 %v1974
        %v1976 = vpop.xlane.xlu0 %1975
        %vm1977 = vcmp.eq.f32.partialorder %v1974, %v1976
        %v1978 = vsel %vm1977, %v1973, inf
        %1979 = vmin.xlane.f32.xlu0 %v1978
        %v1980 = vpop.xlane.xlu0 %1979
        %v1981 = vcvt.f32.s32 %v1980
        %v1982 = vcvt.f32.s32 %v1976
        %v1983 = vshll.u32 %v1982, 16
        %v1984 = vadd.s32 %v1983, %v1981
        %v1985 = vand.u32 %v778, 65535
        %v1986 = vshra.s32 %v778, 16
        %v1987 = vcvt.s32.f32 %v1985
        %v1988 = vcvt.s32.f32 %v1986
        %1989 = vmin.xlane.f32.xlu0 %v1988
        %v1990 = vpop.xlane.xlu0 %1989
        %vm1991 = vcmp.eq.f32.partialorder %v1988, %v1990
        %v1992 = vsel %vm1991, %v1987, inf
        %1993 = vmin.xlane.f32.xlu0 %v1992
        %v1994 = vpop.xlane.xlu0 %1993
        %v1995 = vcvt.f32.s32 %v1994
        %v1996 = vcvt.f32.s32 %v1990
        %v1997 = vshll.u32 %v1996, 16
        %v1998 = vadd.s32 %v1997, %v1995
        %v1999 = vand.u32 %v779, 65535
        %v2000 = vshra.s32 %v779, 16
        %v2001 = vcvt.s32.f32 %v1999
        %v2002 = vcvt.s32.f32 %v2000
        %2003 = vmin.xlane.f32.xlu0 %v2002
        %v2004 = vpop.xlane.xlu0 %2003
        %vm2005 = vcmp.eq.f32.partialorder %v2002, %v2004
        %v2006 = vsel %vm2005, %v2001, inf
        %2007 = vmin.xlane.f32.xlu0 %v2006
        %v2008 = vpop.xlane.xlu0 %2007
        %v2009 = vcvt.f32.s32 %v2008
        %v2010 = vcvt.f32.s32 %v2004
        %v2011 = vshll.u32 %v2010, 16
        %v2012 = vadd.s32 %v2011, %v2009
        %v2013 = vand.u32 %v780, 65535
        %v2014 = vshra.s32 %v780, 16
        %v2015 = vcvt.s32.f32 %v2013
        %v2016 = vcvt.s32.f32 %v2014
        %2017 = vmin.xlane.f32.xlu0 %v2016
        %v2018 = vpop.xlane.xlu0 %2017
        %vm2019 = vcmp.eq.f32.partialorder %v2016, %v2018
        %v2020 = vsel %vm2019, %v2015, inf
        %2021 = vmin.xlane.f32.xlu0 %v2020
        %v2022 = vpop.xlane.xlu0 %2021
        %v2023 = vcvt.f32.s32 %v2022
        %v2024 = vcvt.f32.s32 %v2018
        %v2025 = vshll.u32 %v2024, 16
        %v2026 = vadd.s32 %v2025, %v2023
        %v2027 = vand.u32 %v781, 65535
        %v2028 = vshra.s32 %v781, 16
        %v2029 = vcvt.s32.f32 %v2027
        %v2030 = vcvt.s32.f32 %v2028
        %2031 = vmin.xlane.f32.xlu0 %v2030
        %v2032 = vpop.xlane.xlu0 %2031
        %vm2033 = vcmp.eq.f32.partialorder %v2030, %v2032
        %v2034 = vsel %vm2033, %v2029, inf
        %2035 = vmin.xlane.f32.xlu0 %v2034
        %v2036 = vpop.xlane.xlu0 %2035
        %v2037 = vcvt.f32.s32 %v2036
        %v2038 = vcvt.f32.s32 %v2032
        %v2039 = vshll.u32 %v2038, 16
        %v2040 = vadd.s32 %v2039, %v2037
        %v2041 = vand.u32 %v782, 65535
        %v2042 = vshra.s32 %v782, 16
        %v2043 = vcvt.s32.f32 %v2041
        %v2044 = vcvt.s32.f32 %v2042
        %2045 = vmin.xlane.f32.xlu0 %v2044
        %v2046 = vpop.xlane.xlu0 %2045
        %vm2047 = vcmp.eq.f32.partialorder %v2044, %v2046
        %v2048 = vsel %vm2047, %v2043, inf
        %2049 = vmin.xlane.f32.xlu0 %v2048
        %v2050 = vpop.xlane.xlu0 %2049
        %v2051 = vcvt.f32.s32 %v2050
        %v2052 = vcvt.f32.s32 %v2046
        %v2053 = vshll.u32 %v2052, 16
        %v2054 = vadd.s32 %v2053, %v2051
        %v2055 = vand.u32 %v783, 65535
        %v2056 = vshra.s32 %v783, 16
        %v2057 = vcvt.s32.f32 %v2055
        %v2058 = vcvt.s32.f32 %v2056
        %2059 = vmin.xlane.f32.xlu0 %v2058
        %v2060 = vpop.xlane.xlu0 %2059
        %vm2061 = vcmp.eq.f32.partialorder %v2058, %v2060
        %v2062 = vsel %vm2061, %v2057, inf
        %2063 = vmin.xlane.f32.xlu0 %v2062
        %v2064 = vpop.xlane.xlu0 %2063
        %v2065 = vcvt.f32.s32 %v2064
        %v2066 = vcvt.f32.s32 %v2060
        %v2067 = vshll.u32 %v2066, 16
        %v2068 = vadd.s32 %v2067, %v2065
        %v2069 = vand.u32 %v784, 65535
        %v2070 = vshra.s32 %v784, 16
        %v2071 = vcvt.s32.f32 %v2069
        %v2072 = vcvt.s32.f32 %v2070
        %2073 = vmin.xlane.f32.xlu0 %v2072
        %v2074 = vpop.xlane.xlu0 %2073
        %vm2075 = vcmp.eq.f32.partialorder %v2072, %v2074
        %v2076 = vsel %vm2075, %v2071, inf
        %2077 = vmin.xlane.f32.xlu0 %v2076
        %v2078 = vpop.xlane.xlu0 %2077
        %v2079 = vcvt.f32.s32 %v2078
        %v2080 = vcvt.f32.s32 %v2074
        %v2081 = vshll.u32 %v2080, 16
        %v2082 = vadd.s32 %v2081, %v2079
        %v2083 = vand.u32 %v785, 65535
        %v2084 = vshra.s32 %v785, 16
        %v2085 = vcvt.s32.f32 %v2083
        %v2086 = vcvt.s32.f32 %v2084
        %2087 = vmin.xlane.f32.xlu0 %v2086
        %v2088 = vpop.xlane.xlu0 %2087
        %vm2089 = vcmp.eq.f32.partialorder %v2086, %v2088
        %v2090 = vsel %vm2089, %v2085, inf
        %2091 = vmin.xlane.f32.xlu0 %v2090
        %v2092 = vpop.xlane.xlu0 %2091
        %v2093 = vcvt.f32.s32 %v2092
        %v2094 = vcvt.f32.s32 %v2088
        %v2095 = vshll.u32 %v2094, 16
        %v2096 = vadd.s32 %v2095, %v2093
        %v2097 = vand.u32 %v786, 65535
        %v2098 = vshra.s32 %v786, 16
        %v2099 = vcvt.s32.f32 %v2097
        %v2100 = vcvt.s32.f32 %v2098
        %2101 = vmin.xlane.f32.xlu0 %v2100
        %v2102 = vpop.xlane.xlu0 %2101
        %vm2103 = vcmp.eq.f32.partialorder %v2100, %v2102
        %v2104 = vsel %vm2103, %v2099, inf
        %2105 = vmin.xlane.f32.xlu0 %v2104
        %v2106 = vpop.xlane.xlu0 %2105
        %v2107 = vcvt.f32.s32 %v2106
        %v2108 = vcvt.f32.s32 %v2102
        %v2109 = vshll.u32 %v2108, 16
        %v2110 = vadd.s32 %v2109, %v2107
        %v2111 = vand.u32 %v787, 65535
        %v2112 = vshra.s32 %v787, 16
        %v2113 = vcvt.s32.f32 %v2111
        %v2114 = vcvt.s32.f32 %v2112
        %2115 = vmin.xlane.f32.xlu0 %v2114
        %v2116 = vpop.xlane.xlu0 %2115
        %vm2117 = vcmp.eq.f32.partialorder %v2114, %v2116
        %v2118 = vsel %vm2117, %v2113, inf
        %2119 = vmin.xlane.f32.xlu0 %v2118
        %v2120 = vpop.xlane.xlu0 %2119
        %v2121 = vcvt.f32.s32 %v2120
        %v2122 = vcvt.f32.s32 %v2116
        %v2123 = vshll.u32 %v2122, 16
        %v2124 = vadd.s32 %v2123, %v2121
        %v2125 = vand.u32 %v788, 65535
        %v2126 = vshra.s32 %v788, 16
        %v2127 = vcvt.s32.f32 %v2125
        %v2128 = vcvt.s32.f32 %v2126
        %2129 = vmin.xlane.f32.xlu0 %v2128
        %v2130 = vpop.xlane.xlu0 %2129
        %vm2131 = vcmp.eq.f32.partialorder %v2128, %v2130
        %v2132 = vsel %vm2131, %v2127, inf
        %2133 = vmin.xlane.f32.xlu0 %v2132
        %v2134 = vpop.xlane.xlu0 %2133
        %v2135 = vcvt.f32.s32 %v2134
        %v2136 = vcvt.f32.s32 %v2130
        %v2137 = vshll.u32 %v2136, 16
        %v2138 = vadd.s32 %v2137, %v2135
        %v2139 = vand.u32 %v789, 65535
        %v2140 = vshra.s32 %v789, 16
        %v2141 = vcvt.s32.f32 %v2139
        %v2142 = vcvt.s32.f32 %v2140
        %2143 = vmin.xlane.f32.xlu0 %v2142
        %v2144 = vpop.xlane.xlu0 %2143
        %vm2145 = vcmp.eq.f32.partialorder %v2142, %v2144
        %v2146 = vsel %vm2145, %v2141, inf
        %2147 = vmin.xlane.f32.xlu0 %v2146
        %v2148 = vpop.xlane.xlu0 %2147
        %v2149 = vcvt.f32.s32 %v2148
        %v2150 = vcvt.f32.s32 %v2144
        %v2151 = vshll.u32 %v2150, 16
        %v2152 = vadd.s32 %v2151, %v2149
        %v2153 = vand.u32 %v790, 65535
        %v2154 = vshra.s32 %v790, 16
        %v2155 = vcvt.s32.f32 %v2153
        %v2156 = vcvt.s32.f32 %v2154
        %2157 = vmin.xlane.f32.xlu0 %v2156
        %v2158 = vpop.xlane.xlu0 %2157
        %vm2159 = vcmp.eq.f32.partialorder %v2156, %v2158
        %v2160 = vsel %vm2159, %v2155, inf
        %2161 = vmin.xlane.f32.xlu0 %v2160
        %v2162 = vpop.xlane.xlu0 %2161
        %v2163 = vcvt.f32.s32 %v2162
        %v2164 = vcvt.f32.s32 %v2158
        %v2165 = vshll.u32 %v2164, 16
        %v2166 = vadd.s32 %v2165, %v2163
        %v2167 = vand.u32 %v791, 65535
        %v2168 = vshra.s32 %v791, 16
        %v2169 = vcvt.s32.f32 %v2167
        %v2170 = vcvt.s32.f32 %v2168
        %2171 = vmin.xlane.f32.xlu0 %v2170
        %v2172 = vpop.xlane.xlu0 %2171
        %vm2173 = vcmp.eq.f32.partialorder %v2170, %v2172
        %v2174 = vsel %vm2173, %v2169, inf
        %2175 = vmin.xlane.f32.xlu0 %v2174
        %v2176 = vpop.xlane.xlu0 %2175
        %v2177 = vcvt.f32.s32 %v2176
        %v2178 = vcvt.f32.s32 %v2172
        %v2179 = vshll.u32 %v2178, 16
        %v2180 = vadd.s32 %v2179, %v2177
        %v2181 = vand.u32 %v792, 65535
        %v2182 = vshra.s32 %v792, 16
        %v2183 = vcvt.s32.f32 %v2181
        %v2184 = vcvt.s32.f32 %v2182
        %2185 = vmin.xlane.f32.xlu0 %v2184
        %v2186 = vpop.xlane.xlu0 %2185
        %vm2187 = vcmp.eq.f32.partialorder %v2184, %v2186
        %v2188 = vsel %vm2187, %v2183, inf
        %2189 = vmin.xlane.f32.xlu0 %v2188
        %v2190 = vpop.xlane.xlu0 %2189
        %v2191 = vcvt.f32.s32 %v2190
        %v2192 = vcvt.f32.s32 %v2186
        %v2193 = vshll.u32 %v2192, 16
        %v2194 = vadd.s32 %v2193, %v2191
        %v2195 = vand.u32 %v793, 65535
        %v2196 = vshra.s32 %v793, 16
        %v2197 = vcvt.s32.f32 %v2195
        %v2198 = vcvt.s32.f32 %v2196
        %2199 = vmin.xlane.f32.xlu0 %v2198
        %v2200 = vpop.xlane.xlu0 %2199
        %vm2201 = vcmp.eq.f32.partialorder %v2198, %v2200
        %v2202 = vsel %vm2201, %v2197, inf
        %2203 = vmin.xlane.f32.xlu0 %v2202
        %v2204 = vpop.xlane.xlu0 %2203
        %v2205 = vcvt.f32.s32 %v2204
        %v2206 = vcvt.f32.s32 %v2200
        %v2207 = vshll.u32 %v2206, 16
        %v2208 = vadd.s32 %v2207, %v2205
        %v2209 = vand.u32 %v794, 65535
        %v2210 = vshra.s32 %v794, 16
        %v2211 = vcvt.s32.f32 %v2209
        %v2212 = vcvt.s32.f32 %v2210
        %2213 = vmin.xlane.f32.xlu0 %v2212
        %v2214 = vpop.xlane.xlu0 %2213
        %vm2215 = vcmp.eq.f32.partialorder %v2212, %v2214
        %v2216 = vsel %vm2215, %v2211, inf
        %2217 = vmin.xlane.f32.xlu0 %v2216
        %v2218 = vpop.xlane.xlu0 %2217
        %v2219 = vcvt.f32.s32 %v2218
        %v2220 = vcvt.f32.s32 %v2214
        %v2221 = vshll.u32 %v2220, 16
        %v2222 = vadd.s32 %v2221, %v2219
        %v2223 = vand.u32 %v795, 65535
        %v2224 = vshra.s32 %v795, 16
        %v2225 = vcvt.s32.f32 %v2223
        %v2226 = vcvt.s32.f32 %v2224
        %2227 = vmin.xlane.f32.xlu0 %v2226
        %v2228 = vpop.xlane.xlu0 %2227
        %vm2229 = vcmp.eq.f32.partialorder %v2226, %v2228
        %v2230 = vsel %vm2229, %v2225, inf
        %2231 = vmin.xlane.f32.xlu0 %v2230
        %v2232 = vpop.xlane.xlu0 %2231
        %v2233 = vcvt.f32.s32 %v2232
        %v2234 = vcvt.f32.s32 %v2228
        %v2235 = vshll.u32 %v2234, 16
        %v2236 = vadd.s32 %v2235, %v2233
        %v2237 = vand.u32 %v796, 65535
        %v2238 = vshra.s32 %v796, 16
        %v2239 = vcvt.s32.f32 %v2237
        %v2240 = vcvt.s32.f32 %v2238
        %2241 = vmin.xlane.f32.xlu0 %v2240
        %v2242 = vpop.xlane.xlu0 %2241
        %vm2243 = vcmp.eq.f32.partialorder %v2240, %v2242
        %v2244 = vsel %vm2243, %v2239, inf
        %2245 = vmin.xlane.f32.xlu0 %v2244
        %v2246 = vpop.xlane.xlu0 %2245
        %v2247 = vcvt.f32.s32 %v2246
        %v2248 = vcvt.f32.s32 %v2242
        %v2249 = vshll.u32 %v2248, 16
        %v2250 = vadd.s32 %v2249, %v2247
        %v2251 = vand.u32 %v797, 65535
        %v2252 = vshra.s32 %v797, 16
        %v2253 = vcvt.s32.f32 %v2251
        %v2254 = vcvt.s32.f32 %v2252
        %2255 = vmin.xlane.f32.xlu0 %v2254
        %v2256 = vpop.xlane.xlu0 %2255
        %vm2257 = vcmp.eq.f32.partialorder %v2254, %v2256
        %v2258 = vsel %vm2257, %v2253, inf
        %2259 = vmin.xlane.f32.xlu0 %v2258
        %v2260 = vpop.xlane.xlu0 %2259
        %v2261 = vcvt.f32.s32 %v2260
        %v2262 = vcvt.f32.s32 %v2256
        %v2263 = vshll.u32 %v2262, 16
        %v2264 = vadd.s32 %v2263, %v2261
        %v2265 = vand.u32 %v798, 65535
        %v2266 = vshra.s32 %v798, 16
        %v2267 = vcvt.s32.f32 %v2265
        %v2268 = vcvt.s32.f32 %v2266
        %2269 = vmin.xlane.f32.xlu0 %v2268
        %v2270 = vpop.xlane.xlu0 %2269
        %vm2271 = vcmp.eq.f32.partialorder %v2268, %v2270
        %v2272 = vsel %vm2271, %v2267, inf
        %2273 = vmin.xlane.f32.xlu0 %v2272
        %v2274 = vpop.xlane.xlu0 %2273
        %v2275 = vcvt.f32.s32 %v2274
        %v2276 = vcvt.f32.s32 %v2270
        %v2277 = vshll.u32 %v2276, 16
        %v2278 = vadd.s32 %v2277, %v2275
        %v2279 = vand.u32 %v799, 65535
        %v2280 = vshra.s32 %v799, 16
        %v2281 = vcvt.s32.f32 %v2279
        %v2282 = vcvt.s32.f32 %v2280
        %2283 = vmin.xlane.f32.xlu0 %v2282
        %v2284 = vpop.xlane.xlu0 %2283
        %vm2285 = vcmp.eq.f32.partialorder %v2282, %v2284
        %v2286 = vsel %vm2285, %v2281, inf
        %2287 = vmin.xlane.f32.xlu0 %v2286
        %v2288 = vpop.xlane.xlu0 %2287
        %v2289 = vcvt.f32.s32 %v2288
        %v2290 = vcvt.f32.s32 %v2284
        %v2291 = vshll.u32 %v2290, 16
        %v2292 = vadd.s32 %v2291, %v2289
        %v2293 = vand.u32 %v800, 65535
        %v2294 = vshra.s32 %v800, 16
        %v2295 = vcvt.s32.f32 %v2293
        %v2296 = vcvt.s32.f32 %v2294
        %2297 = vmin.xlane.f32.xlu0 %v2296
        %v2298 = vpop.xlane.xlu0 %2297
        %vm2299 = vcmp.eq.f32.partialorder %v2296, %v2298
        %v2300 = vsel %vm2299, %v2295, inf
        %2301 = vmin.xlane.f32.xlu0 %v2300
        %v2302 = vpop.xlane.xlu0 %2301
        %v2303 = vcvt.f32.s32 %v2302
        %v2304 = vcvt.f32.s32 %v2298
        %v2305 = vshll.u32 %v2304, 16
        %v2306 = vadd.s32 %v2305, %v2303
        %v2307 = vand.u32 %v801, 65535
        %v2308 = vshra.s32 %v801, 16
        %v2309 = vcvt.s32.f32 %v2307
        %v2310 = vcvt.s32.f32 %v2308
        %2311 = vmin.xlane.f32.xlu0 %v2310
        %v2312 = vpop.xlane.xlu0 %2311
        %vm2313 = vcmp.eq.f32.partialorder %v2310, %v2312
        %v2314 = vsel %vm2313, %v2309, inf
        %2315 = vmin.xlane.f32.xlu0 %v2314
        %v2316 = vpop.xlane.xlu0 %2315
        %v2317 = vcvt.f32.s32 %v2316
        %v2318 = vcvt.f32.s32 %v2312
        %v2319 = vshll.u32 %v2318, 16
        %v2320 = vadd.s32 %v2319, %v2317
        %v2321 = vand.u32 %v802, 65535
        %v2322 = vshra.s32 %v802, 16
        %v2323 = vcvt.s32.f32 %v2321
        %v2324 = vcvt.s32.f32 %v2322
        %2325 = vmin.xlane.f32.xlu0 %v2324
        %v2326 = vpop.xlane.xlu0 %2325
        %vm2327 = vcmp.eq.f32.partialorder %v2324, %v2326
        %v2328 = vsel %vm2327, %v2323, inf
        %2329 = vmin.xlane.f32.xlu0 %v2328
        %v2330 = vpop.xlane.xlu0 %2329
        %v2331 = vcvt.f32.s32 %v2330
        %v2332 = vcvt.f32.s32 %v2326
        %v2333 = vshll.u32 %v2332, 16
        %v2334 = vadd.s32 %v2333, %v2331
        %v2335 = vand.u32 %v803, 65535
        %v2336 = vshra.s32 %v803, 16
        %v2337 = vcvt.s32.f32 %v2335
        %v2338 = vcvt.s32.f32 %v2336
        %2339 = vmin.xlane.f32.xlu0 %v2338
        %v2340 = vpop.xlane.xlu0 %2339
        %vm2341 = vcmp.eq.f32.partialorder %v2338, %v2340
        %v2342 = vsel %vm2341, %v2337, inf
        %2343 = vmin.xlane.f32.xlu0 %v2342
        %v2344 = vpop.xlane.xlu0 %2343
        %v2345 = vcvt.f32.s32 %v2344
        %v2346 = vcvt.f32.s32 %v2340
        %v2347 = vshll.u32 %v2346, 16
        %v2348 = vadd.s32 %v2347, %v2345
        %v2349 = vand.u32 %v804, 65535
        %v2350 = vshra.s32 %v804, 16
        %v2351 = vcvt.s32.f32 %v2349
        %v2352 = vcvt.s32.f32 %v2350
        %2353 = vmin.xlane.f32.xlu0 %v2352
        %v2354 = vpop.xlane.xlu0 %2353
        %vm2355 = vcmp.eq.f32.partialorder %v2352, %v2354
        %v2356 = vsel %vm2355, %v2351, inf
        %2357 = vmin.xlane.f32.xlu0 %v2356
        %v2358 = vpop.xlane.xlu0 %2357
        %v2359 = vcvt.f32.s32 %v2358
        %v2360 = vcvt.f32.s32 %v2354
        %v2361 = vshll.u32 %v2360, 16
        %v2362 = vadd.s32 %v2361, %v2359
        %v2363 = vand.u32 %v805, 65535
        %v2364 = vshra.s32 %v805, 16
        %v2365 = vcvt.s32.f32 %v2363
        %v2366 = vcvt.s32.f32 %v2364
        %2367 = vmin.xlane.f32.xlu0 %v2366
        %v2368 = vpop.xlane.xlu0 %2367
        %vm2369 = vcmp.eq.f32.partialorder %v2366, %v2368
        %v2370 = vsel %vm2369, %v2365, inf
        %2371 = vmin.xlane.f32.xlu0 %v2370
        %v2372 = vpop.xlane.xlu0 %2371
        %v2373 = vcvt.f32.s32 %v2372
        %v2374 = vcvt.f32.s32 %v2368
        %v2375 = vshll.u32 %v2374, 16
        %v2376 = vadd.s32 %v2375, %v2373
        %v2377 = vand.u32 %v806, 65535
        %v2378 = vshra.s32 %v806, 16
        %v2379 = vcvt.s32.f32 %v2377
        %v2380 = vcvt.s32.f32 %v2378
        %2381 = vmin.xlane.f32.xlu0 %v2380
        %v2382 = vpop.xlane.xlu0 %2381
        %vm2383 = vcmp.eq.f32.partialorder %v2380, %v2382
        %v2384 = vsel %vm2383, %v2379, inf
        %2385 = vmin.xlane.f32.xlu0 %v2384
        %v2386 = vpop.xlane.xlu0 %2385
        %v2387 = vcvt.f32.s32 %v2386
        %v2388 = vcvt.f32.s32 %v2382
        %v2389 = vshll.u32 %v2388, 16
        %v2390 = vadd.s32 %v2389, %v2387
        %v2391 = vand.u32 %v807, 65535
        %v2392 = vshra.s32 %v807, 16
        %v2393 = vcvt.s32.f32 %v2391
        %v2394 = vcvt.s32.f32 %v2392
        %2395 = vmin.xlane.f32.xlu0 %v2394
        %v2396 = vpop.xlane.xlu0 %2395
        %vm2397 = vcmp.eq.f32.partialorder %v2394, %v2396
        %v2398 = vsel %vm2397, %v2393, inf
        %2399 = vmin.xlane.f32.xlu0 %v2398
        %v2400 = vpop.xlane.xlu0 %2399
        %v2401 = vcvt.f32.s32 %v2400
        %v2402 = vcvt.f32.s32 %v2396
        %v2403 = vshll.u32 %v2402, 16
        %v2404 = vadd.s32 %v2403, %v2401
        %v2405 = vand.u32 %v808, 65535
        %v2406 = vshra.s32 %v808, 16
        %v2407 = vcvt.s32.f32 %v2405
        %v2408 = vcvt.s32.f32 %v2406
        %2409 = vmin.xlane.f32.xlu0 %v2408
        %v2410 = vpop.xlane.xlu0 %2409
        %vm2411 = vcmp.eq.f32.partialorder %v2408, %v2410
        %v2412 = vsel %vm2411, %v2407, inf
        %2413 = vmin.xlane.f32.xlu0 %v2412
        %v2414 = vpop.xlane.xlu0 %2413
        %v2415 = vcvt.f32.s32 %v2414
        %v2416 = vcvt.f32.s32 %v2410
        %v2417 = vshll.u32 %v2416, 16
        %v2418 = vadd.s32 %v2417, %v2415
        %v2419 = vand.u32 %v809, 65535
        %v2420 = vshra.s32 %v809, 16
        %v2421 = vcvt.s32.f32 %v2419
        %v2422 = vcvt.s32.f32 %v2420
        %2423 = vmin.xlane.f32.xlu0 %v2422
        %v2424 = vpop.xlane.xlu0 %2423
        %vm2425 = vcmp.eq.f32.partialorder %v2422, %v2424
        %v2426 = vsel %vm2425, %v2421, inf
        %2427 = vmin.xlane.f32.xlu0 %v2426
        %v2428 = vpop.xlane.xlu0 %2427
        %v2429 = vcvt.f32.s32 %v2428
        %v2430 = vcvt.f32.s32 %v2424
        %v2431 = vshll.u32 %v2430, 16
        %v2432 = vadd.s32 %v2431, %v2429
        %v2433 = vand.u32 %v810, 65535
        %v2434 = vshra.s32 %v810, 16
        %v2435 = vcvt.s32.f32 %v2433
        %v2436 = vcvt.s32.f32 %v2434
        %2437 = vmin.xlane.f32.xlu0 %v2436
        %v2438 = vpop.xlane.xlu0 %2437
        %vm2439 = vcmp.eq.f32.partialorder %v2436, %v2438
        %v2440 = vsel %vm2439, %v2435, inf
        %2441 = vmin.xlane.f32.xlu0 %v2440
        %v2442 = vpop.xlane.xlu0 %2441
        %v2443 = vcvt.f32.s32 %v2442
        %v2444 = vcvt.f32.s32 %v2438
        %v2445 = vshll.u32 %v2444, 16
        %v2446 = vadd.s32 %v2445, %v2443
        %v2447 = vand.u32 %v811, 65535
        %v2448 = vshra.s32 %v811, 16
        %v2449 = vcvt.s32.f32 %v2447
        %v2450 = vcvt.s32.f32 %v2448
        %2451 = vmin.xlane.f32.xlu0 %v2450
        %v2452 = vpop.xlane.xlu0 %2451
        %vm2453 = vcmp.eq.f32.partialorder %v2450, %v2452
        %v2454 = vsel %vm2453, %v2449, inf
        %2455 = vmin.xlane.f32.xlu0 %v2454
        %v2456 = vpop.xlane.xlu0 %2455
        %v2457 = vcvt.f32.s32 %v2456
        %v2458 = vcvt.f32.s32 %v2452
        %v2459 = vshll.u32 %v2458, 16
        %v2460 = vadd.s32 %v2459, %v2457
        %v2461 = vand.u32 %v812, 65535
        %v2462 = vshra.s32 %v812, 16
        %v2463 = vcvt.s32.f32 %v2461
        %v2464 = vcvt.s32.f32 %v2462
        %2465 = vmin.xlane.f32.xlu0 %v2464
        %v2466 = vpop.xlane.xlu0 %2465
        %vm2467 = vcmp.eq.f32.partialorder %v2464, %v2466
        %v2468 = vsel %vm2467, %v2463, inf
        %2469 = vmin.xlane.f32.xlu0 %v2468
        %v2470 = vpop.xlane.xlu0 %2469
        %v2471 = vcvt.f32.s32 %v2470
        %v2472 = vcvt.f32.s32 %v2466
        %v2473 = vshll.u32 %v2472, 16
        %v2474 = vadd.s32 %v2473, %v2471
        %v2475 = vand.u32 %v813, 65535
        %v2476 = vshra.s32 %v813, 16
        %v2477 = vcvt.s32.f32 %v2475
        %v2478 = vcvt.s32.f32 %v2476
        %2479 = vmin.xlane.f32.xlu0 %v2478
        %v2480 = vpop.xlane.xlu0 %2479
        %vm2481 = vcmp.eq.f32.partialorder %v2478, %v2480
        %v2482 = vsel %vm2481, %v2477, inf
        %2483 = vmin.xlane.f32.xlu0 %v2482
        %v2484 = vpop.xlane.xlu0 %2483
        %v2485 = vcvt.f32.s32 %v2484
        %v2486 = vcvt.f32.s32 %v2480
        %v2487 = vshll.u32 %v2486, 16
        %v2488 = vadd.s32 %v2487, %v2485
        %v2489 = vand.u32 %v814, 65535
        %v2490 = vshra.s32 %v814, 16
        %v2491 = vcvt.s32.f32 %v2489
        %v2492 = vcvt.s32.f32 %v2490
        %2493 = vmin.xlane.f32.xlu0 %v2492
        %v2494 = vpop.xlane.xlu0 %2493
        %vm2495 = vcmp.eq.f32.partialorder %v2492, %v2494
        %v2496 = vsel %vm2495, %v2491, inf
        %2497 = vmin.xlane.f32.xlu0 %v2496
        %v2498 = vpop.xlane.xlu0 %2497
        %v2499 = vcvt.f32.s32 %v2498
        %v2500 = vcvt.f32.s32 %v2494
        %v2501 = vshll.u32 %v2500, 16
        %v2502 = vadd.s32 %v2501, %v2499
        %v2503 = vand.u32 %v815, 65535
        %v2504 = vshra.s32 %v815, 16
        %v2505 = vcvt.s32.f32 %v2503
        %v2506 = vcvt.s32.f32 %v2504
        %2507 = vmin.xlane.f32.xlu0 %v2506
        %v2508 = vpop.xlane.xlu0 %2507
        %vm2509 = vcmp.eq.f32.partialorder %v2506, %v2508
        %v2510 = vsel %vm2509, %v2505, inf
        %2511 = vmin.xlane.f32.xlu0 %v2510
        %v2512 = vpop.xlane.xlu0 %2511
        %v2513 = vcvt.f32.s32 %v2512
        %v2514 = vcvt.f32.s32 %v2508
        %v2515 = vshll.u32 %v2514, 16
        %v2516 = vadd.s32 %v2515, %v2513
        %v2517 = vand.u32 %v816, 65535
        %v2518 = vshra.s32 %v816, 16
        %v2519 = vcvt.s32.f32 %v2517
        %v2520 = vcvt.s32.f32 %v2518
        %2521 = vmin.xlane.f32.xlu0 %v2520
        %v2522 = vpop.xlane.xlu0 %2521
        %vm2523 = vcmp.eq.f32.partialorder %v2520, %v2522
        %v2524 = vsel %vm2523, %v2519, inf
        %2525 = vmin.xlane.f32.xlu0 %v2524
        %v2526 = vpop.xlane.xlu0 %2525
        %v2527 = vcvt.f32.s32 %v2526
        %v2528 = vcvt.f32.s32 %v2522
        %v2529 = vshll.u32 %v2528, 16
        %v2530 = vadd.s32 %v2529, %v2527
        %v2531 = vand.u32 %v817, 65535
        %v2532 = vshra.s32 %v817, 16
        %v2533 = vcvt.s32.f32 %v2531
        %v2534 = vcvt.s32.f32 %v2532
        %2535 = vmin.xlane.f32.xlu0 %v2534
        %v2536 = vpop.xlane.xlu0 %2535
        %vm2537 = vcmp.eq.f32.partialorder %v2534, %v2536
        %v2538 = vsel %vm2537, %v2533, inf
        %2539 = vmin.xlane.f32.xlu0 %v2538
        %v2540 = vpop.xlane.xlu0 %2539
        %v2541 = vcvt.f32.s32 %v2540
        %v2542 = vcvt.f32.s32 %v2536
        %v2543 = vshll.u32 %v2542, 16
        %v2544 = vadd.s32 %v2543, %v2541
        %v2545 = vand.u32 %v818, 65535
        %v2546 = vshra.s32 %v818, 16
        %v2547 = vcvt.s32.f32 %v2545
        %v2548 = vcvt.s32.f32 %v2546
        %2549 = vmin.xlane.f32.xlu0 %v2548
        %v2550 = vpop.xlane.xlu0 %2549
        %vm2551 = vcmp.eq.f32.partialorder %v2548, %v2550
        %v2552 = vsel %vm2551, %v2547, inf
        %2553 = vmin.xlane.f32.xlu0 %v2552
        %v2554 = vpop.xlane.xlu0 %2553
        %v2555 = vcvt.f32.s32 %v2554
        %v2556 = vcvt.f32.s32 %v2550
        %v2557 = vshll.u32 %v2556, 16
        %v2558 = vadd.s32 %v2557, %v2555
        %v2559 = vand.u32 %v819, 65535
        %v2560 = vshra.s32 %v819, 16
        %v2561 = vcvt.s32.f32 %v2559
        %v2562 = vcvt.s32.f32 %v2560
        %2563 = vmin.xlane.f32.xlu0 %v2562
        %v2564 = vpop.xlane.xlu0 %2563
        %vm2565 = vcmp.eq.f32.partialorder %v2562, %v2564
        %v2566 = vsel %vm2565, %v2561, inf
        %2567 = vmin.xlane.f32.xlu0 %v2566
        %v2568 = vpop.xlane.xlu0 %2567
        %v2569 = vcvt.f32.s32 %v2568
        %v2570 = vcvt.f32.s32 %v2564
        %v2571 = vshll.u32 %v2570, 16
        %v2572 = vadd.s32 %v2571, %v2569
        %v2573 = vand.u32 %v820, 65535
        %v2574 = vshra.s32 %v820, 16
        %v2575 = vcvt.s32.f32 %v2573
        %v2576 = vcvt.s32.f32 %v2574
        %2577 = vmin.xlane.f32.xlu0 %v2576
        %v2578 = vpop.xlane.xlu0 %2577
        %vm2579 = vcmp.eq.f32.partialorder %v2576, %v2578
        %v2580 = vsel %vm2579, %v2575, inf
        %2581 = vmin.xlane.f32.xlu0 %v2580
        %v2582 = vpop.xlane.xlu0 %2581
        %v2583 = vcvt.f32.s32 %v2582
        %v2584 = vcvt.f32.s32 %v2578
        %v2585 = vshll.u32 %v2584, 16
        %v2586 = vadd.s32 %v2585, %v2583
        %v2587 = vand.u32 %v821, 65535
        %v2588 = vshra.s32 %v821, 16
        %v2589 = vcvt.s32.f32 %v2587
        %v2590 = vcvt.s32.f32 %v2588
        %2591 = vmin.xlane.f32.xlu0 %v2590
        %v2592 = vpop.xlane.xlu0 %2591
        %vm2593 = vcmp.eq.f32.partialorder %v2590, %v2592
        %v2594 = vsel %vm2593, %v2589, inf
        %2595 = vmin.xlane.f32.xlu0 %v2594
        %v2596 = vpop.xlane.xlu0 %2595
        %v2597 = vcvt.f32.s32 %v2596
        %v2598 = vcvt.f32.s32 %v2592
        %v2599 = vshll.u32 %v2598, 16
        %v2600 = vadd.s32 %v2599, %v2597
        %v2601 = vand.u32 %v822, 65535
        %v2602 = vshra.s32 %v822, 16
        %v2603 = vcvt.s32.f32 %v2601
        %v2604 = vcvt.s32.f32 %v2602
        %2605 = vmin.xlane.f32.xlu0 %v2604
        %v2606 = vpop.xlane.xlu0 %2605
        %vm2607 = vcmp.eq.f32.partialorder %v2604, %v2606
        %v2608 = vsel %vm2607, %v2603, inf
        %2609 = vmin.xlane.f32.xlu0 %v2608
        %v2610 = vpop.xlane.xlu0 %2609
        %v2611 = vcvt.f32.s32 %v2610
        %v2612 = vcvt.f32.s32 %v2606
        %v2613 = vshll.u32 %v2612, 16
        %v2614 = vadd.s32 %v2613, %v2611
        %v2615 = vlaneseq
        %v2616 = vshrl.u32 %v2615, 7
        %vm2617 = vcmp.eq.s32.totalorder %v2616, 0
        %s2618 = sld [smem:[#allocation3 + %s180]]
        %v2619 = vstv %s2618
        %v2620 = vsel %vm2617, %v2619, 0
        %vm2621 = vcmp.eq.s32.totalorder %v2616, 1
        %s2622 = sadd.s32 %s180, 1
        %s2623 = sld [smem:[#allocation3 + %s2622]]
        %v2624 = vstv %s2623
        %v2625 = vsel %vm2621, %v2624, %v2620
        %vm2626 = vcmp.eq.s32.totalorder %v2616, 2
        %s2627 = sadd.s32 %s180, 2
        %s2628 = sld [smem:[#allocation3 + %s2627]]
        %v2629 = vstv %s2628
        %v2630 = vsel %vm2626, %v2629, %v2625
        %vm2631 = vcmp.eq.s32.totalorder %v2616, 3
        %s2632 = sadd.s32 %s180, 3
        %s2633 = sld [smem:[#allocation3 + %s2632]]
        %v2634 = vstv %s2633
        %v2635 = vsel %vm2631, %v2634, %v2630
        %vm2636 = vcmp.eq.s32.totalorder %v2616, 4
        %s2637 = sadd.s32 %s180, 4
        %s2638 = sld [smem:[#allocation3 + %s2637]]
        %v2639 = vstv %s2638
        %v2640 = vsel %vm2636, %v2639, %v2635
        %vm2641 = vcmp.eq.s32.totalorder %v2616, 5
        %s2642 = sadd.s32 %s180, 5
        %s2643 = sld [smem:[#allocation3 + %s2642]]
        %v2644 = vstv %s2643
        %v2645 = vsel %vm2641, %v2644, %v2640
        %vm2646 = vcmp.eq.s32.totalorder %v2616, 6
        %s2647 = sadd.s32 %s180, 6
        %s2648 = sld [smem:[#allocation3 + %s2647]]
        %v2649 = vstv %s2648
        %v2650 = vsel %vm2646, %v2649, %v2645
        %vm2651 = vcmp.eq.s32.totalorder %v2616, 7
        %s2652 = sadd.s32 %s180, 7
        %s2653 = sld [smem:[#allocation3 + %s2652]]
        %v2654 = vstv %s2653
        %v2655 = vsel %vm2651, %v2654, %v2650
        %vm2656 = vcmp.lt.s32.totalorder %v566, %v2655
        %v2657 = vlaneseq
        %v2658 = vshrl.u32 %v2657, 7
        %v2659 = vsub.s32 %v566, %v2658
        %v2660 = vrot.slane %v836, %v2659
        %v2661 = vadd.s32 %v566, 4294967288
        %v2662 = vlaneseq
        %v2663 = vshrl.u32 %v2662, 7
        %v2664 = vsub.s32 %v2661, %v2663
        %v2665 = vrot.slane %v850, %v2664
        %vm2666 = vcmask 130112
        %v2667 = vsel %vm2666, %v2665, %v2660
        %v2668 = vadd.s32 %v566, 4294967280
        %v2669 = vlaneseq
        %v2670 = vshrl.u32 %v2669, 7
        %v2671 = vsub.s32 %v2668, %v2670
        %v2672 = vrot.slane %v864, %v2671
        %vm2673 = vcmask 195712
        %v2674 = vsel %vm2673, %v2672, %v2667
        %v2675 = vadd.s32 %v566, 4294967272
        %v2676 = vlaneseq
        %v2677 = vshrl.u32 %v2676, 7
        %v2678 = vsub.s32 %v2675, %v2677
        %v2679 = vrot.slane %v878, %v2678
        %vm2680 = vcmask 261312
        %v2681 = vsel %vm2680, %v2679, %v2674
        %v2682 = vadd.s32 %v566, 4294967264
        %v2683 = vlaneseq
        %v2684 = vshrl.u32 %v2683, 7
        %v2685 = vsub.s32 %v2682, %v2684
        %v2686 = vrot.slane %v892, %v2685
        %vm2687 = vcmask 326912
        %v2688 = vsel %vm2687, %v2686, %v2681
        %v2689 = vadd.s32 %v566, 4294967256
        %v2690 = vlaneseq
        %v2691 = vshrl.u32 %v2690, 7
        %v2692 = vsub.s32 %v2689, %v2691
        %v2693 = vrot.slane %v906, %v2692
        %vm2694 = vcmask 392512
        %v2695 = vsel %vm2694, %v2693, %v2688
        %v2696 = vadd.s32 %v566, 4294967248
        %v2697 = vlaneseq
        %v2698 = vshrl.u32 %v2697, 7
        %v2699 = vsub.s32 %v2696, %v2698
        %v2700 = vrot.slane %v920, %v2699
        %vm2701 = vcmask 458112
        %v2702 = vsel %vm2701, %v2700, %v2695
        %v2703 = vadd.s32 %v566, 4294967240
        %v2704 = vlaneseq
        %v2705 = vshrl.u32 %v2704, 7
        %v2706 = vsub.s32 %v2703, %v2705
        %v2707 = vrot.slane %v934, %v2706
        %vm2708 = vcmask 523712
        %v2709 = vsel %vm2708, %v2707, %v2702
        %v2710 = vadd.s32 %v566, 4294967232
        %v2711 = vlaneseq
        %v2712 = vshrl.u32 %v2711, 7
        %v2713 = vsub.s32 %v2710, %v2712
        %v2714 = vrot.slane %v948, %v2713
        %vm2715 = vcmask 589312
        %v2716 = vsel %vm2715, %v2714, %v2709
        %v2717 = vadd.s32 %v566, 4294967224
        %v2718 = vlaneseq
        %v2719 = vshrl.u32 %v2718, 7
        %v2720 = vsub.s32 %v2717, %v2719
        %v2721 = vrot.slane %v962, %v2720
        %vm2722 = vcmask 654912
        %v2723 = vsel %vm2722, %v2721, %v2716
        %v2724 = vadd.s32 %v566, 4294967216
        %v2725 = vlaneseq
        %v2726 = vshrl.u32 %v2725, 7
        %v2727 = vsub.s32 %v2724, %v2726
        %v2728 = vrot.slane %v976, %v2727
        %vm2729 = vcmask 720512
        %v2730 = vsel %vm2729, %v2728, %v2723
        %v2731 = vadd.s32 %v566, 4294967208
        %v2732 = vlaneseq
        %v2733 = vshrl.u32 %v2732, 7
        %v2734 = vsub.s32 %v2731, %v2733
        %v2735 = vrot.slane %v990, %v2734
        %vm2736 = vcmask 786112
        %v2737 = vsel %vm2736, %v2735, %v2730
        %v2738 = vadd.s32 %v566, 4294967200
        %v2739 = vlaneseq
        %v2740 = vshrl.u32 %v2739, 7
        %v2741 = vsub.s32 %v2738, %v2740
        %v2742 = vrot.slane %v1004, %v2741
        %vm2743 = vcmask 851712
        %v2744 = vsel %vm2743, %v2742, %v2737
        %v2745 = vadd.s32 %v566, 4294967192
        %v2746 = vlaneseq
        %v2747 = vshrl.u32 %v2746, 7
        %v2748 = vsub.s32 %v2745, %v2747
        %v2749 = vrot.slane %v1018, %v2748
        %vm2750 = vcmask 917312
        %v2751 = vsel %vm2750, %v2749, %v2744
        %v2752 = vadd.s32 %v566, 4294967184
        %v2753 = vlaneseq
        %v2754 = vshrl.u32 %v2753, 7
        %v2755 = vsub.s32 %v2752, %v2754
        %v2756 = vrot.slane %v1032, %v2755
        %vm2757 = vcmask 982912
        %v2758 = vsel %vm2757, %v2756, %v2751
        %v2759 = vadd.s32 %v566, 4294967176
        %v2760 = vlaneseq
        %v2761 = vshrl.u32 %v2760, 7
        %v2762 = vsub.s32 %v2759, %v2761
        %v2763 = vrot.slane %v1046, %v2762
        %vm2764 = vcmask 1048512
        %v2765 = vsel %vm2764, %v2763, %v2758
        %v2766 = vlaneseq
        %v2767 = vshrl.u32 %v2766, 7
        %v2768 = vsub.s32 %v566, %v2767
        %v2769 = vrot.slane %v1060, %v2768
        %v2770 = vlaneseq
        %v2771 = vshrl.u32 %v2770, 7
        %v2772 = vsub.s32 %v2661, %v2771
        %v2773 = vrot.slane %v1074, %v2772
        %v2774 = vsel %vm2666, %v2773, %v2769
        %v2775 = vlaneseq
        %v2776 = vshrl.u32 %v2775, 7
        %v2777 = vsub.s32 %v2668, %v2776
        %v2778 = vrot.slane %v1088, %v2777
        %v2779 = vsel %vm2673, %v2778, %v2774
        %v2780 = vlaneseq
        %v2781 = vshrl.u32 %v2780, 7
        %v2782 = vsub.s32 %v2675, %v2781
        %v2783 = vrot.slane %v1102, %v2782
        %v2784 = vsel %vm2680, %v2783, %v2779
        %v2785 = vlaneseq
        %v2786 = vshrl.u32 %v2785, 7
        %v2787 = vsub.s32 %v2682, %v2786
        %v2788 = vrot.slane %v1116, %v2787
        %v2789 = vsel %vm2687, %v2788, %v2784
        %v2790 = vlaneseq
        %v2791 = vshrl.u32 %v2790, 7
        %v2792 = vsub.s32 %v2689, %v2791
        %v2793 = vrot.slane %v1130, %v2792
        %v2794 = vsel %vm2694, %v2793, %v2789
        %v2795 = vlaneseq
        %v2796 = vshrl.u32 %v2795, 7
        %v2797 = vsub.s32 %v2696, %v2796
        %v2798 = vrot.slane %v1144, %v2797
        %v2799 = vsel %vm2701, %v2798, %v2794
        %v2800 = vlaneseq
        %v2801 = vshrl.u32 %v2800, 7
        %v2802 = vsub.s32 %v2703, %v2801
        %v2803 = vrot.slane %v1158, %v2802
        %v2804 = vsel %vm2708, %v2803, %v2799
        %v2805 = vlaneseq
        %v2806 = vshrl.u32 %v2805, 7
        %v2807 = vsub.s32 %v2710, %v2806
        %v2808 = vrot.slane %v1172, %v2807
        %v2809 = vsel %vm2715, %v2808, %v2804
        %v2810 = vlaneseq
        %v2811 = vshrl.u32 %v2810, 7
        %v2812 = vsub.s32 %v2717, %v2811
        %v2813 = vrot.slane %v1186, %v2812
        %v2814 = vsel %vm2722, %v2813, %v2809
        %v2815 = vlaneseq
        %v2816 = vshrl.u32 %v2815, 7
        %v2817 = vsub.s32 %v2724, %v2816
        %v2818 = vrot.slane %v1200, %v2817
        %v2819 = vsel %vm2729, %v2818, %v2814
        %v2820 = vlaneseq
        %v2821 = vshrl.u32 %v2820, 7
        %v2822 = vsub.s32 %v2731, %v2821
        %v2823 = vrot.slane %v1214, %v2822
        %v2824 = vsel %vm2736, %v2823, %v2819
        %v2825 = vlaneseq
        %v2826 = vshrl.u32 %v2825, 7
        %v2827 = vsub.s32 %v2738, %v2826
        %v2828 = vrot.slane %v1228, %v2827
        %v2829 = vsel %vm2743, %v2828, %v2824
        %v2830 = vlaneseq
        %v2831 = vshrl.u32 %v2830, 7
        %v2832 = vsub.s32 %v2745, %v2831
        %v2833 = vrot.slane %v1242, %v2832
        %v2834 = vsel %vm2750, %v2833, %v2829
        %v2835 = vlaneseq
        %v2836 = vshrl.u32 %v2835, 7
        %v2837 = vsub.s32 %v2752, %v2836
        %v2838 = vrot.slane %v1256, %v2837
        %v2839 = vsel %vm2757, %v2838, %v2834
        %v2840 = vlaneseq
        %v2841 = vshrl.u32 %v2840, 7
        %v2842 = vsub.s32 %v2759, %v2841
        %v2843 = vrot.slane %v1270, %v2842
        %v2844 = vsel %vm2764, %v2843, %v2839
        %v2845 = vlaneseq
        %v2846 = vshrl.u32 %v2845, 7
        %v2847 = vsub.s32 %v566, %v2846
        %v2848 = vrot.slane %v1284, %v2847
        %v2849 = vlaneseq
        %v2850 = vshrl.u32 %v2849, 7
        %v2851 = vsub.s32 %v2661, %v2850
        %v2852 = vrot.slane %v1298, %v2851
        %v2853 = vsel %vm2666, %v2852, %v2848
        %v2854 = vlaneseq
        %v2855 = vshrl.u32 %v2854, 7
        %v2856 = vsub.s32 %v2668, %v2855
        %v2857 = vrot.slane %v1312, %v2856
        %v2858 = vsel %vm2673, %v2857, %v2853
        %v2859 = vlaneseq
        %v2860 = vshrl.u32 %v2859, 7
        %v2861 = vsub.s32 %v2675, %v2860
        %v2862 = vrot.slane %v1326, %v2861
        %v2863 = vsel %vm2680, %v2862, %v2858
        %v2864 = vlaneseq
        %v2865 = vshrl.u32 %v2864, 7
        %v2866 = vsub.s32 %v2682, %v2865
        %v2867 = vrot.slane %v1340, %v2866
        %v2868 = vsel %vm2687, %v2867, %v2863
        %v2869 = vlaneseq
        %v2870 = vshrl.u32 %v2869, 7
        %v2871 = vsub.s32 %v2689, %v2870
        %v2872 = vrot.slane %v1354, %v2871
        %v2873 = vsel %vm2694, %v2872, %v2868
        %v2874 = vlaneseq
        %v2875 = vshrl.u32 %v2874, 7
        %v2876 = vsub.s32 %v2696, %v2875
        %v2877 = vrot.slane %v1368, %v2876
        %v2878 = vsel %vm2701, %v2877, %v2873
        %v2879 = vlaneseq
        %v2880 = vshrl.u32 %v2879, 7
        %v2881 = vsub.s32 %v2703, %v2880
        %v2882 = vrot.slane %v1382, %v2881
        %v2883 = vsel %vm2708, %v2882, %v2878
        %v2884 = vlaneseq
        %v2885 = vshrl.u32 %v2884, 7
        %v2886 = vsub.s32 %v2710, %v2885
        %v2887 = vrot.slane %v1396, %v2886
        %v2888 = vsel %vm2715, %v2887, %v2883
        %v2889 = vlaneseq
        %v2890 = vshrl.u32 %v2889, 7
        %v2891 = vsub.s32 %v2717, %v2890
        %v2892 = vrot.slane %v1410, %v2891
        %v2893 = vsel %vm2722, %v2892, %v2888
        %v2894 = vlaneseq
        %v2895 = vshrl.u32 %v2894, 7
        %v2896 = vsub.s32 %v2724, %v2895
        %v2897 = vrot.slane %v1424, %v2896
        %v2898 = vsel %vm2729, %v2897, %v2893
        %v2899 = vlaneseq
        %v2900 = vshrl.u32 %v2899, 7
        %v2901 = vsub.s32 %v2731, %v2900
        %v2902 = vrot.slane %v1438, %v2901
        %v2903 = vsel %vm2736, %v2902, %v2898
        %v2904 = vlaneseq
        %v2905 = vshrl.u32 %v2904, 7
        %v2906 = vsub.s32 %v2738, %v2905
        %v2907 = vrot.slane %v1452, %v2906
        %v2908 = vsel %vm2743, %v2907, %v2903
        %v2909 = vlaneseq
        %v2910 = vshrl.u32 %v2909, 7
        %v2911 = vsub.s32 %v2745, %v2910
        %v2912 = vrot.slane %v1466, %v2911
        %v2913 = vsel %vm2750, %v2912, %v2908
        %v2914 = vlaneseq
        %v2915 = vshrl.u32 %v2914, 7
        %v2916 = vsub.s32 %v2752, %v2915
        %v2917 = vrot.slane %v1480, %v2916
        %v2918 = vsel %vm2757, %v2917, %v2913
        %v2919 = vlaneseq
        %v2920 = vshrl.u32 %v2919, 7
        %v2921 = vsub.s32 %v2759, %v2920
        %v2922 = vrot.slane %v1494, %v2921
        %v2923 = vsel %vm2764, %v2922, %v2918
        %v2924 = vlaneseq
        %v2925 = vshrl.u32 %v2924, 7
        %v2926 = vsub.s32 %v566, %v2925
        %v2927 = vrot.slane %v1508, %v2926
        %v2928 = vlaneseq
        %v2929 = vshrl.u32 %v2928, 7
        %v2930 = vsub.s32 %v2661, %v2929
        %v2931 = vrot.slane %v1522, %v2930
        %v2932 = vsel %vm2666, %v2931, %v2927
        %v2933 = vlaneseq
        %v2934 = vshrl.u32 %v2933, 7
        %v2935 = vsub.s32 %v2668, %v2934
        %v2936 = vrot.slane %v1536, %v2935
        %v2937 = vsel %vm2673, %v2936, %v2932
        %v2938 = vlaneseq
        %v2939 = vshrl.u32 %v2938, 7
        %v2940 = vsub.s32 %v2675, %v2939
        %v2941 = vrot.slane %v1550, %v2940
        %v2942 = vsel %vm2680, %v2941, %v2937
        %v2943 = vlaneseq
        %v2944 = vshrl.u32 %v2943, 7
        %v2945 = vsub.s32 %v2682, %v2944
        %v2946 = vrot.slane %v1564, %v2945
        %v2947 = vsel %vm2687, %v2946, %v2942
        %v2948 = vlaneseq
        %v2949 = vshrl.u32 %v2948, 7
        %v2950 = vsub.s32 %v2689, %v2949
        %v2951 = vrot.slane %v1578, %v2950
        %v2952 = vsel %vm2694, %v2951, %v2947
        %v2953 = vlaneseq
        %v2954 = vshrl.u32 %v2953, 7
        %v2955 = vsub.s32 %v2696, %v2954
        %v2956 = vrot.slane %v1592, %v2955
        %v2957 = vsel %vm2701, %v2956, %v2952
        %v2958 = vlaneseq
        %v2959 = vshrl.u32 %v2958, 7
        %v2960 = vsub.s32 %v2703, %v2959
        %v2961 = vrot.slane %v1606, %v2960
        %v2962 = vsel %vm2708, %v2961, %v2957
        %v2963 = vlaneseq
        %v2964 = vshrl.u32 %v2963, 7
        %v2965 = vsub.s32 %v2710, %v2964
        %v2966 = vrot.slane %v1620, %v2965
        %v2967 = vsel %vm2715, %v2966, %v2962
        %v2968 = vlaneseq
        %v2969 = vshrl.u32 %v2968, 7
        %v2970 = vsub.s32 %v2717, %v2969
        %v2971 = vrot.slane %v1634, %v2970
        %v2972 = vsel %vm2722, %v2971, %v2967
        %v2973 = vlaneseq
        %v2974 = vshrl.u32 %v2973, 7
        %v2975 = vsub.s32 %v2724, %v2974
        %v2976 = vrot.slane %v1648, %v2975
        %v2977 = vsel %vm2729, %v2976, %v2972
        %v2978 = vlaneseq
        %v2979 = vshrl.u32 %v2978, 7
        %v2980 = vsub.s32 %v2731, %v2979
        %v2981 = vrot.slane %v1662, %v2980
        %v2982 = vsel %vm2736, %v2981, %v2977
        %v2983 = vlaneseq
        %v2984 = vshrl.u32 %v2983, 7
        %v2985 = vsub.s32 %v2738, %v2984
        %v2986 = vrot.slane %v1676, %v2985
        %v2987 = vsel %vm2743, %v2986, %v2982
        %v2988 = vlaneseq
        %v2989 = vshrl.u32 %v2988, 7
        %v2990 = vsub.s32 %v2745, %v2989
        %v2991 = vrot.slane %v1690, %v2990
        %v2992 = vsel %vm2750, %v2991, %v2987
        %v2993 = vlaneseq
        %v2994 = vshrl.u32 %v2993, 7
        %v2995 = vsub.s32 %v2752, %v2994
        %v2996 = vrot.slane %v1704, %v2995
        %v2997 = vsel %vm2757, %v2996, %v2992
        %v2998 = vlaneseq
        %v2999 = vshrl.u32 %v2998, 7
        %v3000 = vsub.s32 %v2759, %v2999
        %v3001 = vrot.slane %v1718, %v3000
        %v3002 = vsel %vm2764, %v3001, %v2997
        %v3003 = vlaneseq
        %v3004 = vshrl.u32 %v3003, 7
        %v3005 = vsub.s32 %v566, %v3004
        %v3006 = vrot.slane %v1732, %v3005
        %v3007 = vlaneseq
        %v3008 = vshrl.u32 %v3007, 7
        %v3009 = vsub.s32 %v2661, %v3008
        %v3010 = vrot.slane %v1746, %v3009
        %v3011 = vsel %vm2666, %v3010, %v3006
        %v3012 = vlaneseq
        %v3013 = vshrl.u32 %v3012, 7
        %v3014 = vsub.s32 %v2668, %v3013
        %v3015 = vrot.slane %v1760, %v3014
        %v3016 = vsel %vm2673, %v3015, %v3011
        %v3017 = vlaneseq
        %v3018 = vshrl.u32 %v3017, 7
        %v3019 = vsub.s32 %v2675, %v3018
        %v3020 = vrot.slane %v1774, %v3019
        %v3021 = vsel %vm2680, %v3020, %v3016
        %v3022 = vlaneseq
        %v3023 = vshrl.u32 %v3022, 7
        %v3024 = vsub.s32 %v2682, %v3023
        %v3025 = vrot.slane %v1788, %v3024
        %v3026 = vsel %vm2687, %v3025, %v3021
        %v3027 = vlaneseq
        %v3028 = vshrl.u32 %v3027, 7
        %v3029 = vsub.s32 %v2689, %v3028
        %v3030 = vrot.slane %v1802, %v3029
        %v3031 = vsel %vm2694, %v3030, %v3026
        %v3032 = vlaneseq
        %v3033 = vshrl.u32 %v3032, 7
        %v3034 = vsub.s32 %v2696, %v3033
        %v3035 = vrot.slane %v1816, %v3034
        %v3036 = vsel %vm2701, %v3035, %v3031
        %v3037 = vlaneseq
        %v3038 = vshrl.u32 %v3037, 7
        %v3039 = vsub.s32 %v2703, %v3038
        %v3040 = vrot.slane %v1830, %v3039
        %v3041 = vsel %vm2708, %v3040, %v3036
        %v3042 = vlaneseq
        %v3043 = vshrl.u32 %v3042, 7
        %v3044 = vsub.s32 %v2710, %v3043
        %v3045 = vrot.slane %v1844, %v3044
        %v3046 = vsel %vm2715, %v3045, %v3041
        %v3047 = vlaneseq
        %v3048 = vshrl.u32 %v3047, 7
        %v3049 = vsub.s32 %v2717, %v3048
        %v3050 = vrot.slane %v1858, %v3049
        %v3051 = vsel %vm2722, %v3050, %v3046
        %v3052 = vlaneseq
        %v3053 = vshrl.u32 %v3052, 7
        %v3054 = vsub.s32 %v2724, %v3053
        %v3055 = vrot.slane %v1872, %v3054
        %v3056 = vsel %vm2729, %v3055, %v3051
        %v3057 = vlaneseq
        %v3058 = vshrl.u32 %v3057, 7
        %v3059 = vsub.s32 %v2731, %v3058
        %v3060 = vrot.slane %v1886, %v3059
        %v3061 = vsel %vm2736, %v3060, %v3056
        %v3062 = vlaneseq
        %v3063 = vshrl.u32 %v3062, 7
        %v3064 = vsub.s32 %v2738, %v3063
        %v3065 = vrot.slane %v1900, %v3064
        %v3066 = vsel %vm2743, %v3065, %v3061
        %v3067 = vlaneseq
        %v3068 = vshrl.u32 %v3067, 7
        %v3069 = vsub.s32 %v2745, %v3068
        %v3070 = vrot.slane %v1914, %v3069
        %v3071 = vsel %vm2750, %v3070, %v3066
        %v3072 = vlaneseq
        %v3073 = vshrl.u32 %v3072, 7
        %v3074 = vsub.s32 %v2752, %v3073
        %v3075 = vrot.slane %v1928, %v3074
        %v3076 = vsel %vm2757, %v3075, %v3071
        %v3077 = vlaneseq
        %v3078 = vshrl.u32 %v3077, 7
        %v3079 = vsub.s32 %v2759, %v3078
        %v3080 = vrot.slane %v1942, %v3079
        %v3081 = vsel %vm2764, %v3080, %v3076
        %v3082 = vlaneseq
        %v3083 = vshrl.u32 %v3082, 7
        %v3084 = vsub.s32 %v566, %v3083
        %v3085 = vrot.slane %v1956, %v3084
        %v3086 = vlaneseq
        %v3087 = vshrl.u32 %v3086, 7
        %v3088 = vsub.s32 %v2661, %v3087
        %v3089 = vrot.slane %v1970, %v3088
        %v3090 = vsel %vm2666, %v3089, %v3085
        %v3091 = vlaneseq
        %v3092 = vshrl.u32 %v3091, 7
        %v3093 = vsub.s32 %v2668, %v3092
        %v3094 = vrot.slane %v1984, %v3093
        %v3095 = vsel %vm2673, %v3094, %v3090
        %v3096 = vlaneseq
        %v3097 = vshrl.u32 %v3096, 7
        %v3098 = vsub.s32 %v2675, %v3097
        %v3099 = vrot.slane %v1998, %v3098
        %v3100 = vsel %vm2680, %v3099, %v3095
        %v3101 = vlaneseq
        %v3102 = vshrl.u32 %v3101, 7
        %v3103 = vsub.s32 %v2682, %v3102
        %v3104 = vrot.slane %v2012, %v3103
        %v3105 = vsel %vm2687, %v3104, %v3100
        %v3106 = vlaneseq
        %v3107 = vshrl.u32 %v3106, 7
        %v3108 = vsub.s32 %v2689, %v3107
        %v3109 = vrot.slane %v2026, %v3108
        %v3110 = vsel %vm2694, %v3109, %v3105
        %v3111 = vlaneseq
        %v3112 = vshrl.u32 %v3111, 7
        %v3113 = vsub.s32 %v2696, %v3112
        %v3114 = vrot.slane %v2040, %v3113
        %v3115 = vsel %vm2701, %v3114, %v3110
        %v3116 = vlaneseq
        %v3117 = vshrl.u32 %v3116, 7
        %v3118 = vsub.s32 %v2703, %v3117
        %v3119 = vrot.slane %v2054, %v3118
        %v3120 = vsel %vm2708, %v3119, %v3115
        %v3121 = vlaneseq
        %v3122 = vshrl.u32 %v3121, 7
        %v3123 = vsub.s32 %v2710, %v3122
        %v3124 = vrot.slane %v2068, %v3123
        %v3125 = vsel %vm2715, %v3124, %v3120
        %v3126 = vlaneseq
        %v3127 = vshrl.u32 %v3126, 7
        %v3128 = vsub.s32 %v2717, %v3127
        %v3129 = vrot.slane %v2082, %v3128
        %v3130 = vsel %vm2722, %v3129, %v3125
        %v3131 = vlaneseq
        %v3132 = vshrl.u32 %v3131, 7
        %v3133 = vsub.s32 %v2724, %v3132
        %v3134 = vrot.slane %v2096, %v3133
        %v3135 = vsel %vm2729, %v3134, %v3130
        %v3136 = vlaneseq
        %v3137 = vshrl.u32 %v3136, 7
        %v3138 = vsub.s32 %v2731, %v3137
        %v3139 = vrot.slane %v2110, %v3138
        %v3140 = vsel %vm2736, %v3139, %v3135
        %v3141 = vlaneseq
        %v3142 = vshrl.u32 %v3141, 7
        %v3143 = vsub.s32 %v2738, %v3142
        %v3144 = vrot.slane %v2124, %v3143
        %v3145 = vsel %vm2743, %v3144, %v3140
        %v3146 = vlaneseq
        %v3147 = vshrl.u32 %v3146, 7
        %v3148 = vsub.s32 %v2745, %v3147
        %v3149 = vrot.slane %v2138, %v3148
        %v3150 = vsel %vm2750, %v3149, %v3145
        %v3151 = vlaneseq
        %v3152 = vshrl.u32 %v3151, 7
        %v3153 = vsub.s32 %v2752, %v3152
        %v3154 = vrot.slane %v2152, %v3153
        %v3155 = vsel %vm2757, %v3154, %v3150
        %v3156 = vlaneseq
        %v3157 = vshrl.u32 %v3156, 7
        %v3158 = vsub.s32 %v2759, %v3157
        %v3159 = vrot.slane %v2166, %v3158
        %v3160 = vsel %vm2764, %v3159, %v3155
        %v3161 = vlaneseq
        %v3162 = vshrl.u32 %v3161, 7
        %v3163 = vsub.s32 %v566, %v3162
        %v3164 = vrot.slane %v2180, %v3163
        %v3165 = vlaneseq
        %v3166 = vshrl.u32 %v3165, 7
        %v3167 = vsub.s32 %v2661, %v3166
        %v3168 = vrot.slane %v2194, %v3167
        %v3169 = vsel %vm2666, %v3168, %v3164
        %v3170 = vlaneseq
        %v3171 = vshrl.u32 %v3170, 7
        %v3172 = vsub.s32 %v2668, %v3171
        %v3173 = vrot.slane %v2208, %v3172
        %v3174 = vsel %vm2673, %v3173, %v3169
        %v3175 = vlaneseq
        %v3176 = vshrl.u32 %v3175, 7
        %v3177 = vsub.s32 %v2675, %v3176
        %v3178 = vrot.slane %v2222, %v3177
        %v3179 = vsel %vm2680, %v3178, %v3174
        %v3180 = vlaneseq
        %v3181 = vshrl.u32 %v3180, 7
        %v3182 = vsub.s32 %v2682, %v3181
        %v3183 = vrot.slane %v2236, %v3182
        %v3184 = vsel %vm2687, %v3183, %v3179
        %v3185 = vlaneseq
        %v3186 = vshrl.u32 %v3185, 7
        %v3187 = vsub.s32 %v2689, %v3186
        %v3188 = vrot.slane %v2250, %v3187
        %v3189 = vsel %vm2694, %v3188, %v3184
        %v3190 = vlaneseq
        %v3191 = vshrl.u32 %v3190, 7
        %v3192 = vsub.s32 %v2696, %v3191
        %v3193 = vrot.slane %v2264, %v3192
        %v3194 = vsel %vm2701, %v3193, %v3189
        %v3195 = vlaneseq
        %v3196 = vshrl.u32 %v3195, 7
        %v3197 = vsub.s32 %v2703, %v3196
        %v3198 = vrot.slane %v2278, %v3197
        %v3199 = vsel %vm2708, %v3198, %v3194
        %v3200 = vlaneseq
        %v3201 = vshrl.u32 %v3200, 7
        %v3202 = vsub.s32 %v2710, %v3201
        %v3203 = vrot.slane %v2292, %v3202
        %v3204 = vsel %vm2715, %v3203, %v3199
        %v3205 = vlaneseq
        %v3206 = vshrl.u32 %v3205, 7
        %v3207 = vsub.s32 %v2717, %v3206
        %v3208 = vrot.slane %v2306, %v3207
        %v3209 = vsel %vm2722, %v3208, %v3204
        %v3210 = vlaneseq
        %v3211 = vshrl.u32 %v3210, 7
        %v3212 = vsub.s32 %v2724, %v3211
        %v3213 = vrot.slane %v2320, %v3212
        %v3214 = vsel %vm2729, %v3213, %v3209
        %v3215 = vlaneseq
        %v3216 = vshrl.u32 %v3215, 7
        %v3217 = vsub.s32 %v2731, %v3216
        %v3218 = vrot.slane %v2334, %v3217
        %v3219 = vsel %vm2736, %v3218, %v3214
        %v3220 = vlaneseq
        %v3221 = vshrl.u32 %v3220, 7
        %v3222 = vsub.s32 %v2738, %v3221
        %v3223 = vrot.slane %v2348, %v3222
        %v3224 = vsel %vm2743, %v3223, %v3219
        %v3225 = vlaneseq
        %v3226 = vshrl.u32 %v3225, 7
        %v3227 = vsub.s32 %v2745, %v3226
        %v3228 = vrot.slane %v2362, %v3227
        %v3229 = vsel %vm2750, %v3228, %v3224
        %v3230 = vlaneseq
        %v3231 = vshrl.u32 %v3230, 7
        %v3232 = vsub.s32 %v2752, %v3231
        %v3233 = vrot.slane %v2376, %v3232
        %v3234 = vsel %vm2757, %v3233, %v3229
        %v3235 = vlaneseq
        %v3236 = vshrl.u32 %v3235, 7
        %v3237 = vsub.s32 %v2759, %v3236
        %v3238 = vrot.slane %v2390, %v3237
        %v3239 = vsel %vm2764, %v3238, %v3234
        %v3240 = vlaneseq
        %v3241 = vshrl.u32 %v3240, 7
        %v3242 = vsub.s32 %v566, %v3241
        %v3243 = vrot.slane %v2404, %v3242
        %v3244 = vlaneseq
        %v3245 = vshrl.u32 %v3244, 7
        %v3246 = vsub.s32 %v2661, %v3245
        %v3247 = vrot.slane %v2418, %v3246
        %v3248 = vsel %vm2666, %v3247, %v3243
        %v3249 = vlaneseq
        %v3250 = vshrl.u32 %v3249, 7
        %v3251 = vsub.s32 %v2668, %v3250
        %v3252 = vrot.slane %v2432, %v3251
        %v3253 = vsel %vm2673, %v3252, %v3248
        %v3254 = vlaneseq
        %v3255 = vshrl.u32 %v3254, 7
        %v3256 = vsub.s32 %v2675, %v3255
        %v3257 = vrot.slane %v2446, %v3256
        %v3258 = vsel %vm2680, %v3257, %v3253
        %v3259 = vlaneseq
        %v3260 = vshrl.u32 %v3259, 7
        %v3261 = vsub.s32 %v2682, %v3260
        %v3262 = vrot.slane %v2460, %v3261
        %v3263 = vsel %vm2687, %v3262, %v3258
        %v3264 = vlaneseq
        %v3265 = vshrl.u32 %v3264, 7
        %v3266 = vsub.s32 %v2689, %v3265
        %v3267 = vrot.slane %v2474, %v3266
        %v3268 = vsel %vm2694, %v3267, %v3263
        %v3269 = vlaneseq
        %v3270 = vshrl.u32 %v3269, 7
        %v3271 = vsub.s32 %v2696, %v3270
        %v3272 = vrot.slane %v2488, %v3271
        %v3273 = vsel %vm2701, %v3272, %v3268
        %v3274 = vlaneseq
        %v3275 = vshrl.u32 %v3274, 7
        %v3276 = vsub.s32 %v2703, %v3275
        %v3277 = vrot.slane %v2502, %v3276
        %v3278 = vsel %vm2708, %v3277, %v3273
        %v3279 = vlaneseq
        %v3280 = vshrl.u32 %v3279, 7
        %v3281 = vsub.s32 %v2710, %v3280
        %v3282 = vrot.slane %v2516, %v3281
        %v3283 = vsel %vm2715, %v3282, %v3278
        %v3284 = vlaneseq
        %v3285 = vshrl.u32 %v3284, 7
        %v3286 = vsub.s32 %v2717, %v3285
        %v3287 = vrot.slane %v2530, %v3286
        %v3288 = vsel %vm2722, %v3287, %v3283
        %v3289 = vlaneseq
        %v3290 = vshrl.u32 %v3289, 7
        %v3291 = vsub.s32 %v2724, %v3290
        %v3292 = vrot.slane %v2544, %v3291
        %v3293 = vsel %vm2729, %v3292, %v3288
        %v3294 = vlaneseq
        %v3295 = vshrl.u32 %v3294, 7
        %v3296 = vsub.s32 %v2731, %v3295
        %v3297 = vrot.slane %v2558, %v3296
        %v3298 = vsel %vm2736, %v3297, %v3293
        %v3299 = vlaneseq
        %v3300 = vshrl.u32 %v3299, 7
        %v3301 = vsub.s32 %v2738, %v3300
        %v3302 = vrot.slane %v2572, %v3301
        %v3303 = vsel %vm2743, %v3302, %v3298
        %v3304 = vlaneseq
        %v3305 = vshrl.u32 %v3304, 7
        %v3306 = vsub.s32 %v2745, %v3305
        %v3307 = vrot.slane %v2586, %v3306
        %v3308 = vsel %vm2750, %v3307, %v3303
        %v3309 = vlaneseq
        %v3310 = vshrl.u32 %v3309, 7
        %v3311 = vsub.s32 %v2752, %v3310
        %v3312 = vrot.slane %v2600, %v3311
        %v3313 = vsel %vm2757, %v3312, %v3308
        %v3314 = vlaneseq
        %v3315 = vshrl.u32 %v3314, 7
        %v3316 = vsub.s32 %v2759, %v3315
        %v3317 = vrot.slane %v2614, %v3316
        %v3318 = vsel %vm2764, %v3317, %v3313
        %vm3319 = vcmask 1041409
        %v3320 = vsel %vm3319, %v2844, %v2765
        %vm3321 = vcmask 1042434
        %v3322 = vsel %vm3321, %v2923, %v3320
        %vm3323 = vcmask 1043459
        %v3324 = vsel %vm3323, %v3002, %v3322
        %vm3325 = vcmask 1044484
        %v3326 = vsel %vm3325, %v3081, %v3324
        %vm3327 = vcmask 1045509
        %v3328 = vsel %vm3327, %v3160, %v3326
        %vm3329 = vcmask 1046534
        %v3330 = vsel %vm3329, %v3239, %v3328
        %vm3331 = vcmask 1047559
        %v3332 = vsel %vm3331, %v3318, %v3330
        %v3333 = vsel %vm2656, %v3332, 0
        %3334 = vrot.lane.b32.xlu0 %v3333, 1
        %v3335 = vpop.permute.xlu0 %3334
        %vm3336 = vcmp.eq.s32.totalorder %v566, 0
        %v3337 = vsel %vm3336, 0, %v3335
        %vm3338 = vcmp.ne.s32.totalorder %v3333, 0
        %vm3339 = vcmp.ne.s32.totalorder %v3333, %v3337
        %vm3340 = vmand %vm3338, %vm3339
        %v3341 = vsel %vm3340, 1, 0
        %vm3342 = vcmp.ge.s32.totalorder %v566, 1
        %3343 = vrot.lane.b32.xlu0 %v3341, 1
        %v3344 = vpop.permute.xlu0 %3343
        %v3345 = vsel %vm3342, %v3344, 0
        %v3346 = vadd.s32 %v3341, %v3345
        %vm3347 = vcmp.ge.s32.totalorder %v566, 2
        %3348 = vrot.lane.b32.xlu0 %v3346, 2
        %v3349 = vpop.permute.xlu0 %3348
        %v3350 = vsel %vm3347, %v3349, 0
        %v3351 = vadd.s32 %v3346, %v3350
        %vm3352 = vcmp.ge.s32.totalorder %v566, 4
        %3353 = vrot.lane.b32.xlu0 %v3351, 4
        %v3354 = vpop.permute.xlu0 %3353
        %v3355 = vsel %vm3352, %v3354, 0
        %v3356 = vadd.s32 %v3351, %v3355
        %vm3357 = vcmp.ge.s32.totalorder %v566, 8
        %3358 = vrot.lane.b32.xlu0 %v3356, 8
        %v3359 = vpop.permute.xlu0 %3358
        %v3360 = vsel %vm3357, %v3359, 0
        %v3361 = vadd.s32 %v3356, %v3360
        %vm3362 = vcmp.ge.s32.totalorder %v566, 16
        %3363 = vrot.lane.b32.xlu0 %v3361, 16
        %v3364 = vpop.permute.xlu0 %3363
        %v3365 = vsel %vm3362, %v3364, 0
        %v3366 = vadd.s32 %v3361, %v3365
        %vm3367 = vcmp.ge.s32.totalorder %v566, 32
        %3368 = vrot.lane.b32.xlu0 %v3366, 32
        %v3369 = vpop.permute.xlu0 %3368
        %v3370 = vsel %vm3367, %v3369, 0
        %v3371 = vadd.s32 %v3366, %v3370
        %vm3372 = vcmp.ge.s32.totalorder %v566, 64
        %3373 = vrot.lane.b32.xlu0 %v3371, 64
        %v3374 = vpop.permute.xlu0 %3373
        %v3375 = vsel %vm3372, %v3374, 0
        %v3376 = vadd.s32 %v3371, %v3375
        %v3377 = vsel %vm3340, %v3333, 0
        %3378 = vst [vmem:[%s171] sm:$0xff] %v3377
        %v3379 = vsub.s32 %v3376, 1
        %v3380 = vsel %vm3340, %v3379, 128
        %3381 = vst [vmem:[%s178] sm:$0xff] %v3380
        %s3382 = sand.u32 %s62, 1
        %s3383 = scalar_lea.sflag [#allocation6], %s3382
        %s3384 = sand.u32 %s62, 1
        %s3385 = smul.addr %s3384, 8
        %s3386 = scalar_lea.vmem [#allocation7], %s3385
        %s3387 = sand.u32 %s88, 1
        %s3388 = scalar_lea.sflag [#allocation9], %s3387
        %s3389 = sand.u32 %s88, 1
        %s3390 = smul.addr %s3389, 8
        %s3391 = scalar_lea.vmem [#allocation8], %s3390
        // Predicated region
        $region29: #{tpu_custom_call.1} parent=23 // pred_check
          %p3392 = pneg %p72
        $region30: #{tpu_custom_call.1} parent=23 // pred_check_branch
          %3394 = sbr.rel (%p3392) target = $region32
        $region31: #{tpu_custom_call.1} parent=23 // pred_region
          %s3396 = ssub.s32 128, 128
          %3397 = vsyncadd %s3383, %s3396
          %s3398 = smul.addr %s28, 128
          %s3399 = scalar_lea.hbm %s2, %s3398
          %s3401 = sshll.u32 %s3386, 4
          %s3402 = int_to_ptr.vmem [resolvable:$true] %s3401
          %3404 = dma.vmem_to_hbm [thread:$0]  %s3402, 128, %s3399, %s3383
        $region32: #{tpu_custom_call.1} parent=23 // pred_fallthru
          _
        // Predicated region
        $region33: #{tpu_custom_call.1} parent=23 // pred_check
          %p3405 = pneg %p98
        $region34: #{tpu_custom_call.1} parent=23 // pred_check_branch
          %3407 = sbr.rel (%p3405) target = $region36
        $region35: #{tpu_custom_call.1} parent=23 // pred_region
          %s3409 = ssub.s32 128, 128
          %3410 = vsyncadd %s3388, %s3409
          %s3411 = smul.addr %s28, 128
          %s3412 = scalar_lea.hbm %s3, %s3411
          %s3414 = sshll.u32 %s3391, 4
          %s3415 = int_to_ptr.vmem [resolvable:$true] %s3414
          %3417 = dma.vmem_to_hbm [thread:$0]  %s3415, 128, %s3412, %s3388
        $region36: #{tpu_custom_call.1} parent=23 // pred_fallthru
          _
      $region24: #{tpu_custom_call.1} parent=5 // pred_fallthru
        _
      %p3418 = scmp.le.s32.totalorder 2, %s23
      // Predicated region
      $region37: #{tpu_custom_call.1} parent=5 // pred_check
        %p3419 = pneg %p3418
      $region38: #{tpu_custom_call.1} parent=5 // pred_check_branch
        %3421 = sbr.rel (%p3419) target = $region40
      $region39: #{tpu_custom_call.1} parent=5 // pred_region
        %s3422 = ssub.s32 %s23, 2
        // Predicated region
        $region41: #{tpu_custom_call.1} parent=39 // pred_check
          %p3423 = pneg %p78
        $region42: #{tpu_custom_call.1} parent=39 // pred_check_branch
          %3425 = sbr.rel (%p3423) target = $region44
        $region43: #{tpu_custom_call.1} parent=39 // pred_region
          %s3426 = sand.u32 %s63, 1
          %s3427 = scalar_lea.sflag [#allocation6], %s3426
          %s3428 = sand.u32 %s63, 1
          %s3429 = smul.addr %s3428, 8
          %s3430 = scalar_lea.vmem [#allocation7], %s3429
          %3431 = dma.done %s3427, 128
        $region44: #{tpu_custom_call.1} parent=39 // pred_fallthru
          _
        // Predicated region
        $region45: #{tpu_custom_call.1} parent=39 // pred_check
          %p3432 = pneg %p104
        $region46: #{tpu_custom_call.1} parent=39 // pred_check_branch
          %3434 = sbr.rel (%p3432) target = $region48
        $region47: #{tpu_custom_call.1} parent=39 // pred_region
          %s3435 = sand.u32 %s89, 1
          %s3436 = scalar_lea.sflag [#allocation9], %s3435
          %s3437 = sand.u32 %s89, 1
          %s3438 = smul.addr %s3437, 8
          %s3439 = scalar_lea.vmem [#allocation8], %s3438
          %3440 = dma.done %s3436, 128
        $region48: #{tpu_custom_call.1} parent=39 // pred_fallthru
          _
      $region40: #{tpu_custom_call.1} parent=5 // pred_fallthru
        _
    $region6: #{tpu_custom_call.1} parent=1 // loop_footer
      %s27 = sadd.s32 1, %s23
    $region7: #{tpu_custom_call.1} parent=1 // loop_footer_branch
      %22 = sbr.rel target = $region3
    $region8: #{tpu_custom_call.1} parent=1 // loop_exit
      _
    %3441 = vsyncpa [#allocation5], 1
    %s3442 = scalar_lea.sflag [#allocation5], 1
    %3443 = vsyncpa %s3442, 1
    %3444 = vsyncpa [#allocation6], 1
    %s3445 = scalar_lea.sflag [#allocation6], 1
    %3446 = vsyncpa %s3445, 1
    %3447 = vsyncpa [#allocation9], 1
    %s3448 = scalar_lea.sflag [#allocation9], 1
    %3449 = vsyncpa %s3448, 1

</llo_original>
